<compile_context>
chip_gen: v7x
topology: tpu7x:2x2x1
jax: 0.10.0
libtpu: 0.0.40
codegen_flags: <defaults>
</compile_context>

<pallas_src>
import functools

import jax
import jax.numpy as jnp
import numpy as np
from jax.experimental import pallas as pl
from jax.experimental.pallas import tpu as pltpu


# ----------------------------------------------------------------------------- #
# Config
# ----------------------------------------------------------------------------- #
# M tile for the GEMMs.  K and N are never tiled/padded (full-extent blocks).
# v5e: drop to 128 (16 MiB scoped VMEM); v6e: sweep 512-1024; v7x: keep >=2 M blocks.
_TILE_M = 256


def _round_up(x, m):
    return -(-x // m) * m


def _apply_act(y, act):
    if act == "relu":
        return jnp.maximum(y, 0.0)
    if act == "hardswish":
        return y * jnp.clip(y + 3.0, 0.0, 6.0) * (1.0 / 6.0)
    return y


# ----------------------------------------------------------------------------- #
# Pallas kernels
# ----------------------------------------------------------------------------- #
def _mm_bias_act_kernel(x_ref, w_ref, b_ref, o_ref, *, act):
    """y = act(x @ w + b); f32 MXU accumulation, fused epilogue."""
    y = jnp.dot(x_ref[...], w_ref[...], preferred_element_type=jnp.float32)
    y = y + b_ref[...]
    o_ref[...] = _apply_act(y, act).astype(o_ref.dtype)


def _mm_act_kernel(x_ref, w_ref, o_ref, *, act):
    """y = act(x @ w); bias-free variant (skips the +0 VALU pass)."""
    y = jnp.dot(x_ref[...], w_ref[...], preferred_element_type=jnp.float32)
    o_ref[...] = _apply_act(y, act).astype(o_ref.dtype)


def _aspp_proj_kernel(b0_ref, b1_ref, b2_ref, b3_ref,
                      w0_ref, w1_ref, w2_ref, w3_ref,
                      bias_ref, pb_ref, o_ref):
    """ASPP 1x1 projection without materializing the 4-branch concat:
    four partial dots accumulated in VMEM + per-image pooled-branch bias + ReLU."""
    y = jnp.dot(b0_ref[0], w0_ref[...], preferred_element_type=jnp.float32)
    y = y + jnp.dot(b1_ref[0], w1_ref[...], preferred_element_type=jnp.float32)
    y = y + jnp.dot(b2_ref[0], w2_ref[...], preferred_element_type=jnp.float32)
    y = y + jnp.dot(b3_ref[0], w3_ref[...], preferred_element_type=jnp.float32)
    y = y + bias_ref[...] + pb_ref[0]
    o_ref[0] = jnp.maximum(y, 0.0).astype(o_ref.dtype)


def _cls_kernel(y_ref, wt_ref, b_ref, o_ref):
    """1x1 classifier emitting (numClasses, pixels): lane-dense over pixels."""
    logits = jnp.einsum("kc,pc->kp", wt_ref[...], y_ref[0],
                        preferred_element_type=jnp.float32)
    o_ref[0] = logits + b_ref[...]


def _rows_interp_kernel(m_ref, x_ref, o_ref):
    """Height-interp stage of the separable bilinear upsample: Mh @ x."""
    o_ref[0] = jnp.dot(m_ref[...], x_ref[0], preferred_element_type=jnp.float32)


def _gap_kernel(x_ref, o_ref, *, scale):
    """Spatial mean (AdaptiveAvgPool2d(1)); spatial axis is a reduction grid axis."""
    @pl.when(pl.program_id(1) == 0)
    def _init():
        o_ref[...] = jnp.zeros_like(o_ref)

    o_ref[...] += jnp.sum(x_ref[...].astype(jnp.float32), axis=1,
                          keepdims=True) * scale


def _softmax_classes_kernel(x_ref, o_ref):
    """Softmax over the class (sublane) axis; pixels fill the 128-lane axis.
    Exact division -> channel probabilities sum to 1 at f32 precision."""
    x = x_ref[0]                                   # (C, tile_p) f32
    m = jnp.max(x, axis=0, keepdims=True)
    e = jnp.exp(x - m)
    s = jnp.sum(e, axis=0, keepdims=True)
    o_ref[0] = e / s


# ----------------------------------------------------------------------------- #
# Pallas wrappers
# ----------------------------------------------------------------------------- #
def matmul_bias_act(x, w, b=None, act="none", out_dtype=jnp.bfloat16,
                    compute_dtype=jnp.bfloat16):
    """y = act(x @ w [+ b]).  No M padding / output slicing: cdiv grid, ragged
    final block masked by Pallas.  K and N are single full-extent blocks."""
    m, k = x.shape
    _, n = w.shape
    tile_m = m if m <= _TILE_M else _TILE_M
    grid_m = pl.cdiv(m, tile_m)

    xc = x.astype(compute_dtype)
    wc = w.astype(compute_dtype)
    in_specs = [pl.BlockSpec((tile_m, k), lambda i: (i, 0)),
                pl.BlockSpec((k, n), lambda i: (0, 0))]
    args = [xc, wc]
    if b is not None:
        in_specs.append(pl.BlockSpec((1, n), lambda i: (0, 0)))
        args.append(b.astype(jnp.float32).reshape(1, n))
        kern = functools.partial(_mm_bias_act_kernel, act=act)
    else:
        kern = functools.partial(_mm_act_kernel, act=act)

    return pl.pallas_call(
        kern,
        out_shape=jax.ShapeDtypeStruct((m, n), out_dtype),
        grid_spec=pltpu.PrefetchScalarGridSpec(
            num_scalar_prefetch=0,
            grid=(grid_m,),
            in_specs=in_specs,
            out_specs=pl.BlockSpec((tile_m, n), lambda i: (i, 0)),
        ),
        compiler_params=pltpu.CompilerParams(
            dimension_semantics=("parallel",)),
    )(*args)


def aspp_project(branches, w_spatial, bias, pool_contrib, out_dtype=jnp.bfloat16):
    """ASPP projection over 4 un-concatenated spatial branches, pooled branch fused
    as a per-image epilogue bias.  Grid (N, pixel-tiles) -> >=2 parallel blocks."""
    n, hf, wf, c = branches[0].shape
    p = hf * wf
    cout = w_spatial.shape[1]
    tile_p = min(_round_up(p, 8), 512)
    grid_p = pl.cdiv(p, tile_p)

    xs = [br.astype(jnp.bfloat16).reshape(n, p, c) for br in branches]
    ws = [w_spatial[i * c:(i + 1) * c].astype(jnp.bfloat16) for i in range(4)]
    bb = bias.astype(jnp.float32).reshape(1, cout)
    pb = pool_contrib.astype(jnp.float32).reshape(n, 1, cout)

    x_spec = pl.BlockSpec((1, tile_p, c), lambda i, j: (i, j, 0))
    w_spec = pl.BlockSpec((c, cout), lambda i, j: (0, 0))

    out = pl.pallas_call(
        _aspp_proj_kernel,
        out_shape=jax.ShapeDtypeStruct((n, p, cout), out_dtype),
        grid_spec=pltpu.PrefetchScalarGridSpec(
            num_scalar_prefetch=0,
            grid=(n, grid_p),
            in_specs=[x_spec] * 4 + [w_spec] * 4 + [
                pl.BlockSpec((1, cout), lambda i, j: (0, 0)),
                pl.BlockSpec((1, 1, cout), lambda i, j: (i, 0, 0)),
            ],
            out_specs=pl.BlockSpec((1, tile_p, cout), lambda i, j: (i, j, 0)),
        ),
        compiler_params=pltpu.CompilerParams(
            dimension_semantics=("parallel", "parallel")),
    )(*xs, *ws, bb, pb)
    return out.reshape(n, hf, wf, cout)


def classifier_lane_dense(y_nhwc, w_cls, b_cls):
    """Replaced 1x1 classifier emitting (N, numClasses, hf*wf) with pixels on lanes
    (lane-dense stores; no HBM transpose before the upsample).  Stays f32."""
    n, hf, wf, c = y_nhwc.shape
    p = hf * wf
    ncls = w_cls.shape[1]
    x = y_nhwc.reshape(n, p, c).astype(jnp.bfloat16)
    wt = jnp.transpose(w_cls).astype(jnp.bfloat16)          # (ncls, c)
    bb = b_cls.astype(jnp.float32).reshape(ncls, 1)

    tile_p = min(p, 2048) if p % 128 == 0 else p
    grid_p = pl.cdiv(p, tile_p)

    return pl.pallas_call(
        _cls_kernel,
        out_shape=jax.ShapeDtypeStruct((n, ncls, p), jnp.float32),
        grid_spec=pltpu.PrefetchScalarGridSpec(
            num_scalar_prefetch=0,
            grid=(n, grid_p),
            in_specs=[pl.BlockSpec((1, tile_p, c), lambda i, j: (i, j, 0)),
                      pl.BlockSpec((ncls, c), lambda i, j: (0, 0)),
                      pl.BlockSpec((ncls, 1), lambda i, j: (0, 0))],
            out_specs=pl.BlockSpec((1, ncls, tile_p), lambda i, j: (i, 0, j)),
        ),
        compiler_params=pltpu.CompilerParams(
            dimension_semantics=("parallel", "parallel")),
    )(x, wt, bb)


def global_avg_pool(x):
    """(N, H, W, C) -> (N, C) with a spatially tiled Pallas reduction."""
    n, h, w, c = x.shape
    hw = h * w
    xr = x.reshape(n, hw, c)
    tile = min(_round_up(hw, 8), 1024)
    hwp = _round_up(hw, tile)
    if hwp != hw:
        xr = jnp.pad(xr, ((0, 0), (0, hwp - hw), (0, 0)))   # zero pad: sum unaffected

    out = pl.pallas_call(
        functools.partial(_gap_kernel, scale=1.0 / hw),
        out_shape=jax.ShapeDtypeStruct((n, 1, c), jnp.float32),
        grid_spec=pltpu.PrefetchScalarGridSpec(
            num_scalar_prefetch=0,
            grid=(n, hwp // tile),
            in_specs=[pl.BlockSpec((1, tile, c), lambda i, j: (i, j, 0))],
            out_specs=pl.BlockSpec((1, 1, c), lambda i, j: (i, 0, 0)),
        ),
        compiler_params=pltpu.CompilerParams(
            dimension_semantics=("parallel", "arbitrary")),
    )(xr)
    return out.reshape(n, c)


def softmax_over_classes(x_ncp):
    """Softmax over axis 1 of (N, C, P); lane-dense (pixels on lanes)."""
    n, c, p = x_ncp.shape
    x = x_ncp.astype(jnp.float32)
    if p % 128 == 0:
        pp = p
    else:
        pp = _round_up(p, 128)
        x = jnp.pad(x, ((0, 0), (0, 0), (0, pp - p)))
    tile_p = min(pp, 8192)
    grid_p = pl.cdiv(pp, tile_p)

    out = pl.pallas_call(
        _softmax_classes_kernel,
        out_shape=jax.ShapeDtypeStruct((n, c, pp), jnp.float32),
        grid_spec=pltpu.PrefetchScalarGridSpec(
            num_scalar_prefetch=0,
            grid=(n, grid_p),
            in_specs=[pl.BlockSpec((1, c, tile_p), lambda i, j: (i, 0, j))],
            out_specs=pl.BlockSpec((1, c, tile_p), lambda i, j: (i, 0, j)),
        ),
        compiler_params=pltpu.CompilerParams(
            dimension_semantics=("parallel", "parallel")),
    )(x)
    return out[:, :, :p] if pp != p else out


def upsample_bilinear_to(logits_ncp, hf, wf, h_out, w_out):
    """F.interpolate(bilinear, align_corners=False) as a SEPARABLE pair of small
    f32 GEMMs: width interp (.., wf)@(wf, W), then height interp (H, hf)@(hf, W)."""
    n, ncls, _ = logits_ncp.shape
    mw_t = jnp.asarray(_interp_matrix(w_out, wf).T)          # (wf, W)
    mh = jnp.asarray(_interp_matrix(h_out, hf))              # (H, hf)

    # stage 1: width
    x = logits_ncp.reshape(n * ncls * hf, wf)
    t = matmul_bias_act(x, mw_t, None, act="none",
                        out_dtype=jnp.float32, compute_dtype=jnp.float32)
    t = t.reshape(n * ncls, hf, w_out)

    # stage 2: height (batched over N*numClasses)
    out = pl.pallas_call(
        _rows_interp_kernel,
        out_shape=jax.ShapeDtypeStruct((n * ncls, h_out, w_out), jnp.float32),
        grid_spec=pltpu.PrefetchScalarGridSpec(
            num_scalar_prefetch=0,
            grid=(n * ncls,),
            in_specs=[pl.BlockSpec((h_out, hf), lambda i: (0, 0)),
                      pl.BlockSpec((1, hf, w_out), lambda i: (i, 0, 0))],
            out_specs=pl.BlockSpec((1, h_out, w_out), lambda i: (i, 0, 0)),
        ),
        compiler_params=pltpu.CompilerParams(
            dimension_semantics=("parallel",)),
    )(mh, t)
    return out.reshape(n, ncls, h_out * w_out)


# ----------------------------------------------------------------------------- #
# Plain-JAX glue (layout plumbing only; the Pallas matmuls do the compute)
# ----------------------------------------------------------------------------- #
def _im2col(x, kh, kw, stride, dilation, padding):
    """x: (N, H, W, C) -> (N*Ho*Wo, kh*kw*C), column order (tap_i, tap_j, c)."""
    n, h, w, c = x.shape
    xp = jnp.pad(x, ((0, 0), (padding, padding), (padding, padding), (0, 0)))
    ho = (h + 2 * padding - dilation * (kh - 1) - 1) // stride + 1
    wo = (w + 2 * padding - dilation * (kw - 1) - 1) // stride + 1
    cols = []
    for i in range(kh):
        for j in range(kw):
            patch = xp[:,
                       i * dilation: i * dilation + (ho - 1) * stride + 1: stride,
                       j * dilation: j * dilation + (wo - 1) * stride + 1: stride,
                       :]
            cols.append(patch)
    cols = jnp.concatenate(cols, axis=-1)
    return cols.reshape(n * ho * wo, kh * kw * c), (n, ho, wo)


def conv2d(x, w_mat, b, kh, kw, stride, dilation, padding, act,
           out_dtype=jnp.bfloat16):
    if kh == 1 and kw == 1 and stride == 1 and padding == 0:
        n, h, w, c = x.shape
        y = matmul_bias_act(x.reshape(n * h * w, c), w_mat, b, act=act,
                            out_dtype=out_dtype)
        return y.reshape(n, h, w, -1)
    cols, (n, ho, wo) = _im2col(x.astype(jnp.bfloat16), kh, kw, stride,
                                dilation, padding)
    y = matmul_bias_act(cols, w_mat, b, act=act, out_dtype=out_dtype)
    return y.reshape(n, ho, wo, -1)


def aspp_dilated_branches(f, branch_params, rates, act="relu"):
    """The three dilated 3x3 branches share ONE max-rate padded copy of f."""
    n, h, w, c = f.shape
    rmax = max(rates)
    fp = jnp.pad(f.astype(jnp.bfloat16),
                 ((0, 0), (rmax, rmax), (rmax, rmax), (0, 0)))
    outs = []
    for (w_mat, b), r in zip(branch_params, rates):
        taps = []
        for i in range(3):
            for j in range(3):
                oi = rmax + (i - 1) * r
                oj = rmax + (j - 1) * r
                taps.append(fp[:, oi:oi + h, oj:oj + w, :])
        cols = jnp.concatenate(taps, axis=-1).reshape(n * h * w, 9 * c)
        outs.append(matmul_bias_act(cols, w_mat, b, act=act).reshape(n, h, w, -1))
    return outs


def _interp_matrix(out_size, in_size):
    """PyTorch bilinear (align_corners=False) 1-D interpolation matrix (numpy)."""
    dst = np.arange(out_size, dtype=np.float64)
    src = np.clip((dst + 0.5) * (in_size / out_size) - 0.5, 0.0, in_size - 1)
    lo = np.floor(src).astype(np.int64)
    hi = np.minimum(lo + 1, in_size - 1)
    w_hi = src - lo
    w_lo = 1.0 - w_hi
    mat = np.zeros((out_size, in_size), np.float32)
    mat[np.arange(out_size), lo] += w_lo
    mat[np.arange(out_size), hi] += w_hi
    return mat


# ----------------------------------------------------------------------------- #
# Deterministic parameter init (BatchNorms folded; synthetic weights, no checkpoint)
# ----------------------------------------------------------------------------- #
def _conv_params(key, cin, cout, kh, kw):
    k1, k2 = jax.random.split(key)
    fan_in = kh * kw * cin
    w = jax.random.normal(k1, (fan_in, cout), jnp.float32) / np.sqrt(fan_in)
    b = jax.random.normal(k2, (cout,), jnp.float32) * 0.01
    return w, b


def init_params(key, num_classes=3, c_back=64, c_aspp=32):
    keys = jax.random.split(key, 16)
    p = {}
    # reduced stand-in backbone (see TODO(synk) above)
    p["b1"] = _conv_params(keys[0], 3, 16, 3, 3)
    p["b2"] = _conv_params(keys[1], 16, 32, 3, 3)
    p["b3"] = _conv_params(keys[2], 32, c_back, 3, 3)
    # ASPP (rates 12, 24, 36, as in DeepLabHead)
    p["a0"] = _conv_params(keys[3], c_back, c_aspp, 1, 1)
    p["a1"] = _conv_params(keys[4], c_back, c_aspp, 3, 3)
    p["a2"] = _conv_params(keys[5], c_back, c_aspp, 3, 3)
    p["a3"] = _conv_params(keys[6], c_back, c_aspp, 3, 3)
    p["apool"] = _conv_params(keys[7], c_back, c_aspp, 1, 1)
    p["aproj"] = _conv_params(keys[8], 5 * c_aspp, c_aspp, 1, 1)
    # head tail + replaced classifier[4] = Conv2d(., numClasses, 1x1)
    p["h1"] = _conv_params(keys[9], c_aspp, c_aspp, 3, 3)
    p["cls"] = _conv_params(keys[10], c_aspp, num_classes, 1, 1)
    return p


# ----------------------------------------------------------------------------- #
# Forward pass (matches Deeplab.forward: out = softmax(dl(x)['out'], dim=1))
# ----------------------------------------------------------------------------- #
def deeplab_forward(x_nchw, p):
    x = jnp.transpose(x_nchw, (0, 2, 3, 1)).astype(jnp.float32)   # NCHW -> NHWC
    n, h, w, _ = x.shape

    # backbone (OS = 8)
    f = conv2d(x, *p["b1"], 3, 3, 2, 1, 1, "hardswish")
    f = conv2d(f, *p["b2"], 3, 3, 2, 1, 1, "hardswish")
    f = conv2d(f, *p["b3"], 3, 3, 2, 1, 1, "hardswish")
    hf, wf = f.shape[1], f.shape[2]

    # ASPP spatial branches (dilated branches share one padded copy of f)
    br0 = conv2d(f, *p["a0"], 1, 1, 1, 1, 0, "relu")
    br1, br2, br3 = aspp_dilated_branches(
        f, [p["a1"], p["a2"], p["a3"]], rates=(12, 24, 36), act="relu")

    # ASPP pooled branch: GAP -> 1x1(relu); its projection contribution folds into
    # the per-image epilogue bias of the 1x1 projection (no spatial broadcast).
    g = global_avg_pool(f)                                          # (N, c_back)
    g = matmul_bias_act(g, *p["apool"], act="relu",
                        out_dtype=jnp.float32)                      # (N, c_aspp)
    w_aproj, b_aproj = p["aproj"]
    c_aspp = g.shape[-1]
    w_spatial, w_pool = w_aproj[:4 * c_aspp], w_aproj[4 * c_aspp:]
    pool_contrib = matmul_bias_act(g, w_pool, None, act="none",
                                   out_dtype=jnp.float32)           # (N, c_aspp)

    y = aspp_project((br0, br1, br2, br3), w_spatial, b_aproj, pool_contrib)

    # DeepLabHead tail + replaced 1x1 classifier (dropout = identity in eval)
    y = conv2d(y, *p["h1"], 3, 3, 1, 1, 1, "relu")
    logits_low = classifier_lane_dense(y, *p["cls"])                # (N, cls, hf*wf) f32

    # separable bilinear upsample to input resolution, softmax over classes (f32)
    logits = upsample_bilinear_to(logits_low, hf, wf, h, w)         # (N, cls, H*W)
    probs = softmax_over_classes(logits)                            # (N, cls, H*W)
    return probs.reshape(n, -1, h, w)


if __name__ == "__main__":
    key = jax.random.PRNGKey(0)
    k_param, k_x = jax.random.split(key)

    num_classes = 3
    x = jax.random.normal(k_x, (2, 3, 32, 32), jnp.float32)  # NCHW, RGB image batch
    params = init_params(k_param, num_classes=num_classes)

    fwd = jax.jit(deeplab_forward)
    out = fwd(x, params)
    out = jax.block_until_ready(out)

    assert out.shape == (2, num_classes, 32, 32), out.shape
    out_np = np.asarray(out)
    chan_sums = out_np.sum(axis=1)
    # exact-division softmax -> channel probabilities sum to 1 at f32 precision
    assert np.allclose(chan_sums, 1.0, atol=1e-4), "softmax over dim=1 should sum to 1"
    assert np.all(np.isfinite(out_np))

    print("KERNEL_OK")
</pallas_src>

<mosaic_0001>
module attributes {stable_mosaic.version = 11 : i64} {
  func.func @_mm_bias_act_kernel(%arg0: i32, %arg1: memref<256x27xbf16, #tpu.memory_space<vmem>>, %arg2: memref<27x16xbf16, #tpu.memory_space<vmem>>, %arg3: memref<1x16xf32, #tpu.memory_space<vmem>>, %arg4: memref<256x16xbf16, #tpu.memory_space<vmem>>) attributes {dimension_semantics = [#tpu.dimension_semantics<parallel>], iteration_bounds = array<i64: 2>, scalar_prefetch = 0 : i64, scratch_operands = 0 : i64, tpu.core_type = #tpu.core_type<tc>, window_params = [{transform_indices = @transform_0, window_bounds = array<i64: 256, 27>}, {pipeline_mode = #tpu.pipeline_mode<synchronous>, transform_indices = @transform_1, window_bounds = array<i64: 27, 16>}, {pipeline_mode = #tpu.pipeline_mode<synchronous>, transform_indices = @transform_2, window_bounds = array<i64: 1, 16>}, {transform_indices = @transform_3, window_bounds = array<i64: 256, 16>}]} {
    %c0 = arith.constant 0 : index
    %c0_0 = arith.constant 0 : index
    %0 = vector.load %arg1[%c0, %c0_0] : memref<256x27xbf16, #tpu.memory_space<vmem>>, vector<256x27xbf16>
    %c0_1 = arith.constant 0 : index
    %c0_2 = arith.constant 0 : index
    %1 = vector.load %arg2[%c0_1, %c0_2] : memref<27x16xbf16, #tpu.memory_space<vmem>>, vector<27x16xbf16>
    %cst = arith.constant dense<0.000000e+00> : vector<256x16xf32>
    %2 = tpu.matmul %0, %1, %cst {dimension_numbers = #tpu.dot_dimension_numbers<[1], [0], [0], [1], [0, 0, 1, 1], [], []>} : vector<256x27xbf16>, vector<27x16xbf16>, vector<256x16xf32> -> vector<256x16xf32>
    %c0_3 = arith.constant 0 : index
    %c0_4 = arith.constant 0 : index
    %3 = vector.load %arg3[%c0_3, %c0_4] : memref<1x16xf32, #tpu.memory_space<vmem>>, vector<1x16xf32>
    %4 = vector.broadcast %3 : vector<1x16xf32> to vector<256x16xf32>
    %5 = arith.addf %2, %4 : vector<256x16xf32>
    %cst_5 = arith.constant 3.000000e+00 : f32
    %6 = vector.broadcast %cst_5 : f32 to vector<256x16xf32>
    %7 = arith.addf %5, %6 : vector<256x16xf32>
    %cst_6 = arith.constant 0.000000e+00 : f32
    %cst_7 = arith.constant 6.000000e+00 : f32
    %8 = vector.broadcast %cst_6 : f32 to vector<256x16xf32>
    %9 = arith.maximumf %8, %7 : vector<256x16xf32>
    %10 = vector.broadcast %cst_7 : f32 to vector<256x16xf32>
    %11 = arith.minimumf %10, %9 : vector<256x16xf32>
    %12 = arith.mulf %5, %11 : vector<256x16xf32>
    %cst_8 = arith.constant 0.166666672 : f32
    %13 = vector.broadcast %cst_8 : f32 to vector<256x16xf32>
    %14 = arith.mulf %12, %13 : vector<256x16xf32>
    %15 = arith.truncf %14 : vector<256x16xf32> to vector<256x16xbf16>
    %c0_9 = arith.constant 0 : index
    %c0_10 = arith.constant 0 : index
    %16 = vector.load %arg4[%c0_9, %c0_10] : memref<256x16xbf16, #tpu.memory_space<vmem>>, vector<256x16xbf16>
    tpu.vector_store %arg4[%c0_9, %c0_10], %15 {strides = array<i32>} : memref<256x16xbf16, #tpu.memory_space<vmem>>, vector<256x16xbf16>,
    return
  }
  func.func @transform_0(%arg0: i32) -> (i32, i32) {
    %c0_i32 = arith.constant 0 : i32
    %c0_i32_0 = arith.constant 0 : i32
    return %arg0, %c0_i32 : i32, i32
  }
  func.func @transform_1(%arg0: i32) -> (i32, i32) {
    %c0_i32 = arith.constant 0 : i32
    %c0_i32_0 = arith.constant 0 : i32
    %c0_i32_1 = arith.constant 0 : i32
    return %c0_i32, %c0_i32_0 : i32, i32
  }
  func.func @transform_2(%arg0: i32) -> (i32, i32) {
    %c0_i32 = arith.constant 0 : i32
    %c0_i32_0 = arith.constant 0 : i32
    %c0_i32_1 = arith.constant 0 : i32
    return %c0_i32, %c0_i32_0 : i32, i32
  }
  func.func @transform_3(%arg0: i32) -> (i32, i32) {
    %c0_i32 = arith.constant 0 : i32
    %c0_i32_0 = arith.constant 0 : i32
    return %arg0, %c0_i32 : i32, i32
  }
}

module attributes {stable_mosaic.version = 11 : i64} {
  func.func @_mm_bias_act_kernel(%arg0: i32, %arg1: memref<128x144xbf16, #tpu.memory_space<vmem>>, %arg2: memref<144x32xbf16, #tpu.memory_space<vmem>>, %arg3: memref<1x32xf32, #tpu.memory_space<vmem>>, %arg4: memref<128x32xbf16, #tpu.memory_space<vmem>>) attributes {dimension_semantics = [#tpu.dimension_semantics<parallel>], iteration_bounds = array<i64: 1>, scalar_prefetch = 0 : i64, scratch_operands = 0 : i64, tpu.core_type = #tpu.core_type<tc>, window_params = [{transform_indices = @transform_0, window_bounds = array<i64: 128, 144>}, {pipeline_mode = #tpu.pipeline_mode<synchronous>, transform_indices = @transform_1, window_bounds = array<i64: 144, 32>}, {pipeline_mode = #tpu.pipeline_mode<synchronous>, transform_indices = @transform_2, window_bounds = array<i64: 1, 32>}, {transform_indices = @transform_3, window_bounds = array<i64: 128, 32>}]} {
    %c0 = arith.constant 0 : index
    %c0_0 = arith.constant 0 : index
    %0 = vector.load %arg1[%c0, %c0_0] : memref<128x144xbf16, #tpu.memory_space<vmem>>, vector<128x144xbf16>
    %c0_1 = arith.constant 0 : index
    %c0_2 = arith.constant 0 : index
    %1 = vector.load %arg2[%c0_1, %c0_2] : memref<144x32xbf16, #tpu.memory_space<vmem>>, vector<144x32xbf16>
    %cst = arith.constant dense<0.000000e+00> : vector<128x32xf32>
    %2 = tpu.matmul %0, %1, %cst {dimension_numbers = #tpu.dot_dimension_numbers<[1], [0], [0], [1], [0, 0, 1, 1], [], []>} : vector<128x144xbf16>, vector<144x32xbf16>, vector<128x32xf32> -> vector<128x32xf32>
    %c0_3 = arith.constant 0 : index
    %c0_4 = arith.constant 0 : index
    %3 = vector.load %arg3[%c0_3, %c0_4] : memref<1x32xf32, #tpu.memory_space<vmem>>, vector<1x32xf32>
    %4 = vector.broadcast %3 : vector<1x32xf32> to vector<128x32xf32>
    %5 = arith.addf %2, %4 : vector<128x32xf32>
    %cst_5 = arith.constant 3.000000e+00 : f32
    %6 = vector.broadcast %cst_5 : f32 to vector<128x32xf32>
    %7 = arith.addf %5, %6 : vector<128x32xf32>
    %cst_6 = arith.constant 0.000000e+00 : f32
    %cst_7 = arith.constant 6.000000e+00 : f32
    %8 = vector.broadcast %cst_6 : f32 to vector<128x32xf32>
    %9 = arith.maximumf %8, %7 : vector<128x32xf32>
    %10 = vector.broadcast %cst_7 : f32 to vector<128x32xf32>
    %11 = arith.minimumf %10, %9 : vector<128x32xf32>
    %12 = arith.mulf %5, %11 : vector<128x32xf32>
    %cst_8 = arith.constant 0.166666672 : f32
    %13 = vector.broadcast %cst_8 : f32 to vector<128x32xf32>
    %14 = arith.mulf %12, %13 : vector<128x32xf32>
    %15 = arith.truncf %14 : vector<128x32xf32> to vector<128x32xbf16>
    %c0_9 = arith.constant 0 : index
    %c0_10 = arith.constant 0 : index
    %16 = vector.load %arg4[%c0_9, %c0_10] : memref<128x32xbf16, #tpu.memory_space<vmem>>, vector<128x32xbf16>
    tpu.vector_store %arg4[%c0_9, %c0_10], %15 {strides = array<i32>} : memref<128x32xbf16, #tpu.memory_space<vmem>>, vector<128x32xbf16>,
    return
  }
  func.func @transform_0(%arg0: i32) -> (i32, i32) {
    %c0_i32 = arith.constant 0 : i32
    %c0_i32_0 = arith.constant 0 : i32
    return %arg0, %c0_i32 : i32, i32
  }
  func.func @transform_1(%arg0: i32) -> (i32, i32) {
    %c0_i32 = arith.constant 0 : i32
    %c0_i32_0 = arith.constant 0 : i32
    %c0_i32_1 = arith.constant 0 : i32
    return %c0_i32, %c0_i32_0 : i32, i32
  }
  func.func @transform_2(%arg0: i32) -> (i32, i32) {
    %c0_i32 = arith.constant 0 : i32
    %c0_i32_0 = arith.constant 0 : i32
    %c0_i32_1 = arith.constant 0 : i32
    return %c0_i32, %c0_i32_0 : i32, i32
  }
  func.func @transform_3(%arg0: i32) -> (i32, i32) {
    %c0_i32 = arith.constant 0 : i32
    %c0_i32_0 = arith.constant 0 : i32
    return %arg0, %c0_i32 : i32, i32
  }
}

module attributes {stable_mosaic.version = 11 : i64} {
  func.func @_mm_bias_act_kernel(%arg0: i32, %arg1: memref<32x288xbf16, #tpu.memory_space<vmem>>, %arg2: memref<288x64xbf16, #tpu.memory_space<vmem>>, %arg3: memref<1x64xf32, #tpu.memory_space<vmem>>, %arg4: memref<32x64xbf16, #tpu.memory_space<vmem>>) attributes {dimension_semantics = [#tpu.dimension_semantics<parallel>], iteration_bounds = array<i64: 1>, scalar_prefetch = 0 : i64, scratch_operands = 0 : i64, tpu.core_type = #tpu.core_type<tc>, window_params = [{transform_indices = @transform_0, window_bounds = array<i64: 32, 288>}, {pipeline_mode = #tpu.pipeline_mode<synchronous>, transform_indices = @transform_1, window_bounds = array<i64: 288, 64>}, {pipeline_mode = #tpu.pipeline_mode<synchronous>, transform_indices = @transform_2, window_bounds = array<i64: 1, 64>}, {transform_indices = @transform_3, window_bounds = array<i64: 32, 64>}]} {
    %c0 = arith.constant 0 : index
    %c0_0 = arith.constant 0 : index
    %0 = vector.load %arg1[%c0, %c0_0] : memref<32x288xbf16, #tpu.memory_space<vmem>>, vector<32x288xbf16>
    %c0_1 = arith.constant 0 : index
    %c0_2 = arith.constant 0 : index
    %1 = vector.load %arg2[%c0_1, %c0_2] : memref<288x64xbf16, #tpu.memory_space<vmem>>, vector<288x64xbf16>
    %cst = arith.constant dense<0.000000e+00> : vector<32x64xf32>
    %2 = tpu.matmul %0, %1, %cst {dimension_numbers = #tpu.dot_dimension_numbers<[1], [0], [0], [1], [0, 0, 1, 1], [], []>} : vector<32x288xbf16>, vector<288x64xbf16>, vector<32x64xf32> -> vector<32x64xf32>
    %c0_3 = arith.constant 0 : index
    %c0_4 = arith.constant 0 : index
    %3 = vector.load %arg3[%c0_3, %c0_4] : memref<1x64xf32, #tpu.memory_space<vmem>>, vector<1x64xf32>
    %4 = vector.broadcast %3 : vector<1x64xf32> to vector<32x64xf32>
    %5 = arith.addf %2, %4 : vector<32x64xf32>
    %cst_5 = arith.constant 3.000000e+00 : f32
    %6 = vector.broadcast %cst_5 : f32 to vector<32x64xf32>
    %7 = arith.addf %5, %6 : vector<32x64xf32>
    %cst_6 = arith.constant 0.000000e+00 : f32
    %cst_7 = arith.constant 6.000000e+00 : f32
    %8 = vector.broadcast %cst_6 : f32 to vector<32x64xf32>
    %9 = arith.maximumf %8, %7 : vector<32x64xf32>
    %10 = vector.broadcast %cst_7 : f32 to vector<32x64xf32>
    %11 = arith.minimumf %10, %9 : vector<32x64xf32>
    %12 = arith.mulf %5, %11 : vector<32x64xf32>
    %cst_8 = arith.constant 0.166666672 : f32
    %13 = vector.broadcast %cst_8 : f32 to vector<32x64xf32>
    %14 = arith.mulf %12, %13 : vector<32x64xf32>
    %15 = arith.truncf %14 : vector<32x64xf32> to vector<32x64xbf16>
    %c0_9 = arith.constant 0 : index
    %c0_10 = arith.constant 0 : index
    %16 = vector.load %arg4[%c0_9, %c0_10] : memref<32x64xbf16, #tpu.memory_space<vmem>>, vector<32x64xbf16>
    tpu.vector_store %arg4[%c0_9, %c0_10], %15 {strides = array<i32>} : memref<32x64xbf16, #tpu.memory_space<vmem>>, vector<32x64xbf16>,
    return
  }
  func.func @transform_0(%arg0: i32) -> (i32, i32) {
    %c0_i32 = arith.constant 0 : i32
    %c0_i32_0 = arith.constant 0 : i32
    return %arg0, %c0_i32 : i32, i32
  }
  func.func @transform_1(%arg0: i32) -> (i32, i32) {
    %c0_i32 = arith.constant 0 : i32
    %c0_i32_0 = arith.constant 0 : i32
    %c0_i32_1 = arith.constant 0 : i32
    return %c0_i32, %c0_i32_0 : i32, i32
  }
  func.func @transform_2(%arg0: i32) -> (i32, i32) {
    %c0_i32 = arith.constant 0 : i32
    %c0_i32_0 = arith.constant 0 : i32
    %c0_i32_1 = arith.constant 0 : i32
    return %c0_i32, %c0_i32_0 : i32, i32
  }
  func.func @transform_3(%arg0: i32) -> (i32, i32) {
    %c0_i32 = arith.constant 0 : i32
    %c0_i32_0 = arith.constant 0 : i32
    return %arg0, %c0_i32 : i32, i32
  }
}

module attributes {stable_mosaic.version = 11 : i64} {
  func.func @_mm_bias_act_kernel(%arg0: i32, %arg1: memref<32x576xbf16, #tpu.memory_space<vmem>>, %arg2: memref<576x32xbf16, #tpu.memory_space<vmem>>, %arg3: memref<1x32xf32, #tpu.memory_space<vmem>>, %arg4: memref<32x32xbf16, #tpu.memory_space<vmem>>) attributes {dimension_semantics = [#tpu.dimension_semantics<parallel>], iteration_bounds = array<i64: 1>, scalar_prefetch = 0 : i64, scratch_operands = 0 : i64, tpu.core_type = #tpu.core_type<tc>, window_params = [{transform_indices = @transform_0, window_bounds = array<i64: 32, 576>}, {pipeline_mode = #tpu.pipeline_mode<synchronous>, transform_indices = @transform_1, window_bounds = array<i64: 576, 32>}, {pipeline_mode = #tpu.pipeline_mode<synchronous>, transform_indices = @transform_2, window_bounds = array<i64: 1, 32>}, {transform_indices = @transform_3, window_bounds = array<i64: 32, 32>}]} {
    %c0 = arith.constant 0 : index
    %c0_0 = arith.constant 0 : index
    %0 = vector.load %arg1[%c0, %c0_0] : memref<32x576xbf16, #tpu.memory_space<vmem>>, vector<32x576xbf16>
    %c0_1 = arith.constant 0 : index
    %c0_2 = arith.constant 0 : index
    %1 = vector.load %arg2[%c0_1, %c0_2] : memref<576x32xbf16, #tpu.memory_space<vmem>>, vector<576x32xbf16>
    %cst = arith.constant dense<0.000000e+00> : vector<32x32xf32>
    %2 = tpu.matmul %0, %1, %cst {dimension_numbers = #tpu.dot_dimension_numbers<[1], [0], [0], [1], [0, 0, 1, 1], [], []>} : vector<32x576xbf16>, vector<576x32xbf16>, vector<32x32xf32> -> vector<32x32xf32>
    %c0_3 = arith.constant 0 : index
    %c0_4 = arith.constant 0 : index
    %3 = vector.load %arg3[%c0_3, %c0_4] : memref<1x32xf32, #tpu.memory_space<vmem>>, vector<1x32xf32>
    %4 = vector.broadcast %3 : vector<1x32xf32> to vector<32x32xf32>
    %5 = arith.addf %2, %4 : vector<32x32xf32>
    %cst_5 = arith.constant 0.000000e+00 : f32
    %6 = vector.broadcast %cst_5 : f32 to vector<32x32xf32>
    %7 = arith.maximumf %5, %6 : vector<32x32xf32>
    %8 = arith.truncf %7 : vector<32x32xf32> to vector<32x32xbf16>
    %c0_6 = arith.constant 0 : index
    %c0_7 = arith.constant 0 : index
    %9 = vector.load %arg4[%c0_6, %c0_7] : memref<32x32xbf16, #tpu.memory_space<vmem>>, vector<32x32xbf16>
    tpu.vector_store %arg4[%c0_6, %c0_7], %8 {strides = array<i32>} : memref<32x32xbf16, #tpu.memory_space<vmem>>, vector<32x32xbf16>,
    return
  }
  func.func @transform_0(%arg0: i32) -> (i32, i32) {
    %c0_i32 = arith.constant 0 : i32
    %c0_i32_0 = arith.constant 0 : i32
    return %arg0, %c0_i32 : i32, i32
  }
  func.func @transform_1(%arg0: i32) -> (i32, i32) {
    %c0_i32 = arith.constant 0 : i32
    %c0_i32_0 = arith.constant 0 : i32
    %c0_i32_1 = arith.constant 0 : i32
    return %c0_i32, %c0_i32_0 : i32, i32
  }
  func.func @transform_2(%arg0: i32) -> (i32, i32) {
    %c0_i32 = arith.constant 0 : i32
    %c0_i32_0 = arith.constant 0 : i32
    %c0_i32_1 = arith.constant 0 : i32
    return %c0_i32, %c0_i32_0 : i32, i32
  }
  func.func @transform_3(%arg0: i32) -> (i32, i32) {
    %c0_i32 = arith.constant 0 : i32
    %c0_i32_0 = arith.constant 0 : i32
    return %arg0, %c0_i32 : i32, i32
  }
}

module attributes {stable_mosaic.version = 11 : i64} {
  func.func @_gap_kernel(%arg0: i32, %arg1: i32, %arg2: memref<1x16x64xbf16, #tpu.memory_space<vmem>>, %arg3: memref<1x1x64xf32, #tpu.memory_space<vmem>>) attributes {dimension_semantics = [#tpu.dimension_semantics<parallel>, #tpu.dimension_semantics<arbitrary>], iteration_bounds = array<i64: 2, 1>, scalar_prefetch = 0 : i64, scratch_operands = 0 : i64, tpu.core_type = #tpu.core_type<tc>, window_params = [{transform_indices = @transform_0, window_bounds = array<i64: 1, 16, 64>}, {transform_indices = @transform_1, window_bounds = array<i64: 1, 1, 64>}]} {
    %c0_i32 = arith.constant 0 : i32
    %0 = arith.cmpi eq, %arg1, %c0_i32 : i32
    %1 = arith.extui %0 : i1 to i32
    %c0_i32_0 = arith.constant 0 : i32
    %2 = arith.cmpi ne, %1, %c0_i32_0 : i32
    scf.if %2 {
      %cst_10 = arith.constant 0.000000e+00 : f32
      %12 = vector.broadcast %cst_10 : f32 to vector<1x1x64xf32>
      %c0_11 = arith.constant 0 : index
      %c0_12 = arith.constant 0 : index
      %c0_13 = arith.constant 0 : index
      %13 = vector.load %arg3[%c0_11, %c0_12, %c0_13] : memref<1x1x64xf32, #tpu.memory_space<vmem>>, vector<1x1x64xf32>
      tpu.vector_store %arg3[%c0_11, %c0_12, %c0_13], %12 {strides = array<i32>} : memref<1x1x64xf32, #tpu.memory_space<vmem>>, vector<1x1x64xf32>,
    } else {
    }
    %c0 = arith.constant 0 : index
    %c0_1 = arith.constant 0 : index
    %c0_2 = arith.constant 0 : index
    %3 = vector.load %arg3[%c0, %c0_1, %c0_2] : memref<1x1x64xf32, #tpu.memory_space<vmem>>, vector<1x1x64xf32>
    %c0_3 = arith.constant 0 : index
    %c0_4 = arith.constant 0 : index
    %c0_5 = arith.constant 0 : index
    %4 = vector.load %arg2[%c0_3, %c0_4, %c0_5] : memref<1x16x64xbf16, #tpu.memory_space<vmem>>, vector<1x16x64xbf16>
    %5 = arith.extf %4 : vector<1x16x64xbf16> to vector<1x16x64xf32>
    %cst = arith.constant dense<0.000000e+00> : vector<1x64xf32>
    %6 = vector.multi_reduction <add>, %5, %cst [1] : vector<1x16x64xf32> to vector<1x64xf32>
    %7 = vector.shape_cast %6 : vector<1x64xf32> to vector<1x1x64xf32>
    %cst_6 = arith.constant 6.250000e-02 : f32
    %8 = vector.broadcast %cst_6 : f32 to vector<1x1x64xf32>
    %9 = arith.mulf %7, %8 : vector<1x1x64xf32>
    %10 = arith.addf %3, %9 : vector<1x1x64xf32>
    %c0_7 = arith.constant 0 : index
    %c0_8 = arith.constant 0 : index
    %c0_9 = arith.constant 0 : index
    %11 = vector.load %arg3[%c0_7, %c0_8, %c0_9] : memref<1x1x64xf32, #tpu.memory_space<vmem>>, vector<1x1x64xf32>
    tpu.vector_store %arg3[%c0_7, %c0_8, %c0_9], %10 {strides = array<i32>} : memref<1x1x64xf32, #tpu.memory_space<vmem>>, vector<1x1x64xf32>,
    return
  }
  func.func @transform_0(%arg0: i32, %arg1: i32) -> (i32, i32, i32) {
    %c0_i32 = arith.constant 0 : i32
    %c0_i32_0 = arith.constant 0 : i32
    return %arg0, %arg1, %c0_i32 : i32, i32, i32
  }
  func.func @transform_1(%arg0: i32, %arg1: i32) -> (i32, i32, i32) {
    %c0_i32 = arith.constant 0 : i32
    %c0_i32_0 = arith.constant 0 : i32
    %c0_i32_1 = arith.constant 0 : i32
    return %arg0, %c0_i32, %c0_i32_0 : i32, i32, i32
  }
}

module attributes {stable_mosaic.version = 11 : i64} {
  func.func @_mm_bias_act_kernel(%arg0: i32, %arg1: memref<2x64xbf16, #tpu.memory_space<vmem>>, %arg2: memref<64x32xbf16, #tpu.memory_space<vmem>>, %arg3: memref<1x32xf32, #tpu.memory_space<vmem>>, %arg4: memref<2x32xf32, #tpu.memory_space<vmem>>) attributes {dimension_semantics = [#tpu.dimension_semantics<parallel>], iteration_bounds = array<i64: 1>, scalar_prefetch = 0 : i64, scratch_operands = 0 : i64, tpu.core_type = #tpu.core_type<tc>, window_params = [{transform_indices = @transform_0, window_bounds = array<i64: 2, 64>}, {pipeline_mode = #tpu.pipeline_mode<synchronous>, transform_indices = @transform_1, window_bounds = array<i64: 64, 32>}, {pipeline_mode = #tpu.pipeline_mode<synchronous>, transform_indices = @transform_2, window_bounds = array<i64: 1, 32>}, {transform_indices = @transform_3, window_bounds = array<i64: 2, 32>}]} {
    %c0 = arith.constant 0 : index
    %c0_0 = arith.constant 0 : index
    %0 = vector.load %arg1[%c0, %c0_0] : memref<2x64xbf16, #tpu.memory_space<vmem>>, vector<2x64xbf16>
    %c0_1 = arith.constant 0 : index
    %c0_2 = arith.constant 0 : index
    %1 = vector.load %arg2[%c0_1, %c0_2] : memref<64x32xbf16, #tpu.memory_space<vmem>>, vector<64x32xbf16>
    %cst = arith.constant dense<0.000000e+00> : vector<2x32xf32>
    %2 = tpu.matmul %0, %1, %cst {dimension_numbers = #tpu.dot_dimension_numbers<[1], [0], [0], [1], [0, 0, 1, 1], [], []>} : vector<2x64xbf16>, vector<64x32xbf16>, vector<2x32xf32> -> vector<2x32xf32>
    %c0_3 = arith.constant 0 : index
    %c0_4 = arith.constant 0 : index
    %3 = vector.load %arg3[%c0_3, %c0_4] : memref<1x32xf32, #tpu.memory_space<vmem>>, vector<1x32xf32>
    %4 = vector.broadcast %3 : vector<1x32xf32> to vector<2x32xf32>
    %5 = arith.addf %2, %4 : vector<2x32xf32>
    %cst_5 = arith.constant 0.000000e+00 : f32
    %6 = vector.broadcast %cst_5 : f32 to vector<2x32xf32>
    %7 = arith.maximumf %5, %6 : vector<2x32xf32>
    %c0_6 = arith.constant 0 : index
    %c0_7 = arith.constant 0 : index
    %8 = vector.load %arg4[%c0_6, %c0_7] : memref<2x32xf32, #tpu.memory_space<vmem>>, vector<2x32xf32>
    tpu.vector_store %arg4[%c0_6, %c0_7], %7 {strides = array<i32>} : memref<2x32xf32, #tpu.memory_space<vmem>>, vector<2x32xf32>,
    return
  }
  func.func @transform_0(%arg0: i32) -> (i32, i32) {
    %c0_i32 = arith.constant 0 : i32
    %c0_i32_0 = arith.constant 0 : i32
    return %arg0, %c0_i32 : i32, i32
  }
  func.func @transform_1(%arg0: i32) -> (i32, i32) {
    %c0_i32 = arith.constant 0 : i32
    %c0_i32_0 = arith.constant 0 : i32
    %c0_i32_1 = arith.constant 0 : i32
    return %c0_i32, %c0_i32_0 : i32, i32
  }
  func.func @transform_2(%arg0: i32) -> (i32, i32) {
    %c0_i32 = arith.constant 0 : i32
    %c0_i32_0 = arith.constant 0 : i32
    %c0_i32_1 = arith.constant 0 : i32
    return %c0_i32, %c0_i32_0 : i32, i32
  }
  func.func @transform_3(%arg0: i32) -> (i32, i32) {
    %c0_i32 = arith.constant 0 : i32
    %c0_i32_0 = arith.constant 0 : i32
    return %arg0, %c0_i32 : i32, i32
  }
}

module attributes {stable_mosaic.version = 11 : i64} {
  func.func @_mm_act_kernel(%arg0: i32, %arg1: memref<2x32xbf16, #tpu.memory_space<vmem>>, %arg2: memref<32x32xbf16, #tpu.memory_space<vmem>>, %arg3: memref<2x32xf32, #tpu.memory_space<vmem>>) attributes {dimension_semantics = [#tpu.dimension_semantics<parallel>], iteration_bounds = array<i64: 1>, scalar_prefetch = 0 : i64, scratch_operands = 0 : i64, tpu.core_type = #tpu.core_type<tc>, window_params = [{transform_indices = @transform_0, window_bounds = array<i64: 2, 32>}, {pipeline_mode = #tpu.pipeline_mode<synchronous>, transform_indices = @transform_1, window_bounds = array<i64: 32, 32>}, {transform_indices = @transform_2, window_bounds = array<i64: 2, 32>}]} {
    %c0 = arith.constant 0 : index
    %c0_0 = arith.constant 0 : index
    %0 = vector.load %arg1[%c0, %c0_0] : memref<2x32xbf16, #tpu.memory_space<vmem>>, vector<2x32xbf16>
    %c0_1 = arith.constant 0 : index
    %c0_2 = arith.constant 0 : index
    %1 = vector.load %arg2[%c0_1, %c0_2] : memref<32x32xbf16, #tpu.memory_space<vmem>>, vector<32x32xbf16>
    %cst = arith.constant dense<0.000000e+00> : vector<2x32xf32>
    %2 = tpu.matmul %0, %1, %cst {dimension_numbers = #tpu.dot_dimension_numbers<[1], [0], [0], [1], [0, 0, 1, 1], [], []>} : vector<2x32xbf16>, vector<32x32xbf16>, vector<2x32xf32> -> vector<2x32xf32>
    %c0_3 = arith.constant 0 : index
    %c0_4 = arith.constant 0 : index
    %3 = vector.load %arg3[%c0_3, %c0_4] : memref<2x32xf32, #tpu.memory_space<vmem>>, vector<2x32xf32>
    tpu.vector_store %arg3[%c0_3, %c0_4], %2 {strides = array<i32>} : memref<2x32xf32, #tpu.memory_space<vmem>>, vector<2x32xf32>,
    return
  }
  func.func @transform_0(%arg0: i32) -> (i32, i32) {
    %c0_i32 = arith.constant 0 : i32
    %c0_i32_0 = arith.constant 0 : i32
    return %arg0, %c0_i32 : i32, i32
  }
  func.func @transform_1(%arg0: i32) -> (i32, i32) {
    %c0_i32 = arith.constant 0 : i32
    %c0_i32_0 = arith.constant 0 : i32
    %c0_i32_1 = arith.constant 0 : i32
    return %c0_i32, %c0_i32_0 : i32, i32
  }
  func.func @transform_2(%arg0: i32) -> (i32, i32) {
    %c0_i32 = arith.constant 0 : i32
    %c0_i32_0 = arith.constant 0 : i32
    return %arg0, %c0_i32 : i32, i32
  }
}

module attributes {stable_mosaic.version = 11 : i64} {
  func.func @_aspp_proj_kernel(%arg0: i32, %arg1: i32, %arg2: memref<1x16x32xbf16, #tpu.memory_space<vmem>>, %arg3: memref<1x16x32xbf16, #tpu.memory_space<vmem>>, %arg4: memref<1x16x32xbf16, #tpu.memory_space<vmem>>, %arg5: memref<1x16x32xbf16, #tpu.memory_space<vmem>>, %arg6: memref<32x32xbf16, #tpu.memory_space<vmem>>, %arg7: memref<32x32xbf16, #tpu.memory_space<vmem>>, %arg8: memref<32x32xbf16, #tpu.memory_space<vmem>>, %arg9: memref<32x32xbf16, #tpu.memory_space<vmem>>, %arg10: memref<1x32xf32, #tpu.memory_space<vmem>>, %arg11: memref<1x1x32xf32, #tpu.memory_space<vmem>>, %arg12: memref<1x16x32xbf16, #tpu.memory_space<vmem>>) attributes {dimension_semantics = [#tpu.dimension_semantics<parallel>, #tpu.dimension_semantics<parallel>], iteration_bounds = array<i64: 2, 1>, scalar_prefetch = 0 : i64, scratch_operands = 0 : i64, tpu.core_type = #tpu.core_type<tc>, window_params = [{transform_indices = @transform_0, window_bounds = array<i64: 1, 16, 32>}, {transform_indices = @transform_1, window_bounds = array<i64: 1, 16, 32>}, {transform_indices = @transform_2, window_bounds = array<i64: 1, 16, 32>}, {transform_indices = @transform_3, window_bounds = array<i64: 1, 16, 32>}, {pipeline_mode = #tpu.pipeline_mode<synchronous>, transform_indices = @transform_4, window_bounds = array<i64: 32, 32>}, {pipeline_mode = #tpu.pipeline_mode<synchronous>, transform_indices = @transform_5, window_bounds = array<i64: 32, 32>}, {pipeline_mode = #tpu.pipeline_mode<synchronous>, transform_indices = @transform_6, window_bounds = array<i64: 32, 32>}, {pipeline_mode = #tpu.pipeline_mode<synchronous>, transform_indices = @transform_7, window_bounds = array<i64: 32, 32>}, {pipeline_mode = #tpu.pipeline_mode<synchronous>, transform_indices = @transform_8, window_bounds = array<i64: 1, 32>}, {transform_indices = @transform_9, window_bounds = array<i64: 1, 1, 32>}, {transform_indices = @transform_10, window_bounds = array<i64: 1, 16, 32>}]} {
    %c0 = arith.constant 0 : index
    %c0_0 = arith.constant 0 : index
    %c0_1 = arith.constant 0 : index
    %0 = vector.load %arg2[%c0, %c0_0, %c0_1] : memref<1x16x32xbf16, #tpu.memory_space<vmem>>, vector<1x16x32xbf16>
    %1 = vector.shape_cast %0 : vector<1x16x32xbf16> to vector<16x32xbf16>
    %c0_2 = arith.constant 0 : index
    %c0_3 = arith.constant 0 : index
    %2 = vector.load %arg6[%c0_2, %c0_3] : memref<32x32xbf16, #tpu.memory_space<vmem>>, vector<32x32xbf16>
    %cst = arith.constant dense<0.000000e+00> : vector<16x32xf32>
    %3 = tpu.matmul %1, %2, %cst {dimension_numbers = #tpu.dot_dimension_numbers<[1], [0], [0], [1], [0, 0, 1, 1], [], []>} : vector<16x32xbf16>, vector<32x32xbf16>, vector<16x32xf32> -> vector<16x32xf32>
    %c0_4 = arith.constant 0 : index
    %c0_5 = arith.constant 0 : index
    %c0_6 = arith.constant 0 : index
    %4 = vector.load %arg3[%c0_4, %c0_5, %c0_6] : memref<1x16x32xbf16, #tpu.memory_space<vmem>>, vector<1x16x32xbf16>
    %5 = vector.shape_cast %4 : vector<1x16x32xbf16> to vector<16x32xbf16>
    %c0_7 = arith.constant 0 : index
    %c0_8 = arith.constant 0 : index
    %6 = vector.load %arg7[%c0_7, %c0_8] : memref<32x32xbf16, #tpu.memory_space<vmem>>, vector<32x32xbf16>
    %cst_9 = arith.constant dense<0.000000e+00> : vector<16x32xf32>
    %7 = tpu.matmul %5, %6, %cst_9 {dimension_numbers = #tpu.dot_dimension_numbers<[1], [0], [0], [1], [0, 0, 1, 1], [], []>} : vector<16x32xbf16>, vector<32x32xbf16>, vector<16x32xf32> -> vector<16x32xf32>
    %8 = arith.addf %3, %7 : vector<16x32xf32>
    %c0_10 = arith.constant 0 : index
    %c0_11 = arith.constant 0 : index
    %c0_12 = arith.constant 0 : index
    %9 = vector.load %arg4[%c0_10, %c0_11, %c0_12] : memref<1x16x32xbf16, #tpu.memory_space<vmem>>, vector<1x16x32xbf16>
    %10 = vector.shape_cast %9 : vector<1x16x32xbf16> to vector<16x32xbf16>
    %c0_13 = arith.constant 0 : index
    %c0_14 = arith.constant 0 : index
    %11 = vector.load %arg8[%c0_13, %c0_14] : memref<32x32xbf16, #tpu.memory_space<vmem>>, vector<32x32xbf16>
    %cst_15 = arith.constant dense<0.000000e+00> : vector<16x32xf32>
    %12 = tpu.matmul %10, %11, %cst_15 {dimension_numbers = #tpu.dot_dimension_numbers<[1], [0], [0], [1], [0, 0, 1, 1], [], []>} : vector<16x32xbf16>, vector<32x32xbf16>, vector<16x32xf32> -> vector<16x32xf32>
    %13 = arith.addf %8, %12 : vector<16x32xf32>
    %c0_16 = arith.constant 0 : index
    %c0_17 = arith.constant 0 : index
    %c0_18 = arith.constant 0 : index
    %14 = vector.load %arg5[%c0_16, %c0_17, %c0_18] : memref<1x16x32xbf16, #tpu.memory_space<vmem>>, vector<1x16x32xbf16>
    %15 = vector.shape_cast %14 : vector<1x16x32xbf16> to vector<16x32xbf16>
    %c0_19 = arith.constant 0 : index
    %c0_20 = arith.constant 0 : index
    %16 = vector.load %arg9[%c0_19, %c0_20] : memref<32x32xbf16, #tpu.memory_space<vmem>>, vector<32x32xbf16>
    %cst_21 = arith.constant dense<0.000000e+00> : vector<16x32xf32>
    %17 = tpu.matmul %15, %16, %cst_21 {dimension_numbers = #tpu.dot_dimension_numbers<[1], [0], [0], [1], [0, 0, 1, 1], [], []>} : vector<16x32xbf16>, vector<32x32xbf16>, vector<16x32xf32> -> vector<16x32xf32>
    %18 = arith.addf %13, %17 : vector<16x32xf32>
    %c0_22 = arith.constant 0 : index
    %c0_23 = arith.constant 0 : index
    %19 = vector.load %arg10[%c0_22, %c0_23] : memref<1x32xf32, #tpu.memory_space<vmem>>, vector<1x32xf32>
    %20 = vector.broadcast %19 : vector<1x32xf32> to vector<16x32xf32>
    %21 = arith.addf %18, %20 : vector<16x32xf32>
    %c0_24 = arith.constant 0 : index
    %c0_25 = arith.constant 0 : index
    %c0_26 = arith.constant 0 : index
    %22 = vector.load %arg11[%c0_24, %c0_25, %c0_26] : memref<1x1x32xf32, #tpu.memory_space<vmem>>, vector<1x1x32xf32>
    %23 = vector.shape_cast %22 : vector<1x1x32xf32> to vector<1x32xf32>
    %24 = vector.broadcast %23 : vector<1x32xf32> to vector<16x32xf32>
    %25 = arith.addf %21, %24 : vector<16x32xf32>
    %cst_27 = arith.constant 0.000000e+00 : f32
    %26 = vector.broadcast %cst_27 : f32 to vector<16x32xf32>
    %27 = arith.maximumf %25, %26 : vector<16x32xf32>
    %28 = arith.truncf %27 : vector<16x32xf32> to vector<16x32xbf16>
    %c0_28 = arith.constant 0 : index
    %c0_29 = arith.constant 0 : index
    %c0_30 = arith.constant 0 : index
    %29 = vector.load %arg12[%c0_28, %c0_29, %c0_30] : memref<1x16x32xbf16, #tpu.memory_space<vmem>>, vector<1x16x32xbf16>
    %30 = vector.shape_cast %29 : vector<1x16x32xbf16> to vector<16x32xbf16>
    %31 = vector.shape_cast %28 : vector<16x32xbf16> to vector<1x16x32xbf16>
    tpu.vector_store %arg12[%c0_28, %c0_29, %c0_30], %31 {strides = array<i32>} : memref<1x16x32xbf16, #tpu.memory_space<vmem>>, vector<1x16x32xbf16>,
    return
  }
  func.func @transform_0(%arg0: i32, %arg1: i32) -> (i32, i32, i32) {
    %c0_i32 = arith.constant 0 : i32
    %c0_i32_0 = arith.constant 0 : i32
    return %arg0, %arg1, %c0_i32 : i32, i32, i32
  }
  func.func @transform_1(%arg0: i32, %arg1: i32) -> (i32, i32, i32) {
    %c0_i32 = arith.constant 0 : i32
    %c0_i32_0 = arith.constant 0 : i32
    return %arg0, %arg1, %c0_i32 : i32, i32, i32
  }
  func.func @transform_2(%arg0: i32, %arg1: i32) -> (i32, i32, i32) {
    %c0_i32 = arith.constant 0 : i32
    %c0_i32_0 = arith.constant 0 : i32
    return %arg0, %arg1, %c0_i32 : i32, i32, i32
  }
  func.func @transform_3(%arg0: i32, %arg1: i32) -> (i32, i32, i32) {
    %c0_i32 = arith.constant 0 : i32
    %c0_i32_0 = arith.constant 0 : i32
    return %arg0, %arg1, %c0_i32 : i32, i32, i32
  }
  func.func @transform_4(%arg0: i32, %arg1: i32) -> (i32, i32) {
    %c0_i32 = arith.constant 0 : i32
    %c0_i32_0 = arith.constant 0 : i32
    %c0_i32_1 = arith.constant 0 : i32
    return %c0_i32, %c0_i32_0 : i32, i32
  }
  func.func @transform_5(%arg0: i32, %arg1: i32) -> (i32, i32) {
    %c0_i32 = arith.constant 0 : i32
    %c0_i32_0 = arith.constant 0 : i32
    %c0_i32_1 = arith.constant 0 : i32
    return %c0_i32, %c0_i32_0 : i32, i32
  }
  func.func @transform_6(%arg0: i32, %arg1: i32) -> (i32, i32) {
    %c0_i32 = arith.constant 0 : i32
    %c0_i32_0 = arith.constant 0 : i32
    %c0_i32_1 = arith.constant 0 : i32
    return %c0_i32, %c0_i32_0 : i32, i32
  }
  func.func @transform_7(%arg0: i32, %arg1: i32) -> (i32, i32) {
    %c0_i32 = arith.constant 0 : i32
    %c0_i32_0 = arith.constant 0 : i32
    %c0_i32_1 = arith.constant 0 : i32
    return %c0_i32, %c0_i32_0 : i32, i32
  }
  func.func @transform_8(%arg0: i32, %arg1: i32) -> (i32, i32) {
    %c0_i32 = arith.constant 0 : i32
    %c0_i32_0 = arith.constant 0 : i32
    %c0_i32_1 = arith.constant 0 : i32
    return %c0_i32, %c0_i32_0 : i32, i32
  }
  func.func @transform_9(%arg0: i32, %arg1: i32) -> (i32, i32, i32) {
    %c0_i32 = arith.constant 0 : i32
    %c0_i32_0 = arith.constant 0 : i32
    %c0_i32_1 = arith.constant 0 : i32
    return %arg0, %c0_i32, %c0_i32_0 : i32, i32, i32
  }
  func.func @transform_10(%arg0: i32, %arg1: i32) -> (i32, i32, i32) {
    %c0_i32 = arith.constant 0 : i32
    %c0_i32_0 = arith.constant 0 : i32
    return %arg0, %arg1, %c0_i32 : i32, i32, i32
  }
}

module attributes {stable_mosaic.version = 11 : i64} {
  func.func @_mm_bias_act_kernel(%arg0: i32, %arg1: memref<32x64xbf16, #tpu.memory_space<vmem>>, %arg2: memref<64x32xbf16, #tpu.memory_space<vmem>>, %arg3: memref<1x32xf32, #tpu.memory_space<vmem>>, %arg4: memref<32x32xbf16, #tpu.memory_space<vmem>>) attributes {dimension_semantics = [#tpu.dimension_semantics<parallel>], iteration_bounds = array<i64: 1>, scalar_prefetch = 0 : i64, scratch_operands = 0 : i64, tpu.core_type = #tpu.core_type<tc>, window_params = [{transform_indices = @transform_0, window_bounds = array<i64: 32, 64>}, {pipeline_mode = #tpu.pipeline_mode<synchronous>, transform_indices = @transform_1, window_bounds = array<i64: 64, 32>}, {pipeline_mode = #tpu.pipeline_mode<synchronous>, transform_indices = @transform_2, window_bounds = array<i64: 1, 32>}, {transform_indices = @transform_3, window_bounds = array<i64: 32, 32>}]} {
    %c0 = arith.constant 0 : index
    %c0_0 = arith.constant 0 : index
    %0 = vector.load %arg1[%c0, %c0_0] : memref<32x64xbf16, #tpu.memory_space<vmem>>, vector<32x64xbf16>
    %c0_1 = arith.constant 0 : index
    %c0_2 = arith.constant 0 : index
    %1 = vector.load %arg2[%c0_1, %c0_2] : memref<64x32xbf16, #tpu.memory_space<vmem>>, vector<64x32xbf16>
    %cst = arith.constant dense<0.000000e+00> : vector<32x32xf32>
    %2 = tpu.matmul %0, %1, %cst {dimension_numbers = #tpu.dot_dimension_numbers<[1], [0], [0], [1], [0, 0, 1, 1], [], []>} : vector<32x64xbf16>, vector<64x32xbf16>, vector<32x32xf32> -> vector<32x32xf32>
    %c0_3 = arith.constant 0 : index
    %c0_4 = arith.constant 0 : index
    %3 = vector.load %arg3[%c0_3, %c0_4] : memref<1x32xf32, #tpu.memory_space<vmem>>, vector<1x32xf32>
    %4 = vector.broadcast %3 : vector<1x32xf32> to vector<32x32xf32>
    %5 = arith.addf %2, %4 : vector<32x32xf32>
    %cst_5 = arith.constant 0.000000e+00 : f32
    %6 = vector.broadcast %cst_5 : f32 to vector<32x32xf32>
    %7 = arith.maximumf %5, %6 : vector<32x32xf32>
    %8 = arith.truncf %7 : vector<32x32xf32> to vector<32x32xbf16>
    %c0_6 = arith.constant 0 : index
    %c0_7 = arith.constant 0 : index
    %9 = vector.load %arg4[%c0_6, %c0_7] : memref<32x32xbf16, #tpu.memory_space<vmem>>, vector<32x32xbf16>
    tpu.vector_store %arg4[%c0_6, %c0_7], %8 {strides = array<i32>} : memref<32x32xbf16, #tpu.memory_space<vmem>>, vector<32x32xbf16>,
    return
  }
  func.func @transform_0(%arg0: i32) -> (i32, i32) {
    %c0_i32 = arith.constant 0 : i32
    %c0_i32_0 = arith.constant 0 : i32
    return %arg0, %c0_i32 : i32, i32
  }
  func.func @transform_1(%arg0: i32) -> (i32, i32) {
    %c0_i32 = arith.constant 0 : i32
    %c0_i32_0 = arith.constant 0 : i32
    %c0_i32_1 = arith.constant 0 : i32
    return %c0_i32, %c0_i32_0 : i32, i32
  }
  func.func @transform_2(%arg0: i32) -> (i32, i32) {
    %c0_i32 = arith.constant 0 : i32
    %c0_i32_0 = arith.constant 0 : i32
    %c0_i32_1 = arith.constant 0 : i32
    return %c0_i32, %c0_i32_0 : i32, i32
  }
  func.func @transform_3(%arg0: i32) -> (i32, i32) {
    %c0_i32 = arith.constant 0 : i32
    %c0_i32_0 = arith.constant 0 : i32
    return %arg0, %c0_i32 : i32, i32
  }
}

module attributes {stable_mosaic.version = 11 : i64} {
  func.func @_mm_bias_act_kernel(%arg0: i32, %arg1: memref<32x288xbf16, #tpu.memory_space<vmem>>, %arg2: memref<288x32xbf16, #tpu.memory_space<vmem>>, %arg3: memref<1x32xf32, #tpu.memory_space<vmem>>, %arg4: memref<32x32xbf16, #tpu.memory_space<vmem>>) attributes {dimension_semantics = [#tpu.dimension_semantics<parallel>], iteration_bounds = array<i64: 1>, scalar_prefetch = 0 : i64, scratch_operands = 0 : i64, tpu.core_type = #tpu.core_type<tc>, window_params = [{transform_indices = @transform_0, window_bounds = array<i64: 32, 288>}, {pipeline_mode = #tpu.pipeline_mode<synchronous>, transform_indices = @transform_1, window_bounds = array<i64: 288, 32>}, {pipeline_mode = #tpu.pipeline_mode<synchronous>, transform_indices = @transform_2, window_bounds = array<i64: 1, 32>}, {transform_indices = @transform_3, window_bounds = array<i64: 32, 32>}]} {
    %c0 = arith.constant 0 : index
    %c0_0 = arith.constant 0 : index
    %0 = vector.load %arg1[%c0, %c0_0] : memref<32x288xbf16, #tpu.memory_space<vmem>>, vector<32x288xbf16>
    %c0_1 = arith.constant 0 : index
    %c0_2 = arith.constant 0 : index
    %1 = vector.load %arg2[%c0_1, %c0_2] : memref<288x32xbf16, #tpu.memory_space<vmem>>, vector<288x32xbf16>
    %cst = arith.constant dense<0.000000e+00> : vector<32x32xf32>
    %2 = tpu.matmul %0, %1, %cst {dimension_numbers = #tpu.dot_dimension_numbers<[1], [0], [0], [1], [0, 0, 1, 1], [], []>} : vector<32x288xbf16>, vector<288x32xbf16>, vector<32x32xf32> -> vector<32x32xf32>
    %c0_3 = arith.constant 0 : index
    %c0_4 = arith.constant 0 : index
    %3 = vector.load %arg3[%c0_3, %c0_4] : memref<1x32xf32, #tpu.memory_space<vmem>>, vector<1x32xf32>
    %4 = vector.broadcast %3 : vector<1x32xf32> to vector<32x32xf32>
    %5 = arith.addf %2, %4 : vector<32x32xf32>
    %cst_5 = arith.constant 0.000000e+00 : f32
    %6 = vector.broadcast %cst_5 : f32 to vector<32x32xf32>
    %7 = arith.maximumf %5, %6 : vector<32x32xf32>
    %8 = arith.truncf %7 : vector<32x32xf32> to vector<32x32xbf16>
    %c0_6 = arith.constant 0 : index
    %c0_7 = arith.constant 0 : index
    %9 = vector.load %arg4[%c0_6, %c0_7] : memref<32x32xbf16, #tpu.memory_space<vmem>>, vector<32x32xbf16>
    tpu.vector_store %arg4[%c0_6, %c0_7], %8 {strides = array<i32>} : memref<32x32xbf16, #tpu.memory_space<vmem>>, vector<32x32xbf16>,
    return
  }
  func.func @transform_0(%arg0: i32) -> (i32, i32) {
    %c0_i32 = arith.constant 0 : i32
    %c0_i32_0 = arith.constant 0 : i32
    return %arg0, %c0_i32 : i32, i32
  }
  func.func @transform_1(%arg0: i32) -> (i32, i32) {
    %c0_i32 = arith.constant 0 : i32
    %c0_i32_0 = arith.constant 0 : i32
    %c0_i32_1 = arith.constant 0 : i32
    return %c0_i32, %c0_i32_0 : i32, i32
  }
  func.func @transform_2(%arg0: i32) -> (i32, i32) {
    %c0_i32 = arith.constant 0 : i32
    %c0_i32_0 = arith.constant 0 : i32
    %c0_i32_1 = arith.constant 0 : i32
    return %c0_i32, %c0_i32_0 : i32, i32
  }
  func.func @transform_3(%arg0: i32) -> (i32, i32) {
    %c0_i32 = arith.constant 0 : i32
    %c0_i32_0 = arith.constant 0 : i32
    return %arg0, %c0_i32 : i32, i32
  }
}

module attributes {stable_mosaic.version = 11 : i64} {
  func.func @_mm_act_kernel(%arg0: i32, %arg1: memref<24x4xf32, #tpu.memory_space<vmem>>, %arg2: memref<4x32xf32, #tpu.memory_space<vmem>>, %arg3: memref<24x32xf32, #tpu.memory_space<vmem>>) attributes {dimension_semantics = [#tpu.dimension_semantics<parallel>], iteration_bounds = array<i64: 1>, scalar_prefetch = 0 : i64, scratch_operands = 0 : i64, tpu.core_type = #tpu.core_type<tc>, window_params = [{transform_indices = @transform_0, window_bounds = array<i64: 24, 4>}, {pipeline_mode = #tpu.pipeline_mode<synchronous>, transform_indices = @transform_1, window_bounds = array<i64: 4, 32>}, {transform_indices = @transform_2, window_bounds = array<i64: 24, 32>}]} {
    %c0 = arith.constant 0 : index
    %c0_0 = arith.constant 0 : index
    %0 = vector.load %arg1[%c0, %c0_0] : memref<24x4xf32, #tpu.memory_space<vmem>>, vector<24x4xf32>
    %c0_1 = arith.constant 0 : index
    %c0_2 = arith.constant 0 : index
    %1 = vector.load %arg2[%c0_1, %c0_2] : memref<4x32xf32, #tpu.memory_space<vmem>>, vector<4x32xf32>
    %cst = arith.constant dense<0.000000e+00> : vector<24x32xf32>
    %2 = tpu.matmul %0, %1, %cst {dimension_numbers = #tpu.dot_dimension_numbers<[1], [0], [0], [1], [0, 0, 1, 1], [], []>} : vector<24x4xf32>, vector<4x32xf32>, vector<24x32xf32> -> vector<24x32xf32>
    %c0_3 = arith.constant 0 : index
    %c0_4 = arith.constant 0 : index
    %3 = vector.load %arg3[%c0_3, %c0_4] : memref<24x32xf32, #tpu.memory_space<vmem>>, vector<24x32xf32>
    tpu.vector_store %arg3[%c0_3, %c0_4], %2 {strides = array<i32>} : memref<24x32xf32, #tpu.memory_space<vmem>>, vector<24x32xf32>,
    return
  }
  func.func @transform_0(%arg0: i32) -> (i32, i32) {
    %c0_i32 = arith.constant 0 : i32
    %c0_i32_0 = arith.constant 0 : i32
    return %arg0, %c0_i32 : i32, i32
  }
  func.func @transform_1(%arg0: i32) -> (i32, i32) {
    %c0_i32 = arith.constant 0 : i32
    %c0_i32_0 = arith.constant 0 : i32
    %c0_i32_1 = arith.constant 0 : i32
    return %c0_i32, %c0_i32_0 : i32, i32
  }
  func.func @transform_2(%arg0: i32) -> (i32, i32) {
    %c0_i32 = arith.constant 0 : i32
    %c0_i32_0 = arith.constant 0 : i32
    return %arg0, %c0_i32 : i32, i32
  }
}

module attributes {stable_mosaic.version = 11 : i64} {
  func.func @_cls_kernel(%arg0: i32, %arg1: i32, %arg2: memref<1x16x32xbf16, #tpu.memory_space<vmem>>, %arg3: memref<3x32xbf16, #tpu.memory_space<vmem>>, %arg4: memref<3x1xf32, #tpu.memory_space<vmem>>, %arg5: memref<1x3x16xf32, #tpu.memory_space<vmem>>) attributes {dimension_semantics = [#tpu.dimension_semantics<parallel>, #tpu.dimension_semantics<parallel>], iteration_bounds = array<i64: 2, 1>, scalar_prefetch = 0 : i64, scratch_operands = 0 : i64, tpu.core_type = #tpu.core_type<tc>, window_params = [{transform_indices = @transform_0, window_bounds = array<i64: 1, 16, 32>}, {pipeline_mode = #tpu.pipeline_mode<synchronous>, transform_indices = @transform_1, window_bounds = array<i64: 3, 32>}, {pipeline_mode = #tpu.pipeline_mode<synchronous>, transform_indices = @transform_2, window_bounds = array<i64: 3, 1>}, {transform_indices = @transform_3, window_bounds = array<i64: 1, 3, 16>}]} {
    %c0 = arith.constant 0 : index
    %c0_0 = arith.constant 0 : index
    %0 = vector.load %arg3[%c0, %c0_0] : memref<3x32xbf16, #tpu.memory_space<vmem>>, vector<3x32xbf16>
    %c0_1 = arith.constant 0 : index
    %c0_2 = arith.constant 0 : index
    %c0_3 = arith.constant 0 : index
    %1 = vector.load %arg2[%c0_1, %c0_2, %c0_3] : memref<1x16x32xbf16, #tpu.memory_space<vmem>>, vector<1x16x32xbf16>
    %2 = vector.shape_cast %1 : vector<1x16x32xbf16> to vector<16x32xbf16>
    "tpu.trace_start"() <{level = 10 : i32, message = "kc,pc->kp"}> : () -> ()
    %cst = arith.constant dense<0.000000e+00> : vector<3x16xf32>
    %3 = tpu.matmul %0, %2, %cst {dimension_numbers = #tpu.dot_dimension_numbers<[1], [1], [0], [0], [0, 0, 1, 0], [], []>} : vector<3x32xbf16>, vector<16x32xbf16>, vector<3x16xf32> -> vector<3x16xf32>
    "tpu.trace_stop"() : () -> ()
    %c0_4 = arith.constant 0 : index
    %c0_5 = arith.constant 0 : index
    %4 = vector.load %arg4[%c0_4, %c0_5] : memref<3x1xf32, #tpu.memory_space<vmem>>, vector<3x1xf32>
    %5 = vector.broadcast %4 : vector<3x1xf32> to vector<3x16xf32>
    %6 = arith.addf %3, %5 : vector<3x16xf32>
    %c0_6 = arith.constant 0 : index
    %c0_7 = arith.constant 0 : index
    %c0_8 = arith.constant 0 : index
    %7 = vector.load %arg5[%c0_6, %c0_7, %c0_8] : memref<1x3x16xf32, #tpu.memory_space<vmem>>, vector<1x3x16xf32>
    %8 = vector.shape_cast %7 : vector<1x3x16xf32> to vector<3x16xf32>
    %9 = vector.shape_cast %6 : vector<3x16xf32> to vector<1x3x16xf32>
    tpu.vector_store %arg5[%c0_6, %c0_7, %c0_8], %9 {strides = array<i32>} : memref<1x3x16xf32, #tpu.memory_space<vmem>>, vector<1x3x16xf32>,
    return
  }
  func.func @transform_0(%arg0: i32, %arg1: i32) -> (i32, i32, i32) {
    %c0_i32 = arith.constant 0 : i32
    %c0_i32_0 = arith.constant 0 : i32
    return %arg0, %arg1, %c0_i32 : i32, i32, i32
  }
  func.func @transform_1(%arg0: i32, %arg1: i32) -> (i32, i32) {
    %c0_i32 = arith.constant 0 : i32
    %c0_i32_0 = arith.constant 0 : i32
    %c0_i32_1 = arith.constant 0 : i32
    return %c0_i32, %c0_i32_0 : i32, i32
  }
  func.func @transform_2(%arg0: i32, %arg1: i32) -> (i32, i32) {
    %c0_i32 = arith.constant 0 : i32
    %c0_i32_0 = arith.constant 0 : i32
    %c0_i32_1 = arith.constant 0 : i32
    return %c0_i32, %c0_i32_0 : i32, i32
  }
  func.func @transform_3(%arg0: i32, %arg1: i32) -> (i32, i32, i32) {
    %c0_i32 = arith.constant 0 : i32
    %c0_i32_0 = arith.constant 0 : i32
    return %arg0, %c0_i32, %arg1 : i32, i32, i32
  }
}

module attributes {stable_mosaic.version = 11 : i64} {
  func.func @_rows_interp_kernel(%arg0: i32, %arg1: memref<32x4xf32, #tpu.memory_space<vmem>>, %arg2: memref<1x4x32xf32, #tpu.memory_space<vmem>>, %arg3: memref<1x32x32xf32, #tpu.memory_space<vmem>>) attributes {dimension_semantics = [#tpu.dimension_semantics<parallel>], iteration_bounds = array<i64: 6>, scalar_prefetch = 0 : i64, scratch_operands = 0 : i64, tpu.core_type = #tpu.core_type<tc>, window_params = [{pipeline_mode = #tpu.pipeline_mode<synchronous>, transform_indices = @transform_0, window_bounds = array<i64: 32, 4>}, {transform_indices = @transform_1, window_bounds = array<i64: 1, 4, 32>}, {transform_indices = @transform_2, window_bounds = array<i64: 1, 32, 32>}]} {
    %c0 = arith.constant 0 : index
    %c0_0 = arith.constant 0 : index
    %0 = vector.load %arg1[%c0, %c0_0] : memref<32x4xf32, #tpu.memory_space<vmem>>, vector<32x4xf32>
    %c0_1 = arith.constant 0 : index
    %c0_2 = arith.constant 0 : index
    %c0_3 = arith.constant 0 : index
    %1 = vector.load %arg2[%c0_1, %c0_2, %c0_3] : memref<1x4x32xf32, #tpu.memory_space<vmem>>, vector<1x4x32xf32>
    %2 = vector.shape_cast %1 : vector<1x4x32xf32> to vector<4x32xf32>
    %cst = arith.constant dense<0.000000e+00> : vector<32x32xf32>
    %3 = tpu.matmul %0, %2, %cst {dimension_numbers = #tpu.dot_dimension_numbers<[1], [0], [0], [1], [0, 0, 1, 1], [], []>} : vector<32x4xf32>, vector<4x32xf32>, vector<32x32xf32> -> vector<32x32xf32>
    %c0_4 = arith.constant 0 : index
    %c0_5 = arith.constant 0 : index
    %c0_6 = arith.constant 0 : index
    %4 = vector.load %arg3[%c0_4, %c0_5, %c0_6] : memref<1x32x32xf32, #tpu.memory_space<vmem>>, vector<1x32x32xf32>
    %5 = vector.shape_cast %4 : vector<1x32x32xf32> to vector<32x32xf32>
    %6 = vector.shape_cast %3 : vector<32x32xf32> to vector<1x32x32xf32>
    tpu.vector_store %arg3[%c0_4, %c0_5, %c0_6], %6 {strides = array<i32>} : memref<1x32x32xf32, #tpu.memory_space<vmem>>, vector<1x32x32xf32>,
    return
  }
  func.func @transform_0(%arg0: i32) -> (i32, i32) {
    %c0_i32 = arith.constant 0 : i32
    %c0_i32_0 = arith.constant 0 : i32
    %c0_i32_1 = arith.constant 0 : i32
    return %c0_i32, %c0_i32_0 : i32, i32
  }
  func.func @transform_1(%arg0: i32) -> (i32, i32, i32) {
    %c0_i32 = arith.constant 0 : i32
    %c0_i32_0 = arith.constant 0 : i32
    %c0_i32_1 = arith.constant 0 : i32
    return %arg0, %c0_i32, %c0_i32_0 : i32, i32, i32
  }
  func.func @transform_2(%arg0: i32) -> (i32, i32, i32) {
    %c0_i32 = arith.constant 0 : i32
    %c0_i32_0 = arith.constant 0 : i32
    %c0_i32_1 = arith.constant 0 : i32
    return %arg0, %c0_i32, %c0_i32_0 : i32, i32, i32
  }
}

module attributes {stable_mosaic.version = 11 : i64} {
  func.func @_softmax_classes_kernel(%arg0: i32, %arg1: i32, %arg2: memref<1x3x1024xf32, #tpu.memory_space<vmem>>, %arg3: memref<1x3x1024xf32, #tpu.memory_space<vmem>>) attributes {dimension_semantics = [#tpu.dimension_semantics<parallel>, #tpu.dimension_semantics<parallel>], iteration_bounds = array<i64: 2, 1>, scalar_prefetch = 0 : i64, scratch_operands = 0 : i64, tpu.core_type = #tpu.core_type<tc>, window_params = [{transform_indices = @transform_0, window_bounds = array<i64: 1, 3, 1024>}, {transform_indices = @transform_1, window_bounds = array<i64: 1, 3, 1024>}]} {
    %c0 = arith.constant 0 : index
    %c0_0 = arith.constant 0 : index
    %c0_1 = arith.constant 0 : index
    %0 = vector.load %arg2[%c0, %c0_0, %c0_1] : memref<1x3x1024xf32, #tpu.memory_space<vmem>>, vector<1x3x1024xf32>
    %1 = vector.shape_cast %0 : vector<1x3x1024xf32> to vector<3x1024xf32>
    %cst = arith.constant dense<0xFF800000> : vector<1024xf32>
    %2 = vector.multi_reduction <maximumf>, %1, %cst [0] : vector<3x1024xf32> to vector<1024xf32>
    %3 = vector.shape_cast %2 : vector<1024xf32> to vector<1x1024xf32>
    %4 = vector.broadcast %3 : vector<1x1024xf32> to vector<3x1024xf32>
    %5 = arith.subf %1, %4 : vector<3x1024xf32>
    %6 = math.exp %5 : vector<3x1024xf32>
    %cst_2 = arith.constant dense<0.000000e+00> : vector<1024xf32>
    %7 = vector.multi_reduction <add>, %6, %cst_2 [0] : vector<3x1024xf32> to vector<1024xf32>
    %8 = vector.shape_cast %7 : vector<1024xf32> to vector<1x1024xf32>
    %9 = vector.broadcast %8 : vector<1x1024xf32> to vector<3x1024xf32>
    %10 = arith.divf %6, %9 : vector<3x1024xf32>
    %c0_3 = arith.constant 0 : index
    %c0_4 = arith.constant 0 : index
    %c0_5 = arith.constant 0 : index
    %11 = vector.load %arg3[%c0_3, %c0_4, %c0_5] : memref<1x3x1024xf32, #tpu.memory_space<vmem>>, vector<1x3x1024xf32>
    %12 = vector.shape_cast %11 : vector<1x3x1024xf32> to vector<3x1024xf32>
    %13 = vector.shape_cast %10 : vector<3x1024xf32> to vector<1x3x1024xf32>
    tpu.vector_store %arg3[%c0_3, %c0_4, %c0_5], %13 {strides = array<i32>} : memref<1x3x1024xf32, #tpu.memory_space<vmem>>, vector<1x3x1024xf32>,
    return
  }
  func.func @transform_0(%arg0: i32, %arg1: i32) -> (i32, i32, i32) {
    %c0_i32 = arith.constant 0 : i32
    %c0_i32_0 = arith.constant 0 : i32
    return %arg0, %c0_i32, %arg1 : i32, i32, i32
  }
  func.func @transform_1(%arg0: i32, %arg1: i32) -> (i32, i32, i32) {
    %c0_i32 = arith.constant 0 : i32
    %c0_i32_0 = arith.constant 0 : i32
    return %arg0, %c0_i32, %arg1 : i32, i32, i32
  }
}

</mosaic_0001>

<llo_original>
// kernel: deeplab_forward.16
$region0: #{deeplab_forward.16}
  #allocation0 [shape = 'u32[]', space=smem, size = 0x4, offset = 0x4, fixed_abs, tag = 'smem constant byte address 0x4 - core index']
  #allocation1 [shape = 'u32[144,128]{1,0:T(1,128)}', space=vmem, size = 0x12000, scoped, tag = 'internal scratch']
  %s0 = inlined_call_operand.vmem [shape: bf16[512,27], index: 0, kind: input, shape index: {}]
  %s1 = inlined_call_operand.vmem [shape: bf16[27,16], index: 1, kind: input, shape index: {}]
  %s2 = inlined_call_operand.vmem [shape: f32[1,16], index: 2, kind: input, shape index: {}]
  %s3 = inlined_call_operand.vmem [shape: bf16[512,16], index: 3, kind: output, shape index: {}]
  %s4 = sld [smem:[#allocation0]]
  $region45: #{deeplab_forward.16} parent=0
    _
  %s6 = ssub.s32 1, %s4
  %s7 = scalar_select 0, %s6, %s4
  loop: start=0, step=1, limit=4
  $region2: #{deeplab_forward.16} parent=0 // loop_pre_header
    _
  $region3: #{deeplab_forward.16} parent=0 // loop_header
    %s9 = sphi 0, %s13
    %p10 = scmp.ge.s32.totalorder %s9, 4
    %s19 = sphi 0, %s21
    %s22 = sphi 0, %s19
    %s23 = sphi 0, %s22
    %s39 = sphi 0, %s23
    %s43 = sphi 0, %s43
    %s45 = sphi 0, %s43
    %s46 = sphi 0, %s45
    %s60 = sphi 0, %s46
    %s64 = sphi 0, %s64
    %s66 = sphi 0, %s64
    %s67 = sphi 0, %s66
    %s81 = sphi 0, %s67
    %s87 = sphi 0, %s89
    %s90 = sphi 0, %s87
    %s91 = sphi 0, %s90
    %s107 = sphi 0, %s91
  $region4: #{deeplab_forward.16} parent=0 // loop_header_branch
    %12 = sbr.rel (%p10) target = $region8
  $region5: #{deeplab_forward.16} parent=0 // loop_body
    %s14 = ssub.s32 %s9, 1
    %s15 = ssub.s32 %s9, 2
    %s16 = sadd.s32 %s9, 1
    %s17 = ssub.s32 %s9, %s16
    %p18 = scmp.eq.s32.totalorder %s17, 0
    %s20 = sadd.s32 %s19, 1
    %s21 = scalar_select %p18, %s19, %s20
    %p24 = pneg %p18
    %p25 = scmp.eq.s32.totalorder %s9, 1
    %p26 = por %p24, %p25
    %p27 = scmp.ne.s32.totalorder %s19, %s22
    %p28 = scmp.eq.s32.totalorder %s9, 0
    %p29 = por %p27, %p28
    %p30 = scmp.ne.s32.totalorder %s19, %s22
    %p31 = scmp.eq.s32.totalorder %s14, 1
    %p32 = por %p30, %p31
    %p33 = scmp.ne.s32.totalorder %s22, %s23
    %p34 = scmp.eq.s32.totalorder %s14, 0
    %p35 = por %p33, %p34
    %p36 = scmp.ne.s32.totalorder %s22, %s23
    %p37 = scmp.eq.s32.totalorder %s15, 1
    %p38 = por %p36, %p37
    %p40 = scmp.ne.s32.totalorder %s23, %s39
    %p41 = scmp.eq.s32.totalorder %s15, 0
    %p42 = por %p40, %p41
    %s44 = sadd.s32 %s43, 1
    %p47 = scmp.eq.s32.totalorder %s9, 1
    %p48 = scmp.ne.s32.totalorder %s43, %s45
    %p49 = scmp.eq.s32.totalorder %s9, 0
    %p50 = por %p48, %p49
    %p51 = scmp.ne.s32.totalorder %s43, %s45
    %p52 = scmp.eq.s32.totalorder %s14, 1
    %p53 = por %p51, %p52
    %p54 = scmp.ne.s32.totalorder %s45, %s46
    %p55 = scmp.eq.s32.totalorder %s14, 0
    %p56 = por %p54, %p55
    %p57 = scmp.ne.s32.totalorder %s45, %s46
    %p58 = scmp.eq.s32.totalorder %s15, 1
    %p59 = por %p57, %p58
    %p61 = scmp.ne.s32.totalorder %s46, %s60
    %p62 = scmp.eq.s32.totalorder %s15, 0
    %p63 = por %p61, %p62
    %s65 = sadd.s32 %s64, 1
    %p68 = scmp.eq.s32.totalorder %s9, 1
    %p69 = scmp.ne.s32.totalorder %s64, %s66
    %p70 = scmp.eq.s32.totalorder %s9, 0
    %p71 = por %p69, %p70
    %p72 = scmp.ne.s32.totalorder %s64, %s66
    %p73 = scmp.eq.s32.totalorder %s14, 1
    %p74 = por %p72, %p73
    %p75 = scmp.ne.s32.totalorder %s66, %s67
    %p76 = scmp.eq.s32.totalorder %s14, 0
    %p77 = por %p75, %p76
    %p78 = scmp.ne.s32.totalorder %s66, %s67
    %p79 = scmp.eq.s32.totalorder %s15, 1
    %p80 = por %p78, %p79
    %p82 = scmp.ne.s32.totalorder %s67, %s81
    %p83 = scmp.eq.s32.totalorder %s15, 0
    %p84 = por %p82, %p83
    %s85 = ssub.s32 %s9, %s16
    %p86 = scmp.eq.s32.totalorder %s85, 0
    %s88 = sadd.s32 %s87, 1
    %s89 = scalar_select %p86, %s87, %s88
    %p92 = pneg %p86
    %p93 = scmp.eq.s32.totalorder %s9, 1
    %p94 = por %p92, %p93
    %p95 = scmp.ne.s32.totalorder %s87, %s90
    %p96 = scmp.eq.s32.totalorder %s9, 0
    %p97 = por %p95, %p96
    %p98 = scmp.ne.s32.totalorder %s87, %s90
    %p99 = scmp.eq.s32.totalorder %s14, 1
    %p100 = por %p98, %p99
    %p101 = scmp.ne.s32.totalorder %s90, %s91
    %p102 = scmp.eq.s32.totalorder %s14, 0
    %p103 = por %p101, %p102
    %p104 = scmp.ne.s32.totalorder %s90, %s91
    %p105 = scmp.eq.s32.totalorder %s15, 1
    %p106 = por %p104, %p105
    %p108 = scmp.ne.s32.totalorder %s91, %s107
    %p109 = scmp.eq.s32.totalorder %s15, 0
    %p110 = por %p108, %p109
    %p111 = scmp.le.s32.totalorder 1, %s9
    %p112 = scmp.lt.s32.totalorder %s9, 3
    %p113 = pnand %p111, %p112
    %p114 = pneg %p113
    // Predicated region
    $region9: #{deeplab_forward.16} parent=5 // pred_check
      _
    $region10: #{deeplab_forward.16} parent=5 // pred_check_branch
      %116 = sbr.rel (%p113) target = $region12
    $region11: #{deeplab_forward.16} parent=5 // pred_region
      %s117 = ssub.s32 %s9, 1
      // Predicated region
      $region13: #{deeplab_forward.16} parent=11 // pred_check
        %p118 = pneg %p56
      $region14: #{deeplab_forward.16} parent=11 // pred_check_branch
        %120 = sbr.rel (%p118) target = $region16
      $region15: #{deeplab_forward.16} parent=11 // pred_region
        _
      $region16: #{deeplab_forward.16} parent=11 // pred_fallthru
        _
      // Predicated region
      $region17: #{deeplab_forward.16} parent=11 // pred_check
        %p121 = pneg %p77
      $region18: #{deeplab_forward.16} parent=11 // pred_check_branch
        %123 = sbr.rel (%p121) target = $region20
      $region19: #{deeplab_forward.16} parent=11 // pred_region
        _
      $region20: #{deeplab_forward.16} parent=11 // pred_fallthru
        _
    $region12: #{deeplab_forward.16} parent=5 // pred_fallthru
      _
    %p124 = scmp.lt.s32.totalorder %s9, 2
    // Predicated region
    $region21: #{deeplab_forward.16} parent=5 // pred_check
      %p125 = pneg %p124
    $region22: #{deeplab_forward.16} parent=5 // pred_check_branch
      %127 = sbr.rel (%p125) target = $region24
    $region23: #{deeplab_forward.16} parent=5 // pred_region
      // Predicated region
      $region25: #{deeplab_forward.16} parent=23 // pred_check
        %p128 = pneg %p29
      $region26: #{deeplab_forward.16} parent=23 // pred_check_branch
        %130 = sbr.rel (%p128) target = $region28
      $region27: #{deeplab_forward.16} parent=23 // pred_region
        %s131 = smul.u32 32, %s9
        %p132 = scmp.lt.s32.totalorder %s131, 63
        %s133 = scalar_select %p132, %s131, 63
        %s134 = smul.addr %s133, 4
        %s135 = scalar_lea.vmem %s0, %s134
        %s136 = smul.u32 32, %s9
      $region28: #{deeplab_forward.16} parent=23 // pred_fallthru
        _
    $region24: #{deeplab_forward.16} parent=5 // pred_fallthru
      _
    %p137 = scmp.le.s32.totalorder 1, %s9
    %p138 = scmp.lt.s32.totalorder %s9, 3
    %p139 = pnand %p137, %p138
    %p140 = pneg %p139
    // Predicated region
    $region29: #{deeplab_forward.16} parent=5 // pred_check
      _
    $region30: #{deeplab_forward.16} parent=5 // pred_check_branch
      %142 = sbr.rel (%p139) target = $region32
    $region31: #{deeplab_forward.16} parent=5 // pred_region
      %s143 = ssub.s32 %s9, 1
      %s144 = smul.u32 32, %s14
      %p145 = scmp.lt.s32.totalorder %s144, 63
      %s146 = scalar_select %p145, %s144, 63
      %s147 = smul.addr %s146, 4
      %s148 = scalar_lea.vmem %s0, %s147
      %p149 = pneg %p35
      %p150 = pneg %p32
      %p151 = pneg %p56
      %p152 = pneg %p53
      %p153 = pneg %p77
      %p154 = pneg %p74
      %p155 = pneg %p103
      %p156 = pneg %p100
      %s157 = smul.u32 32, %s14
      %p158 = scmp.lt.s32.totalorder %s157, 63
      %s159 = scalar_select %p158, %s157, 63
      %s160 = smul.addr %s159, 4
      %s161 = scalar_lea.vmem %s3, %s160
      %s162 = smul.u32 32, %s14
      %p163 = scmp.lt.s32.totalorder %s162, 63
      %s164 = scalar_select %p163, %s162, 63
      %s165 = smul.addr %s164, 4
      %s166 = scalar_lea.vmem %s0, %s165
      %s167 = smul.u32 32, %s14
      %s168 = smul.u32 32, %s14
      %p169 = scmp.lt.s32.totalorder %s168, 63
      %s170 = scalar_select %p169, %s168, 63
      %s171 = smul.addr %s170, 4
      %s172 = scalar_lea.vmem %s3, %s171
      %s173 = smul.u32 32, %s14
      %v175 = vld [vmem:[%s166] sm:$0xf]
      %v176 = vld [vmem:[%s166 + $0x4] sm:$0xf]
      %v177 = vld [vmem:[%s166 + $0x8] sm:$0xf]
      %v178 = vld [vmem:[%s166 + $0xc] sm:$0xf]
      %v179 = vld [vmem:[%s166 + $0x10] sm:$0xf]
      %v180 = vld [vmem:[%s166 + $0x14] sm:$0xf]
      %v181 = vld [vmem:[%s166 + $0x18] sm:$0xf]
      %v182 = vld [vmem:[%s166 + $0x1c] sm:$0xf]
      %v183 = vld [vmem:[%s166 + $0x20] sm:$0xf]
      %v184 = vld [vmem:[%s166 + $0x24] sm:$0xf]
      %v185 = vld [vmem:[%s166 + $0x28] sm:$0xf]
      %v186 = vld [vmem:[%s166 + $0x2c] sm:$0xf]
      %v187 = vld [vmem:[%s166 + $0x30] sm:$0xf]
      %v188 = vld [vmem:[%s166 + $0x34] sm:$0xf]
      %v189 = vld [vmem:[%s166 + $0x38] sm:$0xf]
      %v190 = vld [vmem:[%s166 + $0x3c] sm:$0xf]
      %v191 = vld [vmem:[%s166 + $0x40] sm:$0xf]
      %v192 = vld [vmem:[%s166 + $0x44] sm:$0xf]
      %v193 = vld [vmem:[%s166 + $0x48] sm:$0xf]
      %v194 = vld [vmem:[%s166 + $0x4c] sm:$0xf]
      %v195 = vld [vmem:[%s166 + $0x50] sm:$0xf]
      %v196 = vld [vmem:[%s166 + $0x54] sm:$0xf]
      %v197 = vld [vmem:[%s166 + $0x58] sm:$0xf]
      %v198 = vld [vmem:[%s166 + $0x5c] sm:$0xf]
      %v199 = vld [vmem:[%s166 + $0x60] sm:$0xf]
      %v200 = vld [vmem:[%s166 + $0x64] sm:$0xf]
      %v201 = vld [vmem:[%s166 + $0x68] sm:$0xf]
      %v202 = vld [vmem:[%s166 + $0x6c] sm:$0xf]
      %v203 = vld [vmem:[%s166 + $0x70] sm:$0xf]
      %v204 = vld [vmem:[%s166 + $0x74] sm:$0xf]
      %v205 = vld [vmem:[%s166 + $0x78] sm:$0xf]
      %v206 = vld [vmem:[%s166 + $0x7c] sm:$0xf]
      %v207 = vld [vmem:[%s1] sm:$0xf]
      %v208 = vld [vmem:[%s1 + $0x4] sm:$0xf]
      %v209 = vld [vmem:[%s1 + $0x8] sm:$0xf]
      %v210 = vld [vmem:[%s1 + $0xc] sm:$0x3]
      %v211 = vld [vmem:[%s2] sm:$0x1]
      %v213 = vlaneseq
      %v214 = vshrl.u32 %v213, 7
      %v215 = vsub.s32 0, %v214
      %v216 = vrot.slane %v211, %v215
      %v250 = vunpack.c.l.b16 %v175
      %v251 = vunpack.c.l.b16 %v176
      %v252 = vunpack.c.l.b16 %v177
      %v253 = vunpack.c.l.b16 %v178
      %v254 = vunpack.c.l.b16 %v179
      %v255 = vunpack.c.l.b16 %v180
      %v256 = vunpack.c.l.b16 %v181
      %v257 = vunpack.c.l.b16 %v182
      %v258 = vunpack.c.l.b16 %v183
      %v259 = vunpack.c.l.b16 %v184
      %v260 = vunpack.c.l.b16 %v185
      %v261 = vunpack.c.l.b16 %v186
      %v262 = vunpack.c.l.b16 %v187
      %v263 = vunpack.c.l.b16 %v188
      %v264 = vunpack.c.l.b16 %v189
      %v265 = vunpack.c.l.b16 %v190
      %v266 = vunpack.c.l.b16 %v191
      %v267 = vunpack.c.l.b16 %v192
      %v268 = vunpack.c.l.b16 %v193
      %v269 = vunpack.c.l.b16 %v194
      %v270 = vunpack.c.l.b16 %v195
      %v271 = vunpack.c.l.b16 %v196
      %v272 = vunpack.c.l.b16 %v197
      %v273 = vunpack.c.l.b16 %v198
      %v274 = vunpack.c.l.b16 %v199
      %v275 = vunpack.c.l.b16 %v200
      %v276 = vunpack.c.l.b16 %v201
      %v277 = vunpack.c.l.b16 %v202
      %v278 = vunpack.c.l.b16 %v203
      %v279 = vunpack.c.l.b16 %v204
      %v280 = vunpack.c.l.b16 %v205
      %v281 = vunpack.c.l.b16 %v206
      %v282 = vpack.c.b16 %v251, %v250
      %v283 = vpack.c.b16 %v253, %v252
      %v284 = vpack.c.b16 %v255, %v254
      %v285 = vpack.c.b16 %v257, %v256
      %v286 = vpack.c.b16 %v259, %v258
      %v287 = vpack.c.b16 %v261, %v260
      %v288 = vpack.c.b16 %v263, %v262
      %v289 = vpack.c.b16 %v265, %v264
      %v290 = vpack.c.b16 %v267, %v266
      %v291 = vpack.c.b16 %v269, %v268
      %v292 = vpack.c.b16 %v271, %v270
      %v293 = vpack.c.b16 %v273, %v272
      %v294 = vpack.c.b16 %v275, %v274
      %v295 = vpack.c.b16 %v277, %v276
      %v296 = vpack.c.b16 %v279, %v278
      %v297 = vpack.c.b16 %v281, %v280
      %v302 = vunpack.c.l.b16 %v207
      %v303 = vunpack.c.l.b16 %v208
      %v304 = vunpack.c.l.b16 %v209
      %v305 = vunpack.c.l.b16 %v210
      %v306 = vpack.c.b16 %v303, %v302
      %v307 = vpack.c.b16 %v305, %v304
      %vm309 = vcmask 220160
      %v311 = vsel %vm309, %v282, 0
      %v314 = vsel %vm309, %v283, 0
      %v317 = vsel %vm309, %v284, 0
      %v320 = vsel %vm309, %v285, 0
      %v323 = vsel %vm309, %v286, 0
      %v326 = vsel %vm309, %v287, 0
      %v329 = vsel %vm309, %v288, 0
      %v332 = vsel %vm309, %v289, 0
      %v335 = vsel %vm309, %v290, 0
      %v338 = vsel %vm309, %v291, 0
      %v341 = vsel %vm309, %v292, 0
      %v344 = vsel %vm309, %v293, 0
      %v347 = vsel %vm309, %v294, 0
      %v350 = vsel %vm309, %v295, 0
      %v353 = vsel %vm309, %v296, 0
      %v356 = vsel %vm309, %v297, 0
      %vm358 = vcmask 1044480
      %vm359 = vcmask 1045504
      %v360 = vsel %vm358, 4294967295, 65535
      %v361 = vsel %vm359, %v360, 0
      %v363 = vand.u32 %v307, %v361
      %365 = vmatprep.subr.bf16.mxu0 0
      %366 = vmatpush1.bf16.msra.mxu0 %v306
      %367 = vmatprep.subr.bf16.mxu0 0
      %368 = vmatpush1.bf16.msra.mxu0 %v363
      %369 = vmatprep.subr.bf16.mxu0 0
      %370 = vmatpush1.bf16.msra.mxu0 0
      %371 = vmatprep.subr.bf16.mxu0 0
      %372 = vmatpush1.bf16.msra.mxu0 0
      %373 = vmatprep.subr.bf16.mxu0 0
      %374 = vmatpush1.bf16.msra.mxu0 0
      %375 = vmatprep.subr.bf16.mxu0 0
      %376 = vmatpush1.bf16.msra.mxu0 0
      %377 = vmatprep.subr.bf16.mxu0 0
      %378 = vmatpush1.bf16.msra.mxu0 0
      %379 = vmatprep.subr.bf16.mxu0 0
      %380 = vmatpush1.bf16.msra.mxu0 0
      %381 = vmatprep.subr.bf16.mxu0 0
      %382 = vmatpush1.bf16.msra.mxu0 0
      %383 = vmatprep.subr.bf16.mxu0 0
      %384 = vmatpush1.bf16.msra.mxu0 0
      %385 = vmatprep.subr.bf16.mxu0 0
      %386 = vmatpush1.bf16.msra.mxu0 0
      %387 = vmatprep.subr.bf16.mxu0 0
      %388 = vmatpush1.bf16.msra.mxu0 0
      %389 = vmatprep.subr.bf16.mxu0 0
      %390 = vmatpush1.bf16.msra.mxu0 0
      %391 = vmatprep.subr.bf16.mxu0 0
      %392 = vmatpush1.bf16.msra.mxu0 0
      %393 = vmatprep.subr.bf16.mxu0 0
      %394 = vmatpush1.bf16.msra.mxu0 0
      %395 = vmatprep.subr.bf16.mxu0 0
      %396 = vmatpush1.bf16.msra.mxu0 0
      %397 = vmatprep.mubr.bf16.mxu0 0
      %398 = vmatmul.mubr.bf16.gmra.mrb[0].mxu0 %v311
      %v399 = vpop.f32.mrb[0].mxu0
      %v400 = vadd.f32 %v216, %v399
      %v401 = vpop.f32.mrb[0].mxu0
      %v402 = vpop.f32.mrb[0].mxu0
      %v403 = vadd.f32 %v216, %v402
      %v404 = vpop.f32.mrb[0].mxu0
      %405 = vmatprep.mubr.bf16.mxu0 0
      %406 = vmatmul.mubr.bf16.gmra.mrb[0].mxu0 %v314
      %v407 = vpop.f32.mrb[0].mxu0
      %v408 = vadd.f32 %v216, %v407
      %v409 = vpop.f32.mrb[0].mxu0
      %v410 = vpop.f32.mrb[0].mxu0
      %v411 = vadd.f32 %v216, %v410
      %v412 = vpop.f32.mrb[0].mxu0
      %413 = vmatprep.mubr.bf16.mxu0 0
      %414 = vmatmul.mubr.bf16.gmra.mrb[0].mxu0 %v317
      %v415 = vpop.f32.mrb[0].mxu0
      %v416 = vadd.f32 %v216, %v415
      %v417 = vpop.f32.mrb[0].mxu0
      %v418 = vpop.f32.mrb[0].mxu0
      %v419 = vadd.f32 %v216, %v418
      %v420 = vpop.f32.mrb[0].mxu0
      %421 = vmatprep.mubr.bf16.mxu0 0
      %422 = vmatmul.mubr.bf16.gmra.mrb[0].mxu0 %v320
      %v423 = vpop.f32.mrb[0].mxu0
      %v424 = vadd.f32 %v216, %v423
      %v425 = vpop.f32.mrb[0].mxu0
      %v426 = vpop.f32.mrb[0].mxu0
      %v427 = vadd.f32 %v216, %v426
      %v428 = vpop.f32.mrb[0].mxu0
      %429 = vmatprep.mubr.bf16.mxu0 0
      %430 = vmatmul.mubr.bf16.gmra.mrb[0].mxu0 %v323
      %v431 = vpop.f32.mrb[0].mxu0
      %v432 = vadd.f32 %v216, %v431
      %v433 = vpop.f32.mrb[0].mxu0
      %v434 = vpop.f32.mrb[0].mxu0
      %v435 = vadd.f32 %v216, %v434
      %v436 = vpop.f32.mrb[0].mxu0
      %437 = vmatprep.mubr.bf16.mxu0 0
      %438 = vmatmul.mubr.bf16.gmra.mrb[0].mxu0 %v326
      %v439 = vpop.f32.mrb[0].mxu0
      %v440 = vadd.f32 %v216, %v439
      %v441 = vpop.f32.mrb[0].mxu0
      %v442 = vpop.f32.mrb[0].mxu0
      %v443 = vadd.f32 %v216, %v442
      %v444 = vpop.f32.mrb[0].mxu0
      %445 = vmatprep.mubr.bf16.mxu0 0
      %446 = vmatmul.mubr.bf16.gmra.mrb[0].mxu0 %v329
      %v447 = vpop.f32.mrb[0].mxu0
      %v448 = vadd.f32 %v216, %v447
      %v449 = vpop.f32.mrb[0].mxu0
      %v450 = vpop.f32.mrb[0].mxu0
      %v451 = vadd.f32 %v216, %v450
      %v452 = vpop.f32.mrb[0].mxu0
      %453 = vmatprep.mubr.bf16.mxu0 0
      %454 = vmatmul.mubr.bf16.gmra.mrb[0].mxu0 %v332
      %v455 = vpop.f32.mrb[0].mxu0
      %v456 = vadd.f32 %v216, %v455
      %v457 = vpop.f32.mrb[0].mxu0
      %v458 = vpop.f32.mrb[0].mxu0
      %v459 = vadd.f32 %v216, %v458
      %v460 = vpop.f32.mrb[0].mxu0
      %461 = vmatprep.mubr.bf16.mxu0 0
      %462 = vmatmul.mubr.bf16.gmra.mrb[0].mxu0 %v335
      %v463 = vpop.f32.mrb[0].mxu0
      %v464 = vadd.f32 %v216, %v463
      %v465 = vpop.f32.mrb[0].mxu0
      %v466 = vpop.f32.mrb[0].mxu0
      %v467 = vadd.f32 %v216, %v466
      %v468 = vpop.f32.mrb[0].mxu0
      %469 = vmatprep.mubr.bf16.mxu0 0
      %470 = vmatmul.mubr.bf16.gmra.mrb[0].mxu0 %v338
      %v471 = vpop.f32.mrb[0].mxu0
      %v472 = vadd.f32 %v216, %v471
      %v473 = vpop.f32.mrb[0].mxu0
      %v474 = vpop.f32.mrb[0].mxu0
      %v475 = vadd.f32 %v216, %v474
      %v476 = vpop.f32.mrb[0].mxu0
      %477 = vmatprep.mubr.bf16.mxu0 0
      %478 = vmatmul.mubr.bf16.gmra.mrb[0].mxu0 %v341
      %v479 = vpop.f32.mrb[0].mxu0
      %v480 = vadd.f32 %v216, %v479
      %v481 = vpop.f32.mrb[0].mxu0
      %v482 = vpop.f32.mrb[0].mxu0
      %v483 = vadd.f32 %v216, %v482
      %v484 = vpop.f32.mrb[0].mxu0
      %485 = vmatprep.mubr.bf16.mxu0 0
      %486 = vmatmul.mubr.bf16.gmra.mrb[0].mxu0 %v344
      %v487 = vpop.f32.mrb[0].mxu0
      %v488 = vadd.f32 %v216, %v487
      %v489 = vpop.f32.mrb[0].mxu0
      %v490 = vpop.f32.mrb[0].mxu0
      %v491 = vadd.f32 %v216, %v490
      %v492 = vpop.f32.mrb[0].mxu0
      %493 = vmatprep.mubr.bf16.mxu0 0
      %494 = vmatmul.mubr.bf16.gmra.mrb[0].mxu0 %v347
      %v495 = vpop.f32.mrb[0].mxu0
      %v496 = vadd.f32 %v216, %v495
      %v497 = vpop.f32.mrb[0].mxu0
      %v498 = vpop.f32.mrb[0].mxu0
      %v499 = vadd.f32 %v216, %v498
      %v500 = vpop.f32.mrb[0].mxu0
      %501 = vmatprep.mubr.bf16.mxu0 0
      %502 = vmatmul.mubr.bf16.gmra.mrb[0].mxu0 %v350
      %v503 = vpop.f32.mrb[0].mxu0
      %v504 = vadd.f32 %v216, %v503
      %v505 = vpop.f32.mrb[0].mxu0
      %v506 = vpop.f32.mrb[0].mxu0
      %v507 = vadd.f32 %v216, %v506
      %v508 = vpop.f32.mrb[0].mxu0
      %509 = vmatprep.mubr.bf16.mxu0 0
      %510 = vmatmul.mubr.bf16.gmra.mrb[0].mxu0 %v353
      %v511 = vpop.f32.mrb[0].mxu0
      %v512 = vadd.f32 %v216, %v511
      %v513 = vpop.f32.mrb[0].mxu0
      %v514 = vpop.f32.mrb[0].mxu0
      %v515 = vadd.f32 %v216, %v514
      %v516 = vpop.f32.mrb[0].mxu0
      %517 = vmatprep.mubr.bf16.mxu0 0
      %518 = vmatmul.mubr.bf16.gmra.mrb[0].mxu0 %v356
      %v519 = vpop.f32.mrb[0].mxu0
      %v520 = vadd.f32 %v216, %v519
      %v521 = vpop.f32.mrb[0].mxu0
      %v522 = vpop.f32.mrb[0].mxu0
      %v523 = vadd.f32 %v216, %v522
      %v524 = vpop.f32.mrb[0].mxu0
      %525 = vdwg.mxu0
      %v526 = vadd.f32 %v400, 3.0
      %v527 = vadd.f32 %v403, 3.0
      %v528 = vadd.f32 %v408, 3.0
      %v529 = vadd.f32 %v411, 3.0
      %v530 = vadd.f32 %v416, 3.0
      %v531 = vadd.f32 %v419, 3.0
      %v532 = vadd.f32 %v424, 3.0
      %v533 = vadd.f32 %v427, 3.0
      %v534 = vadd.f32 %v432, 3.0
      %v535 = vadd.f32 %v435, 3.0
      %v536 = vadd.f32 %v440, 3.0
      %v537 = vadd.f32 %v443, 3.0
      %v538 = vadd.f32 %v448, 3.0
      %v539 = vadd.f32 %v451, 3.0
      %v540 = vadd.f32 %v456, 3.0
      %v541 = vadd.f32 %v459, 3.0
      %v542 = vadd.f32 %v464, 3.0
      %v543 = vadd.f32 %v467, 3.0
      %v544 = vadd.f32 %v472, 3.0
      %v545 = vadd.f32 %v475, 3.0
      %v546 = vadd.f32 %v480, 3.0
      %v547 = vadd.f32 %v483, 3.0
      %v548 = vadd.f32 %v488, 3.0
      %v549 = vadd.f32 %v491, 3.0
      %v550 = vadd.f32 %v496, 3.0
      %v551 = vadd.f32 %v499, 3.0
      %v552 = vadd.f32 %v504, 3.0
      %v553 = vadd.f32 %v507, 3.0
      %v554 = vadd.f32 %v512, 3.0
      %v555 = vadd.f32 %v515, 3.0
      %v556 = vadd.f32 %v520, 3.0
      %v557 = vadd.f32 %v523, 3.0
      %v558 = vmax.f32 %v526, 0.0
      %v559 = vmax.f32 %v527, 0.0
      %v560 = vmax.f32 %v528, 0.0
      %v561 = vmax.f32 %v529, 0.0
      %v562 = vmax.f32 %v530, 0.0
      %v563 = vmax.f32 %v531, 0.0
      %v564 = vmax.f32 %v532, 0.0
      %v565 = vmax.f32 %v533, 0.0
      %v566 = vmax.f32 %v534, 0.0
      %v567 = vmax.f32 %v535, 0.0
      %v568 = vmax.f32 %v536, 0.0
      %v569 = vmax.f32 %v537, 0.0
      %v570 = vmax.f32 %v538, 0.0
      %v571 = vmax.f32 %v539, 0.0
      %v572 = vmax.f32 %v540, 0.0
      %v573 = vmax.f32 %v541, 0.0
      %v574 = vmax.f32 %v542, 0.0
      %v575 = vmax.f32 %v543, 0.0
      %v576 = vmax.f32 %v544, 0.0
      %v577 = vmax.f32 %v545, 0.0
      %v578 = vmax.f32 %v546, 0.0
      %v579 = vmax.f32 %v547, 0.0
      %v580 = vmax.f32 %v548, 0.0
      %v581 = vmax.f32 %v549, 0.0
      %v582 = vmax.f32 %v550, 0.0
      %v583 = vmax.f32 %v551, 0.0
      %v584 = vmax.f32 %v552, 0.0
      %v585 = vmax.f32 %v553, 0.0
      %v586 = vmax.f32 %v554, 0.0
      %v587 = vmax.f32 %v555, 0.0
      %v588 = vmax.f32 %v556, 0.0
      %v589 = vmax.f32 %v557, 0.0
      %v590 = vmin.f32 %v558, 6.0
      %v591 = vmin.f32 %v559, 6.0
      %v592 = vmin.f32 %v560, 6.0
      %v593 = vmin.f32 %v561, 6.0
      %v594 = vmin.f32 %v562, 6.0
      %v595 = vmin.f32 %v563, 6.0
      %v596 = vmin.f32 %v564, 6.0
      %v597 = vmin.f32 %v565, 6.0
      %v598 = vmin.f32 %v566, 6.0
      %v599 = vmin.f32 %v567, 6.0
      %v600 = vmin.f32 %v568, 6.0
      %v601 = vmin.f32 %v569, 6.0
      %v602 = vmin.f32 %v570, 6.0
      %v603 = vmin.f32 %v571, 6.0
      %v604 = vmin.f32 %v572, 6.0
      %v605 = vmin.f32 %v573, 6.0
      %v606 = vmin.f32 %v574, 6.0
      %v607 = vmin.f32 %v575, 6.0
      %v608 = vmin.f32 %v576, 6.0
      %v609 = vmin.f32 %v577, 6.0
      %v610 = vmin.f32 %v578, 6.0
      %v611 = vmin.f32 %v579, 6.0
      %v612 = vmin.f32 %v580, 6.0
      %v613 = vmin.f32 %v581, 6.0
      %v614 = vmin.f32 %v582, 6.0
      %v615 = vmin.f32 %v583, 6.0
      %v616 = vmin.f32 %v584, 6.0
      %v617 = vmin.f32 %v585, 6.0
      %v618 = vmin.f32 %v586, 6.0
      %v619 = vmin.f32 %v587, 6.0
      %v620 = vmin.f32 %v588, 6.0
      %v621 = vmin.f32 %v589, 6.0
      %v622 = vmul.f32 %v400, %v590
      %v623 = vmul.f32 %v403, %v591
      %v624 = vmul.f32 %v408, %v592
      %v625 = vmul.f32 %v411, %v593
      %v626 = vmul.f32 %v416, %v594
      %v627 = vmul.f32 %v419, %v595
      %v628 = vmul.f32 %v424, %v596
      %v629 = vmul.f32 %v427, %v597
      %v630 = vmul.f32 %v432, %v598
      %v631 = vmul.f32 %v435, %v599
      %v632 = vmul.f32 %v440, %v600
      %v633 = vmul.f32 %v443, %v601
      %v634 = vmul.f32 %v448, %v602
      %v635 = vmul.f32 %v451, %v603
      %v636 = vmul.f32 %v456, %v604
      %v637 = vmul.f32 %v459, %v605
      %v638 = vmul.f32 %v464, %v606
      %v639 = vmul.f32 %v467, %v607
      %v640 = vmul.f32 %v472, %v608
      %v641 = vmul.f32 %v475, %v609
      %v642 = vmul.f32 %v480, %v610
      %v643 = vmul.f32 %v483, %v611
      %v644 = vmul.f32 %v488, %v612
      %v645 = vmul.f32 %v491, %v613
      %v646 = vmul.f32 %v496, %v614
      %v647 = vmul.f32 %v499, %v615
      %v648 = vmul.f32 %v504, %v616
      %v649 = vmul.f32 %v507, %v617
      %v650 = vmul.f32 %v512, %v618
      %v651 = vmul.f32 %v515, %v619
      %v652 = vmul.f32 %v520, %v620
      %v653 = vmul.f32 %v523, %v621
      %v654 = vmul.f32 %v622, 0.16666667
      %v655 = vmul.f32 %v623, 0.16666667
      %v656 = vmul.f32 %v624, 0.16666667
      %v657 = vmul.f32 %v625, 0.16666667
      %v658 = vmul.f32 %v626, 0.16666667
      %v659 = vmul.f32 %v627, 0.16666667
      %v660 = vmul.f32 %v628, 0.16666667
      %v661 = vmul.f32 %v629, 0.16666667
      %v662 = vmul.f32 %v630, 0.16666667
      %v663 = vmul.f32 %v631, 0.16666667
      %v664 = vmul.f32 %v632, 0.16666667
      %v665 = vmul.f32 %v633, 0.16666667
      %v666 = vmul.f32 %v634, 0.16666667
      %v667 = vmul.f32 %v635, 0.16666667
      %v668 = vmul.f32 %v636, 0.16666667
      %v669 = vmul.f32 %v637, 0.16666667
      %v670 = vmul.f32 %v638, 0.16666667
      %v671 = vmul.f32 %v639, 0.16666667
      %v672 = vmul.f32 %v640, 0.16666667
      %v673 = vmul.f32 %v641, 0.16666667
      %v674 = vmul.f32 %v642, 0.16666667
      %v675 = vmul.f32 %v643, 0.16666667
      %v676 = vmul.f32 %v644, 0.16666667
      %v677 = vmul.f32 %v645, 0.16666667
      %v678 = vmul.f32 %v646, 0.16666667
      %v679 = vmul.f32 %v647, 0.16666667
      %v680 = vmul.f32 %v648, 0.16666667
      %v681 = vmul.f32 %v649, 0.16666667
      %v682 = vmul.f32 %v650, 0.16666667
      %v683 = vmul.f32 %v651, 0.16666667
      %v684 = vmul.f32 %v652, 0.16666667
      %v685 = vmul.f32 %v653, 0.16666667
      %v686 = vpack.c.bf16 %v655, %v654
      %v687 = vpack.c.bf16 %v657, %v656
      %v688 = vpack.c.bf16 %v659, %v658
      %v689 = vpack.c.bf16 %v661, %v660
      %v690 = vpack.c.bf16 %v663, %v662
      %v691 = vpack.c.bf16 %v665, %v664
      %v692 = vpack.c.bf16 %v667, %v666
      %v693 = vpack.c.bf16 %v669, %v668
      %v694 = vpack.c.bf16 %v671, %v670
      %v695 = vpack.c.bf16 %v673, %v672
      %v696 = vpack.c.bf16 %v675, %v674
      %v697 = vpack.c.bf16 %v677, %v676
      %v698 = vpack.c.bf16 %v679, %v678
      %v699 = vpack.c.bf16 %v681, %v680
      %v700 = vpack.c.bf16 %v683, %v682
      %v701 = vpack.c.bf16 %v685, %v684
      %v718 = vunpack.c.l.b16 %v686
      %v719 = vunpack.c.h.b16 %v686
      %v720 = vunpack.c.l.b16 %v687
      %v721 = vunpack.c.h.b16 %v687
      %v722 = vunpack.c.l.b16 %v688
      %v723 = vunpack.c.h.b16 %v688
      %v724 = vunpack.c.l.b16 %v689
      %v725 = vunpack.c.h.b16 %v689
      %v726 = vunpack.c.l.b16 %v690
      %v727 = vunpack.c.h.b16 %v690
      %v728 = vunpack.c.l.b16 %v691
      %v729 = vunpack.c.h.b16 %v691
      %v730 = vunpack.c.l.b16 %v692
      %v731 = vunpack.c.h.b16 %v692
      %v732 = vunpack.c.l.b16 %v693
      %v733 = vunpack.c.h.b16 %v693
      %v734 = vunpack.c.l.b16 %v694
      %v735 = vunpack.c.h.b16 %v694
      %v736 = vunpack.c.l.b16 %v695
      %v737 = vunpack.c.h.b16 %v695
      %v738 = vunpack.c.l.b16 %v696
      %v739 = vunpack.c.h.b16 %v696
      %v740 = vunpack.c.l.b16 %v697
      %v741 = vunpack.c.h.b16 %v697
      %v742 = vunpack.c.l.b16 %v698
      %v743 = vunpack.c.h.b16 %v698
      %v744 = vunpack.c.l.b16 %v699
      %v745 = vunpack.c.h.b16 %v699
      %v746 = vunpack.c.l.b16 %v700
      %v747 = vunpack.c.h.b16 %v700
      %v748 = vunpack.c.l.b16 %v701
      %v749 = vunpack.c.h.b16 %v701
      %v750 = vpack.c.b16 %v718, %v718
      %v751 = vpack.c.b16 %v719, %v719
      %v752 = vpack.c.b16 %v720, %v720
      %v753 = vpack.c.b16 %v721, %v721
      %v754 = vpack.c.b16 %v722, %v722
      %v755 = vpack.c.b16 %v723, %v723
      %v756 = vpack.c.b16 %v724, %v724
      %v757 = vpack.c.b16 %v725, %v725
      %v758 = vpack.c.b16 %v726, %v726
      %v759 = vpack.c.b16 %v727, %v727
      %v760 = vpack.c.b16 %v728, %v728
      %v761 = vpack.c.b16 %v729, %v729
      %v762 = vpack.c.b16 %v730, %v730
      %v763 = vpack.c.b16 %v731, %v731
      %v764 = vpack.c.b16 %v732, %v732
      %v765 = vpack.c.b16 %v733, %v733
      %v766 = vpack.c.b16 %v734, %v734
      %v767 = vpack.c.b16 %v735, %v735
      %v768 = vpack.c.b16 %v736, %v736
      %v769 = vpack.c.b16 %v737, %v737
      %v770 = vpack.c.b16 %v738, %v738
      %v771 = vpack.c.b16 %v739, %v739
      %v772 = vpack.c.b16 %v740, %v740
      %v773 = vpack.c.b16 %v741, %v741
      %v774 = vpack.c.b16 %v742, %v742
      %v775 = vpack.c.b16 %v743, %v743
      %v776 = vpack.c.b16 %v744, %v744
      %v777 = vpack.c.b16 %v745, %v745
      %v778 = vpack.c.b16 %v746, %v746
      %v779 = vpack.c.b16 %v747, %v747
      %v780 = vpack.c.b16 %v748, %v748
      %v781 = vpack.c.b16 %v749, %v749
      %vm814 = vcmask 125952
      %815 = vst.msk [vmem:[%s172] sm:$0xf] %vm814, %v750
      %816 = vst.msk [vmem:[%s172 + $0x4] sm:$0xf] %vm814, %v751
      %817 = vst.msk [vmem:[%s172 + $0x8] sm:$0xf] %vm814, %v752
      %818 = vst.msk [vmem:[%s172 + $0xc] sm:$0xf] %vm814, %v753
      %819 = vst.msk [vmem:[%s172 + $0x10] sm:$0xf] %vm814, %v754
      %820 = vst.msk [vmem:[%s172 + $0x14] sm:$0xf] %vm814, %v755
      %821 = vst.msk [vmem:[%s172 + $0x18] sm:$0xf] %vm814, %v756
      %822 = vst.msk [vmem:[%s172 + $0x1c] sm:$0xf] %vm814, %v757
      %823 = vst.msk [vmem:[%s172 + $0x20] sm:$0xf] %vm814, %v758
      %824 = vst.msk [vmem:[%s172 + $0x24] sm:$0xf] %vm814, %v759
      %825 = vst.msk [vmem:[%s172 + $0x28] sm:$0xf] %vm814, %v760
      %826 = vst.msk [vmem:[%s172 + $0x2c] sm:$0xf] %vm814, %v761
      %827 = vst.msk [vmem:[%s172 + $0x30] sm:$0xf] %vm814, %v762
      %828 = vst.msk [vmem:[%s172 + $0x34] sm:$0xf] %vm814, %v763
      %829 = vst.msk [vmem:[%s172 + $0x38] sm:$0xf] %vm814, %v764
      %830 = vst.msk [vmem:[%s172 + $0x3c] sm:$0xf] %vm814, %v765
      %831 = vst.msk [vmem:[%s172 + $0x40] sm:$0xf] %vm814, %v766
      %832 = vst.msk [vmem:[%s172 + $0x44] sm:$0xf] %vm814, %v767
      %833 = vst.msk [vmem:[%s172 + $0x48] sm:$0xf] %vm814, %v768
      %834 = vst.msk [vmem:[%s172 + $0x4c] sm:$0xf] %vm814, %v769
      %835 = vst.msk [vmem:[%s172 + $0x50] sm:$0xf] %vm814, %v770
      %836 = vst.msk [vmem:[%s172 + $0x54] sm:$0xf] %vm814, %v771
      %837 = vst.msk [vmem:[%s172 + $0x58] sm:$0xf] %vm814, %v772
      %838 = vst.msk [vmem:[%s172 + $0x5c] sm:$0xf] %vm814, %v773
      %839 = vst.msk [vmem:[%s172 + $0x60] sm:$0xf] %vm814, %v774
      %840 = vst.msk [vmem:[%s172 + $0x64] sm:$0xf] %vm814, %v775
      %841 = vst.msk [vmem:[%s172 + $0x68] sm:$0xf] %vm814, %v776
      %842 = vst.msk [vmem:[%s172 + $0x6c] sm:$0xf] %vm814, %v777
      %843 = vst.msk [vmem:[%s172 + $0x70] sm:$0xf] %vm814, %v778
      %844 = vst.msk [vmem:[%s172 + $0x74] sm:$0xf] %vm814, %v779
      %845 = vst.msk [vmem:[%s172 + $0x78] sm:$0xf] %vm814, %v780
      %846 = vst.msk [vmem:[%s172 + $0x7c] sm:$0xf] %vm814, %v781
      %s847 = smul.u32 32, %s14
      %p848 = scmp.lt.s32.totalorder %s847, 63
      %s849 = scalar_select %p848, %s847, 63
      %s850 = smul.addr %s849, 4
      %s851 = scalar_lea.vmem %s3, %s850
      // Predicated region
      $region33: #{deeplab_forward.16} parent=31 // pred_check
        %p852 = pneg %p100
      $region34: #{deeplab_forward.16} parent=31 // pred_check_branch
        %854 = sbr.rel (%p852) target = $region36
      $region35: #{deeplab_forward.16} parent=31 // pred_region
        %s855 = smul.u32 32, %s14
      $region36: #{deeplab_forward.16} parent=31 // pred_fallthru
        _
    $region32: #{deeplab_forward.16} parent=5 // pred_fallthru
      _
    %p856 = scmp.le.s32.totalorder 2, %s9
    // Predicated region
    $region37: #{deeplab_forward.16} parent=5 // pred_check
      %p857 = pneg %p856
    $region38: #{deeplab_forward.16} parent=5 // pred_check_branch
      %859 = sbr.rel (%p857) target = $region40
    $region39: #{deeplab_forward.16} parent=5 // pred_region
      %s860 = ssub.s32 %s9, 2
      // Predicated region
      $region41: #{deeplab_forward.16} parent=39 // pred_check
        %p861 = pneg %p106
      $region42: #{deeplab_forward.16} parent=39 // pred_check_branch
        %863 = sbr.rel (%p861) target = $region44
      $region43: #{deeplab_forward.16} parent=39 // pred_region
        %s864 = smul.u32 32, %s15
        %p865 = scmp.lt.s32.totalorder %s864, 63
        %s866 = scalar_select %p865, %s864, 63
        %s867 = smul.addr %s866, 4
        %s868 = scalar_lea.vmem %s3, %s867
      $region44: #{deeplab_forward.16} parent=39 // pred_fallthru
        _
    $region40: #{deeplab_forward.16} parent=5 // pred_fallthru
      _
  $region6: #{deeplab_forward.16} parent=0 // loop_footer
    %s13 = sadd.s32 1, %s9
  $region7: #{deeplab_forward.16} parent=0 // loop_footer_branch
    %8 = sbr.rel target = $region3
  $region8: #{deeplab_forward.16} parent=0 // loop_exit
    _

// kernel: deeplab_forward.17
$region0: #{deeplab_forward.17}
  #allocation0 [shape = 'u32[]', space=smem, size = 0x4, offset = 0x4, fixed_abs, tag = 'smem constant byte address 0x4 - core index']
  #allocation1 [shape = 'u32[144,128]{1,0:T(1,128)}', space=vmem, size = 0x12000, scoped, tag = 'internal scratch']
  %s0 = inlined_call_operand.vmem [shape: bf16[128,144], index: 0, kind: input, shape index: {}]
  %s1 = inlined_call_operand.vmem [shape: bf16[144,32], index: 1, kind: input, shape index: {}]
  %s2 = inlined_call_operand.vmem [shape: f32[1,32], index: 2, kind: input, shape index: {}]
  %s3 = inlined_call_operand.vmem [shape: bf16[128,32], index: 3, kind: output, shape index: {}]
  %s4 = sld [smem:[#allocation0]]
  $region22: #{deeplab_forward.17} parent=0
    _
  %s6 = ssub.s32 1, %s4
  %s7 = scalar_select 0, %s6, %s4
  // Predicated region
  $region2: #{deeplab_forward.17} parent=0 // pred_check
    _
  $region3: #{deeplab_forward.17} parent=0 // pred_check_branch
    %9 = sbr.rel (0) target = $region5
  $region4: #{deeplab_forward.17} parent=0 // pred_region
    _
  $region5: #{deeplab_forward.17} parent=0 // pred_fallthru
    _
  // Predicated region
  $region6: #{deeplab_forward.17} parent=0 // pred_check
    _
  $region7: #{deeplab_forward.17} parent=0 // pred_check_branch
    %11 = sbr.rel (0) target = $region9
  $region8: #{deeplab_forward.17} parent=0 // pred_region
    _
  $region9: #{deeplab_forward.17} parent=0 // pred_fallthru
    _
  // Predicated region
  $region10: #{deeplab_forward.17} parent=0 // pred_check
    _
  $region11: #{deeplab_forward.17} parent=0 // pred_check_branch
    %13 = sbr.rel (0) target = $region13
  $region12: #{deeplab_forward.17} parent=0 // pred_region
    _
  $region13: #{deeplab_forward.17} parent=0 // pred_fallthru
    _
  %v15 = vld [vmem:[%s0] sm:$0xff]
  %v16 = vld [vmem:[%s0 + $0x8] sm:$0xff]
  %v17 = vld [vmem:[%s0 + $0x10] sm:$0xff]
  %v18 = vld [vmem:[%s0 + $0x18] sm:$0xff]
  %v19 = vld [vmem:[%s0 + $0x20] sm:$0xff]
  %v20 = vld [vmem:[%s0 + $0x28] sm:$0xff]
  %v21 = vld [vmem:[%s0 + $0x30] sm:$0xff]
  %v22 = vld [vmem:[%s0 + $0x38] sm:$0xff]
  %v23 = vld [vmem:[%s0 + $0x40] sm:$0xff]
  %v24 = vld [vmem:[%s0 + $0x48] sm:$0xff]
  %v25 = vld [vmem:[%s0 + $0x50] sm:$0xff]
  %v26 = vld [vmem:[%s0 + $0x58] sm:$0xff]
  %v27 = vld [vmem:[%s0 + $0x60] sm:$0xff]
  %v28 = vld [vmem:[%s0 + $0x68] sm:$0xff]
  %v29 = vld [vmem:[%s0 + $0x70] sm:$0xff]
  %v30 = vld [vmem:[%s0 + $0x78] sm:$0xff]
  %v31 = vld [vmem:[%s1] sm:$0xf]
  %v32 = vld [vmem:[%s1 + $0x4] sm:$0xf]
  %v33 = vld [vmem:[%s1 + $0x8] sm:$0xf]
  %v34 = vld [vmem:[%s1 + $0xc] sm:$0xf]
  %v35 = vld [vmem:[%s1 + $0x10] sm:$0xf]
  %v36 = vld [vmem:[%s1 + $0x14] sm:$0xf]
  %v37 = vld [vmem:[%s1 + $0x18] sm:$0xf]
  %v38 = vld [vmem:[%s1 + $0x1c] sm:$0xf]
  %v39 = vld [vmem:[%s1 + $0x20] sm:$0xf]
  %v40 = vld [vmem:[%s1 + $0x24] sm:$0xf]
  %v41 = vld [vmem:[%s1 + $0x28] sm:$0xf]
  %v42 = vld [vmem:[%s1 + $0x2c] sm:$0xf]
  %v43 = vld [vmem:[%s1 + $0x30] sm:$0xf]
  %v44 = vld [vmem:[%s1 + $0x34] sm:$0xf]
  %v45 = vld [vmem:[%s1 + $0x38] sm:$0xf]
  %v46 = vld [vmem:[%s1 + $0x3c] sm:$0xf]
  %v47 = vld [vmem:[%s1 + $0x40] sm:$0xf]
  %v48 = vld [vmem:[%s1 + $0x44] sm:$0xf]
  %v49 = vld [vmem:[%s2] sm:$0x1]
  %v51 = vlaneseq
  %v52 = vshrl.u32 %v51, 7
  %v53 = vsub.s32 0, %v52
  %v54 = vrot.slane %v49, %v53
  %v72 = vunpack.c.l.b16 %v15
  %v73 = vunpack.c.h.b16 %v15
  %v74 = vunpack.c.l.b16 %v16
  %v75 = vunpack.c.h.b16 %v16
  %v76 = vunpack.c.l.b16 %v17
  %v77 = vunpack.c.h.b16 %v17
  %v78 = vunpack.c.l.b16 %v18
  %v79 = vunpack.c.h.b16 %v18
  %v80 = vunpack.c.l.b16 %v19
  %v81 = vunpack.c.h.b16 %v19
  %v82 = vunpack.c.l.b16 %v20
  %v83 = vunpack.c.h.b16 %v20
  %v84 = vunpack.c.l.b16 %v21
  %v85 = vunpack.c.h.b16 %v21
  %v86 = vunpack.c.l.b16 %v22
  %v87 = vunpack.c.h.b16 %v22
  %v88 = vunpack.c.l.b16 %v23
  %v89 = vunpack.c.h.b16 %v23
  %v90 = vunpack.c.l.b16 %v24
  %v91 = vunpack.c.h.b16 %v24
  %v92 = vunpack.c.l.b16 %v25
  %v93 = vunpack.c.h.b16 %v25
  %v94 = vunpack.c.l.b16 %v26
  %v95 = vunpack.c.h.b16 %v26
  %v96 = vunpack.c.l.b16 %v27
  %v97 = vunpack.c.h.b16 %v27
  %v98 = vunpack.c.l.b16 %v28
  %v99 = vunpack.c.h.b16 %v28
  %v100 = vunpack.c.l.b16 %v29
  %v101 = vunpack.c.h.b16 %v29
  %v102 = vunpack.c.l.b16 %v30
  %v103 = vunpack.c.h.b16 %v30
  %v104 = vpack.c.b16 %v74, %v72
  %v105 = vpack.c.b16 %v75, %v73
  %v106 = vpack.c.b16 %v78, %v76
  %v107 = vpack.c.b16 %v79, %v77
  %v108 = vpack.c.b16 %v82, %v80
  %v109 = vpack.c.b16 %v83, %v81
  %v110 = vpack.c.b16 %v86, %v84
  %v111 = vpack.c.b16 %v87, %v85
  %v112 = vpack.c.b16 %v90, %v88
  %v113 = vpack.c.b16 %v91, %v89
  %v114 = vpack.c.b16 %v94, %v92
  %v115 = vpack.c.b16 %v95, %v93
  %v116 = vpack.c.b16 %v98, %v96
  %v117 = vpack.c.b16 %v99, %v97
  %v118 = vpack.c.b16 %v102, %v100
  %v119 = vpack.c.b16 %v103, %v101
  %v146 = vunpack.c.l.b16 %v31
  %v147 = vunpack.c.l.b16 %v32
  %v148 = vunpack.c.l.b16 %v33
  %v149 = vunpack.c.l.b16 %v34
  %v150 = vunpack.c.l.b16 %v35
  %v151 = vunpack.c.l.b16 %v36
  %v152 = vunpack.c.l.b16 %v37
  %v153 = vunpack.c.l.b16 %v38
  %v154 = vunpack.c.l.b16 %v39
  %v155 = vunpack.c.l.b16 %v40
  %v156 = vunpack.c.l.b16 %v41
  %v157 = vunpack.c.l.b16 %v42
  %v158 = vunpack.c.l.b16 %v43
  %v159 = vunpack.c.l.b16 %v44
  %v160 = vunpack.c.l.b16 %v45
  %v161 = vunpack.c.l.b16 %v46
  %v162 = vunpack.c.l.b16 %v47
  %v163 = vunpack.c.l.b16 %v48
  %v164 = vpack.c.b16 %v147, %v146
  %v165 = vpack.c.b16 %v149, %v148
  %v166 = vpack.c.b16 %v151, %v150
  %v167 = vpack.c.b16 %v153, %v152
  %v168 = vpack.c.b16 %v155, %v154
  %v169 = vpack.c.b16 %v157, %v156
  %v170 = vpack.c.b16 %v159, %v158
  %v171 = vpack.c.b16 %v161, %v160
  %v172 = vpack.c.b16 %v163, %v162
  %vm182 = vcmask 130048
  %v184 = vsel %vm182, %v105, 0
  %v187 = vsel %vm182, %v107, 0
  %v190 = vsel %vm182, %v109, 0
  %v193 = vsel %vm182, %v111, 0
  %v196 = vsel %vm182, %v113, 0
  %v199 = vsel %vm182, %v115, 0
  %v202 = vsel %vm182, %v117, 0
  %v205 = vsel %vm182, %v119, 0
  %207 = vmatprep.subr.bf16.mxu0 0
  %208 = vmatpush1.bf16.msra.mxu0 %v164
  %209 = vmatprep.subr.bf16.mxu0 0
  %210 = vmatpush1.bf16.msra.mxu0 %v165
  %211 = vmatprep.subr.bf16.mxu0 0
  %212 = vmatpush1.bf16.msra.mxu0 %v166
  %213 = vmatprep.subr.bf16.mxu0 0
  %214 = vmatpush1.bf16.msra.mxu0 %v167
  %215 = vmatprep.subr.bf16.mxu0 0
  %216 = vmatpush1.bf16.msra.mxu0 %v168
  %217 = vmatprep.subr.bf16.mxu0 0
  %218 = vmatpush1.bf16.msra.mxu0 %v169
  %219 = vmatprep.subr.bf16.mxu0 0
  %220 = vmatpush1.bf16.msra.mxu0 %v170
  %221 = vmatprep.subr.bf16.mxu0 0
  %222 = vmatpush1.bf16.msra.mxu0 %v171
  %223 = vmatprep.subr.bf16.mxu0 0
  %224 = vmatpush1.bf16.msra.mxu0 %v172
  %225 = vmatprep.subr.bf16.mxu0 0
  %226 = vmatpush1.bf16.msra.mxu0 0
  %227 = vmatprep.subr.bf16.mxu0 0
  %228 = vmatpush1.bf16.msra.mxu0 0
  %229 = vmatprep.subr.bf16.mxu0 0
  %230 = vmatpush1.bf16.msra.mxu0 0
  %231 = vmatprep.subr.bf16.mxu0 0
  %232 = vmatpush1.bf16.msra.mxu0 0
  %233 = vmatprep.subr.bf16.mxu0 0
  %234 = vmatpush1.bf16.msra.mxu0 0
  %235 = vmatprep.subr.bf16.mxu0 0
  %236 = vmatpush1.bf16.msra.mxu0 0
  %237 = vmatprep.subr.bf16.mxu0 0
  %238 = vmatpush1.bf16.msra.mxu0 0
  %239 = vmatprep.mubr.bf16.mxu0 %v184
  %240 = vmatmul.mubr.bf16.gmra.mrb[0].mxu0 %v104
  %v241 = vpop.f32.mrb[0].mxu0
  %v242 = vadd.f32 %v54, %v241
  %v243 = vpop.f32.mrb[0].mxu0
  %v244 = vpop.f32.mrb[0].mxu0
  %v245 = vadd.f32 %v54, %v244
  %v246 = vpop.f32.mrb[0].mxu0
  %247 = vmatprep.mubr.bf16.mxu0 %v187
  %248 = vmatmul.mubr.bf16.gmra.mrb[0].mxu0 %v106
  %v249 = vpop.f32.mrb[0].mxu0
  %v250 = vadd.f32 %v54, %v249
  %v251 = vpop.f32.mrb[0].mxu0
  %v252 = vpop.f32.mrb[0].mxu0
  %v253 = vadd.f32 %v54, %v252
  %v254 = vpop.f32.mrb[0].mxu0
  %255 = vmatprep.mubr.bf16.mxu0 %v190
  %256 = vmatmul.mubr.bf16.gmra.mrb[0].mxu0 %v108
  %v257 = vpop.f32.mrb[0].mxu0
  %v258 = vadd.f32 %v54, %v257
  %v259 = vpop.f32.mrb[0].mxu0
  %v260 = vpop.f32.mrb[0].mxu0
  %v261 = vadd.f32 %v54, %v260
  %v262 = vpop.f32.mrb[0].mxu0
  %263 = vmatprep.mubr.bf16.mxu0 %v193
  %264 = vmatmul.mubr.bf16.gmra.mrb[0].mxu0 %v110
  %v265 = vpop.f32.mrb[0].mxu0
  %v266 = vadd.f32 %v54, %v265
  %v267 = vpop.f32.mrb[0].mxu0
  %v268 = vpop.f32.mrb[0].mxu0
  %v269 = vadd.f32 %v54, %v268
  %v270 = vpop.f32.mrb[0].mxu0
  %271 = vmatprep.mubr.bf16.mxu0 %v196
  %272 = vmatmul.mubr.bf16.gmra.mrb[0].mxu0 %v112
  %v273 = vpop.f32.mrb[0].mxu0
  %v274 = vadd.f32 %v54, %v273
  %v275 = vpop.f32.mrb[0].mxu0
  %v276 = vpop.f32.mrb[0].mxu0
  %v277 = vadd.f32 %v54, %v276
  %v278 = vpop.f32.mrb[0].mxu0
  %279 = vmatprep.mubr.bf16.mxu0 %v199
  %280 = vmatmul.mubr.bf16.gmra.mrb[0].mxu0 %v114
  %v281 = vpop.f32.mrb[0].mxu0
  %v282 = vadd.f32 %v54, %v281
  %v283 = vpop.f32.mrb[0].mxu0
  %v284 = vpop.f32.mrb[0].mxu0
  %v285 = vadd.f32 %v54, %v284
  %v286 = vpop.f32.mrb[0].mxu0
  %287 = vmatprep.mubr.bf16.mxu0 %v202
  %288 = vmatmul.mubr.bf16.gmra.mrb[0].mxu0 %v116
  %v289 = vpop.f32.mrb[0].mxu0
  %v290 = vadd.f32 %v54, %v289
  %v291 = vpop.f32.mrb[0].mxu0
  %v292 = vpop.f32.mrb[0].mxu0
  %v293 = vadd.f32 %v54, %v292
  %v294 = vpop.f32.mrb[0].mxu0
  %295 = vmatprep.mubr.bf16.mxu0 %v205
  %296 = vmatmul.mubr.bf16.gmra.mrb[0].mxu0 %v118
  %v297 = vpop.f32.mrb[0].mxu0
  %v298 = vadd.f32 %v54, %v297
  %v299 = vpop.f32.mrb[0].mxu0
  %v300 = vpop.f32.mrb[0].mxu0
  %v301 = vadd.f32 %v54, %v300
  %v302 = vpop.f32.mrb[0].mxu0
  %303 = vdwg.mxu0
  %v304 = vadd.f32 %v242, 3.0
  %v305 = vadd.f32 %v245, 3.0
  %v306 = vadd.f32 %v250, 3.0
  %v307 = vadd.f32 %v253, 3.0
  %v308 = vadd.f32 %v258, 3.0
  %v309 = vadd.f32 %v261, 3.0
  %v310 = vadd.f32 %v266, 3.0
  %v311 = vadd.f32 %v269, 3.0
  %v312 = vadd.f32 %v274, 3.0
  %v313 = vadd.f32 %v277, 3.0
  %v314 = vadd.f32 %v282, 3.0
  %v315 = vadd.f32 %v285, 3.0
  %v316 = vadd.f32 %v290, 3.0
  %v317 = vadd.f32 %v293, 3.0
  %v318 = vadd.f32 %v298, 3.0
  %v319 = vadd.f32 %v301, 3.0
  %v320 = vmax.f32 %v304, 0.0
  %v321 = vmax.f32 %v305, 0.0
  %v322 = vmax.f32 %v306, 0.0
  %v323 = vmax.f32 %v307, 0.0
  %v324 = vmax.f32 %v308, 0.0
  %v325 = vmax.f32 %v309, 0.0
  %v326 = vmax.f32 %v310, 0.0
  %v327 = vmax.f32 %v311, 0.0
  %v328 = vmax.f32 %v312, 0.0
  %v329 = vmax.f32 %v313, 0.0
  %v330 = vmax.f32 %v314, 0.0
  %v331 = vmax.f32 %v315, 0.0
  %v332 = vmax.f32 %v316, 0.0
  %v333 = vmax.f32 %v317, 0.0
  %v334 = vmax.f32 %v318, 0.0
  %v335 = vmax.f32 %v319, 0.0
  %v336 = vmin.f32 %v320, 6.0
  %v337 = vmin.f32 %v321, 6.0
  %v338 = vmin.f32 %v322, 6.0
  %v339 = vmin.f32 %v323, 6.0
  %v340 = vmin.f32 %v324, 6.0
  %v341 = vmin.f32 %v325, 6.0
  %v342 = vmin.f32 %v326, 6.0
  %v343 = vmin.f32 %v327, 6.0
  %v344 = vmin.f32 %v328, 6.0
  %v345 = vmin.f32 %v329, 6.0
  %v346 = vmin.f32 %v330, 6.0
  %v347 = vmin.f32 %v331, 6.0
  %v348 = vmin.f32 %v332, 6.0
  %v349 = vmin.f32 %v333, 6.0
  %v350 = vmin.f32 %v334, 6.0
  %v351 = vmin.f32 %v335, 6.0
  %v352 = vmul.f32 %v242, %v336
  %v353 = vmul.f32 %v245, %v337
  %v354 = vmul.f32 %v250, %v338
  %v355 = vmul.f32 %v253, %v339
  %v356 = vmul.f32 %v258, %v340
  %v357 = vmul.f32 %v261, %v341
  %v358 = vmul.f32 %v266, %v342
  %v359 = vmul.f32 %v269, %v343
  %v360 = vmul.f32 %v274, %v344
  %v361 = vmul.f32 %v277, %v345
  %v362 = vmul.f32 %v282, %v346
  %v363 = vmul.f32 %v285, %v347
  %v364 = vmul.f32 %v290, %v348
  %v365 = vmul.f32 %v293, %v349
  %v366 = vmul.f32 %v298, %v350
  %v367 = vmul.f32 %v301, %v351
  %v368 = vmul.f32 %v352, 0.16666667
  %v369 = vmul.f32 %v353, 0.16666667
  %v370 = vmul.f32 %v354, 0.16666667
  %v371 = vmul.f32 %v355, 0.16666667
  %v372 = vmul.f32 %v356, 0.16666667
  %v373 = vmul.f32 %v357, 0.16666667
  %v374 = vmul.f32 %v358, 0.16666667
  %v375 = vmul.f32 %v359, 0.16666667
  %v376 = vmul.f32 %v360, 0.16666667
  %v377 = vmul.f32 %v361, 0.16666667
  %v378 = vmul.f32 %v362, 0.16666667
  %v379 = vmul.f32 %v363, 0.16666667
  %v380 = vmul.f32 %v364, 0.16666667
  %v381 = vmul.f32 %v365, 0.16666667
  %v382 = vmul.f32 %v366, 0.16666667
  %v383 = vmul.f32 %v367, 0.16666667
  %v384 = vpack.c.bf16 %v369, %v368
  %v385 = vpack.c.bf16 %v371, %v370
  %v386 = vpack.c.bf16 %v373, %v372
  %v387 = vpack.c.bf16 %v375, %v374
  %v388 = vpack.c.bf16 %v377, %v376
  %v389 = vpack.c.bf16 %v379, %v378
  %v390 = vpack.c.bf16 %v381, %v380
  %v391 = vpack.c.bf16 %v383, %v382
  %v400 = vunpack.c.l.b16 %v384
  %v401 = vunpack.c.h.b16 %v384
  %v402 = vunpack.c.l.b16 %v385
  %v403 = vunpack.c.h.b16 %v385
  %v404 = vunpack.c.l.b16 %v386
  %v405 = vunpack.c.h.b16 %v386
  %v406 = vunpack.c.l.b16 %v387
  %v407 = vunpack.c.h.b16 %v387
  %v408 = vunpack.c.l.b16 %v388
  %v409 = vunpack.c.h.b16 %v388
  %v410 = vunpack.c.l.b16 %v389
  %v411 = vunpack.c.h.b16 %v389
  %v412 = vunpack.c.l.b16 %v390
  %v413 = vunpack.c.h.b16 %v390
  %v414 = vunpack.c.l.b16 %v391
  %v415 = vunpack.c.h.b16 %v391
  %v416 = vpack.c.b16 %v400, %v400
  %v417 = vpack.c.b16 %v401, %v401
  %v418 = vpack.c.b16 %v402, %v402
  %v419 = vpack.c.b16 %v403, %v403
  %v420 = vpack.c.b16 %v404, %v404
  %v421 = vpack.c.b16 %v405, %v405
  %v422 = vpack.c.b16 %v406, %v406
  %v423 = vpack.c.b16 %v407, %v407
  %v424 = vpack.c.b16 %v408, %v408
  %v425 = vpack.c.b16 %v409, %v409
  %v426 = vpack.c.b16 %v410, %v410
  %v427 = vpack.c.b16 %v411, %v411
  %v428 = vpack.c.b16 %v412, %v412
  %v429 = vpack.c.b16 %v413, %v413
  %v430 = vpack.c.b16 %v414, %v414
  %v431 = vpack.c.b16 %v415, %v415
  %vm448 = vcmask 257024
  %449 = vst.msk [vmem:[%s3] sm:$0xf] %vm448, %v416
  %450 = vst.msk [vmem:[%s3 + $0x4] sm:$0xf] %vm448, %v417
  %451 = vst.msk [vmem:[%s3 + $0x8] sm:$0xf] %vm448, %v418
  %452 = vst.msk [vmem:[%s3 + $0xc] sm:$0xf] %vm448, %v419
  %453 = vst.msk [vmem:[%s3 + $0x10] sm:$0xf] %vm448, %v420
  %454 = vst.msk [vmem:[%s3 + $0x14] sm:$0xf] %vm448, %v421
  %455 = vst.msk [vmem:[%s3 + $0x18] sm:$0xf] %vm448, %v422
  %456 = vst.msk [vmem:[%s3 + $0x1c] sm:$0xf] %vm448, %v423
  %457 = vst.msk [vmem:[%s3 + $0x20] sm:$0xf] %vm448, %v424
  %458 = vst.msk [vmem:[%s3 + $0x24] sm:$0xf] %vm448, %v425
  %459 = vst.msk [vmem:[%s3 + $0x28] sm:$0xf] %vm448, %v426
  %460 = vst.msk [vmem:[%s3 + $0x2c] sm:$0xf] %vm448, %v427
  %461 = vst.msk [vmem:[%s3 + $0x30] sm:$0xf] %vm448, %v428
  %462 = vst.msk [vmem:[%s3 + $0x34] sm:$0xf] %vm448, %v429
  %463 = vst.msk [vmem:[%s3 + $0x38] sm:$0xf] %vm448, %v430
  %464 = vst.msk [vmem:[%s3 + $0x3c] sm:$0xf] %vm448, %v431
  // Predicated region
  $region14: #{deeplab_forward.17} parent=0 // pred_check
    _
  $region15: #{deeplab_forward.17} parent=0 // pred_check_branch
    %466 = sbr.rel (0) target = $region17
  $region16: #{deeplab_forward.17} parent=0 // pred_region
    _
  $region17: #{deeplab_forward.17} parent=0 // pred_fallthru
    _
  // Predicated region
  $region18: #{deeplab_forward.17} parent=0 // pred_check
    _
  $region19: #{deeplab_forward.17} parent=0 // pred_check_branch
    %468 = sbr.rel (0) target = $region21
  $region20: #{deeplab_forward.17} parent=0 // pred_region
    _
  $region21: #{deeplab_forward.17} parent=0 // pred_fallthru
    _

// kernel: deeplab_forward.18
$region0: #{deeplab_forward.18}
  #allocation0 [shape = 'u32[]', space=smem, size = 0x4, offset = 0x4, fixed_abs, tag = 'smem constant byte address 0x4 - core index']
  #allocation1 [shape = 'u32[144,128]{1,0:T(1,128)}', space=vmem, size = 0x12000, scoped, tag = 'internal scratch']
  %s0 = inlined_call_operand.vmem [shape: bf16[32,288], index: 0, kind: input, shape index: {}]
  %s1 = inlined_call_operand.vmem [shape: bf16[288,64], index: 1, kind: input, shape index: {}]
  %s2 = inlined_call_operand.vmem [shape: f32[1,64], index: 2, kind: input, shape index: {}]
  %s3 = inlined_call_operand.vmem [shape: bf16[32,64], index: 3, kind: output, shape index: {}]
  %s4 = sld [smem:[#allocation0]]
  $region22: #{deeplab_forward.18} parent=0
    _
  %s6 = ssub.s32 1, %s4
  %s7 = scalar_select 0, %s6, %s4
  // Predicated region
  $region2: #{deeplab_forward.18} parent=0 // pred_check
    _
  $region3: #{deeplab_forward.18} parent=0 // pred_check_branch
    %9 = sbr.rel (0) target = $region5
  $region4: #{deeplab_forward.18} parent=0 // pred_region
    _
  $region5: #{deeplab_forward.18} parent=0 // pred_fallthru
    _
  // Predicated region
  $region6: #{deeplab_forward.18} parent=0 // pred_check
    _
  $region7: #{deeplab_forward.18} parent=0 // pred_check_branch
    %11 = sbr.rel (0) target = $region9
  $region8: #{deeplab_forward.18} parent=0 // pred_region
    _
  $region9: #{deeplab_forward.18} parent=0 // pred_fallthru
    _
  // Predicated region
  $region10: #{deeplab_forward.18} parent=0 // pred_check
    _
  $region11: #{deeplab_forward.18} parent=0 // pred_check_branch
    %13 = sbr.rel (0) target = $region13
  $region12: #{deeplab_forward.18} parent=0 // pred_region
    _
  $region13: #{deeplab_forward.18} parent=0 // pred_fallthru
    _
  %v15 = vld [vmem:[%s0] sm:$0xff]
  %v16 = vld [vmem:[%s0 + $0x8] sm:$0xf]
  %v17 = vld [vmem:[%s0 + $0xc] sm:$0xff]
  %v18 = vld [vmem:[%s0 + $0x14] sm:$0xf]
  %v19 = vld [vmem:[%s0 + $0x18] sm:$0xff]
  %v20 = vld [vmem:[%s0 + $0x20] sm:$0xf]
  %v21 = vld [vmem:[%s0 + $0x24] sm:$0xff]
  %v22 = vld [vmem:[%s0 + $0x2c] sm:$0xf]
  %v23 = vld [vmem:[%s1] sm:$0xf]
  %v24 = vld [vmem:[%s1 + $0x4] sm:$0xf]
  %v25 = vld [vmem:[%s1 + $0x8] sm:$0xf]
  %v26 = vld [vmem:[%s1 + $0xc] sm:$0xf]
  %v27 = vld [vmem:[%s1 + $0x10] sm:$0xf]
  %v28 = vld [vmem:[%s1 + $0x14] sm:$0xf]
  %v29 = vld [vmem:[%s1 + $0x18] sm:$0xf]
  %v30 = vld [vmem:[%s1 + $0x1c] sm:$0xf]
  %v31 = vld [vmem:[%s1 + $0x20] sm:$0xf]
  %v32 = vld [vmem:[%s1 + $0x24] sm:$0xf]
  %v33 = vld [vmem:[%s1 + $0x28] sm:$0xf]
  %v34 = vld [vmem:[%s1 + $0x2c] sm:$0xf]
  %v35 = vld [vmem:[%s1 + $0x30] sm:$0xf]
  %v36 = vld [vmem:[%s1 + $0x34] sm:$0xf]
  %v37 = vld [vmem:[%s1 + $0x38] sm:$0xf]
  %v38 = vld [vmem:[%s1 + $0x3c] sm:$0xf]
  %v39 = vld [vmem:[%s1 + $0x40] sm:$0xf]
  %v40 = vld [vmem:[%s1 + $0x44] sm:$0xf]
  %v41 = vld [vmem:[%s1 + $0x48] sm:$0xf]
  %v42 = vld [vmem:[%s1 + $0x4c] sm:$0xf]
  %v43 = vld [vmem:[%s1 + $0x50] sm:$0xf]
  %v44 = vld [vmem:[%s1 + $0x54] sm:$0xf]
  %v45 = vld [vmem:[%s1 + $0x58] sm:$0xf]
  %v46 = vld [vmem:[%s1 + $0x5c] sm:$0xf]
  %v47 = vld [vmem:[%s1 + $0x60] sm:$0xf]
  %v48 = vld [vmem:[%s1 + $0x64] sm:$0xf]
  %v49 = vld [vmem:[%s1 + $0x68] sm:$0xf]
  %v50 = vld [vmem:[%s1 + $0x6c] sm:$0xf]
  %v51 = vld [vmem:[%s1 + $0x70] sm:$0xf]
  %v52 = vld [vmem:[%s1 + $0x74] sm:$0xf]
  %v53 = vld [vmem:[%s1 + $0x78] sm:$0xf]
  %v54 = vld [vmem:[%s1 + $0x7c] sm:$0xf]
  %v55 = vld [vmem:[%s1 + $0x80] sm:$0xf]
  %v56 = vld [vmem:[%s1 + $0x84] sm:$0xf]
  %v57 = vld [vmem:[%s1 + $0x88] sm:$0xf]
  %v58 = vld [vmem:[%s1 + $0x8c] sm:$0xf]
  %v59 = vld [vmem:[%s2] sm:$0x1]
  %v61 = vlaneseq
  %v62 = vshrl.u32 %v61, 7
  %v63 = vsub.s32 0, %v62
  %v64 = vrot.slane %v59, %v63
  %v74 = vunpack.c.l.b16 %v15
  %v75 = vunpack.c.h.b16 %v15
  %v76 = vunpack.c.l.b16 %v16
  %v77 = vunpack.c.l.b16 %v17
  %v78 = vunpack.c.h.b16 %v17
  %v79 = vunpack.c.l.b16 %v18
  %v80 = vunpack.c.l.b16 %v19
  %v81 = vunpack.c.h.b16 %v19
  %v82 = vunpack.c.l.b16 %v20
  %v83 = vunpack.c.l.b16 %v21
  %v84 = vunpack.c.h.b16 %v21
  %v85 = vunpack.c.l.b16 %v22
  %v86 = vpack.c.b16 %v77, %v74
  %v87 = vpack.c.b16 %v78, %v75
  %v88 = vpack.c.b16 %v79, %v76
  %v89 = vpack.c.b16 %v83, %v80
  %v90 = vpack.c.b16 %v84, %v81
  %v91 = vpack.c.b16 %v85, %v82
  %v132 = vunpack.c.l.b16 %v23
  %v133 = vunpack.c.l.b16 %v24
  %v134 = vunpack.c.l.b16 %v25
  %v135 = vunpack.c.l.b16 %v26
  %v136 = vunpack.c.l.b16 %v27
  %v137 = vunpack.c.l.b16 %v28
  %v138 = vunpack.c.l.b16 %v29
  %v139 = vunpack.c.l.b16 %v30
  %v140 = vunpack.c.l.b16 %v31
  %v141 = vunpack.c.l.b16 %v32
  %v142 = vunpack.c.l.b16 %v33
  %v143 = vunpack.c.l.b16 %v34
  %v144 = vunpack.c.l.b16 %v35
  %v145 = vunpack.c.l.b16 %v36
  %v146 = vunpack.c.l.b16 %v37
  %v147 = vunpack.c.l.b16 %v38
  %v148 = vunpack.c.l.b16 %v39
  %v149 = vunpack.c.l.b16 %v40
  %v150 = vunpack.c.l.b16 %v41
  %v151 = vunpack.c.l.b16 %v42
  %v152 = vunpack.c.l.b16 %v43
  %v153 = vunpack.c.l.b16 %v44
  %v154 = vunpack.c.l.b16 %v45
  %v155 = vunpack.c.l.b16 %v46
  %v156 = vunpack.c.l.b16 %v47
  %v157 = vunpack.c.l.b16 %v48
  %v158 = vunpack.c.l.b16 %v49
  %v159 = vunpack.c.l.b16 %v50
  %v160 = vunpack.c.l.b16 %v51
  %v161 = vunpack.c.l.b16 %v52
  %v162 = vunpack.c.l.b16 %v53
  %v163 = vunpack.c.l.b16 %v54
  %v164 = vunpack.c.l.b16 %v55
  %v165 = vunpack.c.l.b16 %v56
  %v166 = vunpack.c.l.b16 %v57
  %v167 = vunpack.c.l.b16 %v58
  %v168 = vpack.c.b16 %v133, %v132
  %v169 = vpack.c.b16 %v135, %v134
  %v170 = vpack.c.b16 %v137, %v136
  %v171 = vpack.c.b16 %v139, %v138
  %v172 = vpack.c.b16 %v141, %v140
  %v173 = vpack.c.b16 %v143, %v142
  %v174 = vpack.c.b16 %v145, %v144
  %v175 = vpack.c.b16 %v147, %v146
  %v176 = vpack.c.b16 %v149, %v148
  %v177 = vpack.c.b16 %v151, %v150
  %v178 = vpack.c.b16 %v153, %v152
  %v179 = vpack.c.b16 %v155, %v154
  %v180 = vpack.c.b16 %v157, %v156
  %v181 = vpack.c.b16 %v159, %v158
  %v182 = vpack.c.b16 %v161, %v160
  %v183 = vpack.c.b16 %v163, %v162
  %v184 = vpack.c.b16 %v165, %v164
  %v185 = vpack.c.b16 %v167, %v166
  %vm204 = vcmask 261120
  %v206 = vsel %vm204, %v88, 0
  %v209 = vsel %vm204, %v91, 0
  %211 = vmatprep.subr.bf16.mxu0 0
  %212 = vmatpush1.bf16.msra.mxu0 %v168
  %213 = vmatprep.subr.bf16.mxu0 0
  %214 = vmatpush1.bf16.msra.mxu0 %v169
  %215 = vmatprep.subr.bf16.mxu0 0
  %216 = vmatpush1.bf16.msra.mxu0 %v170
  %217 = vmatprep.subr.bf16.mxu0 0
  %218 = vmatpush1.bf16.msra.mxu0 %v171
  %219 = vmatprep.subr.bf16.mxu0 0
  %220 = vmatpush1.bf16.msra.mxu0 %v172
  %221 = vmatprep.subr.bf16.mxu0 0
  %222 = vmatpush1.bf16.msra.mxu0 %v173
  %223 = vmatprep.subr.bf16.mxu0 0
  %224 = vmatpush1.bf16.msra.mxu0 %v174
  %225 = vmatprep.subr.bf16.mxu0 0
  %226 = vmatpush1.bf16.msra.mxu0 %v175
  %227 = vmatprep.subr.bf16.mxu0 0
  %228 = vmatpush1.bf16.msra.mxu0 %v176
  %229 = vmatprep.subr.bf16.mxu0 0
  %230 = vmatpush1.bf16.msra.mxu0 %v177
  %231 = vmatprep.subr.bf16.mxu0 0
  %232 = vmatpush1.bf16.msra.mxu0 %v178
  %233 = vmatprep.subr.bf16.mxu0 0
  %234 = vmatpush1.bf16.msra.mxu0 %v179
  %235 = vmatprep.subr.bf16.mxu0 0
  %236 = vmatpush1.bf16.msra.mxu0 %v180
  %237 = vmatprep.subr.bf16.mxu0 0
  %238 = vmatpush1.bf16.msra.mxu0 %v181
  %239 = vmatprep.subr.bf16.mxu0 0
  %240 = vmatpush1.bf16.msra.mxu0 %v182
  %241 = vmatprep.subr.bf16.mxu0 0
  %242 = vmatpush1.bf16.msra.mxu0 %v183
  %243 = vmatprep.mubr.bf16.mxu0 %v87
  %244 = vmatmul.mubr.bf16.gmra.mrb[0].mxu0 %v86
  %v245 = vpop.f32.mrb[0].mxu0
  %v246 = vadd.f32 %v64, %v245
  %v247 = vpop.f32.mrb[0].mxu0
  %v248 = vpop.f32.mrb[0].mxu0
  %v249 = vadd.f32 %v64, %v248
  %v250 = vpop.f32.mrb[0].mxu0
  %251 = vmatprep.mubr.bf16.mxu0 %v90
  %252 = vmatmul.mubr.bf16.gmra.mrb[0].mxu0 %v89
  %v253 = vpop.f32.mrb[0].mxu0
  %v254 = vadd.f32 %v64, %v253
  %v255 = vpop.f32.mrb[0].mxu0
  %v256 = vpop.f32.mrb[0].mxu0
  %v257 = vadd.f32 %v64, %v256
  %v258 = vpop.f32.mrb[0].mxu0
  %259 = vdwg.mxu0
  %260 = vmatprep.subr.bf16.mxu0 0
  %261 = vmatpush1.bf16.msra.mxu0 %v184
  %262 = vmatprep.subr.bf16.mxu0 0
  %263 = vmatpush1.bf16.msra.mxu0 %v185
  %264 = vmatprep.subr.bf16.mxu0 0
  %265 = vmatpush1.bf16.msra.mxu0 0
  %266 = vmatprep.subr.bf16.mxu0 0
  %267 = vmatpush1.bf16.msra.mxu0 0
  %268 = vmatprep.subr.bf16.mxu0 0
  %269 = vmatpush1.bf16.msra.mxu0 0
  %270 = vmatprep.subr.bf16.mxu0 0
  %271 = vmatpush1.bf16.msra.mxu0 0
  %272 = vmatprep.subr.bf16.mxu0 0
  %273 = vmatpush1.bf16.msra.mxu0 0
  %274 = vmatprep.subr.bf16.mxu0 0
  %275 = vmatpush1.bf16.msra.mxu0 0
  %276 = vmatprep.subr.bf16.mxu0 0
  %277 = vmatpush1.bf16.msra.mxu0 0
  %278 = vmatprep.subr.bf16.mxu0 0
  %279 = vmatpush1.bf16.msra.mxu0 0
  %280 = vmatprep.subr.bf16.mxu0 0
  %281 = vmatpush1.bf16.msra.mxu0 0
  %282 = vmatprep.subr.bf16.mxu0 0
  %283 = vmatpush1.bf16.msra.mxu0 0
  %284 = vmatprep.subr.bf16.mxu0 0
  %285 = vmatpush1.bf16.msra.mxu0 0
  %286 = vmatprep.subr.bf16.mxu0 0
  %287 = vmatpush1.bf16.msra.mxu0 0
  %288 = vmatprep.subr.bf16.mxu0 0
  %289 = vmatpush1.bf16.msra.mxu0 0
  %290 = vmatprep.subr.bf16.mxu0 0
  %291 = vmatpush1.bf16.msra.mxu0 0
  %292 = vmatprep.mubr.bf16.mxu0 0
  %293 = vmatmul.mubr.bf16.gmra.mrb[0].mxu0 %v206
  %v294 = vpop.f32.mrb[0].mxu0
  %v295 = vadd.f32 %v246, %v294
  %v296 = vpop.f32.mrb[0].mxu0
  %v297 = vpop.f32.mrb[0].mxu0
  %v298 = vadd.f32 %v249, %v297
  %v299 = vpop.f32.mrb[0].mxu0
  %300 = vmatprep.mubr.bf16.mxu0 0
  %301 = vmatmul.mubr.bf16.gmra.mrb[0].mxu0 %v209
  %v302 = vpop.f32.mrb[0].mxu0
  %v303 = vadd.f32 %v254, %v302
  %v304 = vpop.f32.mrb[0].mxu0
  %v305 = vpop.f32.mrb[0].mxu0
  %v306 = vadd.f32 %v257, %v305
  %v307 = vpop.f32.mrb[0].mxu0
  %308 = vdwg.mxu0
  %v309 = vadd.f32 %v295, 3.0
  %v310 = vadd.f32 %v298, 3.0
  %v311 = vadd.f32 %v303, 3.0
  %v312 = vadd.f32 %v306, 3.0
  %v313 = vmax.f32 %v309, 0.0
  %v314 = vmax.f32 %v310, 0.0
  %v315 = vmax.f32 %v311, 0.0
  %v316 = vmax.f32 %v312, 0.0
  %v317 = vmin.f32 %v313, 6.0
  %v318 = vmin.f32 %v314, 6.0
  %v319 = vmin.f32 %v315, 6.0
  %v320 = vmin.f32 %v316, 6.0
  %v321 = vmul.f32 %v295, %v317
  %v322 = vmul.f32 %v298, %v318
  %v323 = vmul.f32 %v303, %v319
  %v324 = vmul.f32 %v306, %v320
  %v325 = vmul.f32 %v321, 0.16666667
  %v326 = vmul.f32 %v322, 0.16666667
  %v327 = vmul.f32 %v323, 0.16666667
  %v328 = vmul.f32 %v324, 0.16666667
  %v329 = vpack.c.bf16 %v326, %v325
  %v330 = vpack.c.bf16 %v328, %v327
  %v333 = vunpack.c.l.b16 %v329
  %v334 = vunpack.c.h.b16 %v329
  %v335 = vunpack.c.l.b16 %v330
  %v336 = vunpack.c.h.b16 %v330
  %v337 = vpack.c.b16 %v333, %v333
  %v338 = vpack.c.b16 %v334, %v334
  %v339 = vpack.c.b16 %v335, %v335
  %v340 = vpack.c.b16 %v336, %v336
  %vm345 = vcmask 519168
  %346 = vst.msk [vmem:[%s3] sm:$0xf] %vm345, %v337
  %347 = vst.msk [vmem:[%s3 + $0x4] sm:$0xf] %vm345, %v338
  %348 = vst.msk [vmem:[%s3 + $0x8] sm:$0xf] %vm345, %v339
  %349 = vst.msk [vmem:[%s3 + $0xc] sm:$0xf] %vm345, %v340
  // Predicated region
  $region14: #{deeplab_forward.18} parent=0 // pred_check
    _
  $region15: #{deeplab_forward.18} parent=0 // pred_check_branch
    %351 = sbr.rel (0) target = $region17
  $region16: #{deeplab_forward.18} parent=0 // pred_region
    _
  $region17: #{deeplab_forward.18} parent=0 // pred_fallthru
    _
  // Predicated region
  $region18: #{deeplab_forward.18} parent=0 // pred_check
    _
  $region19: #{deeplab_forward.18} parent=0 // pred_check_branch
    %353 = sbr.rel (0) target = $region21
  $region20: #{deeplab_forward.18} parent=0 // pred_region
    _
  $region21: #{deeplab_forward.18} parent=0 // pred_fallthru
    _

// kernel: deeplab_forward.23
$region0: #{deeplab_forward.23}
  #allocation0 [shape = 'u32[]', space=smem, size = 0x4, offset = 0x4, fixed_abs, tag = 'smem constant byte address 0x4 - core index']
  #allocation1 [shape = 'u32[144,128]{1,0:T(1,128)}', space=vmem, size = 0x12000, scoped, tag = 'internal scratch']
  %s0 = inlined_call_operand.vmem [shape: bf16[2,16,64], index: 0, kind: input, shape index: {}]
  %s1 = inlined_call_operand.vmem [shape: f32[2,1,64], index: 1, kind: output, shape index: {}]
  %s2 = sld [smem:[#allocation0]]
  $region41: #{deeplab_forward.23} parent=0
    _
  %s4 = ssub.s32 1, %s2
  %s5 = scalar_select 0, %s4, %s2
  loop: start=0, step=1, limit=4
  $region2: #{deeplab_forward.23} parent=0 // loop_pre_header
    _
  $region3: #{deeplab_forward.23} parent=0 // loop_header
    %s7 = sphi 0, %s11
    %p8 = scmp.ge.s32.totalorder %s7, 4
    %s14 = sphi 0, %s26
    %s15 = sphi 0, %s22
    %s16 = sphi 0, %s14
    %s17 = sphi 0, %s15
    %s18 = sphi 0, %s16
    %s19 = sphi 0, %s17
    %s31 = sphi 0, %s33
    %s34 = sphi 0, %s31
    %s35 = sphi 0, %s34
    %s51 = sphi 0, %s35
    %s57 = sphi 0, %s59
    %s60 = sphi 0, %s57
    %s61 = sphi 0, %s60
    %s77 = sphi 0, %s61
  $region4: #{deeplab_forward.23} parent=0 // loop_header_branch
    %10 = sbr.rel (%p8) target = $region8
  $region5: #{deeplab_forward.23} parent=0 // loop_body
    %s12 = ssub.s32 %s7, 1
    %s13 = ssub.s32 %s7, 2
    %s20 = sadd.s32 1, %s15
    %p21 = scmp.ge.s32.totalorder %s20, 1
    %s22 = scalar_select %p21, 0, %s20
    %s23 = sadd.s32 1, %s14
    %s24 = scalar_select %p21, %s23, %s14
    %p25 = scmp.ge.s32.totalorder %s24, 2
    %s26 = scalar_select %p25, 0, %s24
    %s27 = ssub.s32 %s14, %s26
    %s28 = ssub.s32 %s15, %s22
    %s29 = sor.u32 %s27, %s28
    %p30 = scmp.eq.s32.totalorder %s29, 0
    %s32 = sadd.s32 %s31, 1
    %s33 = scalar_select %p30, %s31, %s32
    %p36 = pneg %p30
    %p37 = scmp.eq.s32.totalorder %s7, 1
    %p38 = por %p36, %p37
    %p39 = scmp.ne.s32.totalorder %s31, %s34
    %p40 = scmp.eq.s32.totalorder %s7, 0
    %p41 = por %p39, %p40
    %p42 = scmp.ne.s32.totalorder %s31, %s34
    %p43 = scmp.eq.s32.totalorder %s12, 1
    %p44 = por %p42, %p43
    %p45 = scmp.ne.s32.totalorder %s34, %s35
    %p46 = scmp.eq.s32.totalorder %s12, 0
    %p47 = por %p45, %p46
    %p48 = scmp.ne.s32.totalorder %s34, %s35
    %p49 = scmp.eq.s32.totalorder %s13, 1
    %p50 = por %p48, %p49
    %p52 = scmp.ne.s32.totalorder %s35, %s51
    %p53 = scmp.eq.s32.totalorder %s13, 0
    %p54 = por %p52, %p53
    %s55 = ssub.s32 %s14, %s26
    %p56 = scmp.eq.s32.totalorder %s55, 0
    %s58 = sadd.s32 %s57, 1
    %s59 = scalar_select %p56, %s57, %s58
    %p62 = pneg %p56
    %p63 = scmp.eq.s32.totalorder %s7, 1
    %p64 = por %p62, %p63
    %p65 = scmp.ne.s32.totalorder %s57, %s60
    %p66 = scmp.eq.s32.totalorder %s7, 0
    %p67 = por %p65, %p66
    %p68 = scmp.ne.s32.totalorder %s57, %s60
    %p69 = scmp.eq.s32.totalorder %s12, 1
    %p70 = por %p68, %p69
    %p71 = scmp.ne.s32.totalorder %s60, %s61
    %p72 = scmp.eq.s32.totalorder %s12, 0
    %p73 = por %p71, %p72
    %p74 = scmp.ne.s32.totalorder %s60, %s61
    %p75 = scmp.eq.s32.totalorder %s13, 1
    %p76 = por %p74, %p75
    %p78 = scmp.ne.s32.totalorder %s61, %s77
    %p79 = scmp.eq.s32.totalorder %s13, 0
    %p80 = por %p78, %p79
    %p81 = scmp.le.s32.totalorder 1, %s7
    %p82 = scmp.lt.s32.totalorder %s7, 3
    %p83 = pnand %p81, %p82
    %p84 = pneg %p83
    // Predicated region
    $region9: #{deeplab_forward.23} parent=5 // pred_check
      _
    $region10: #{deeplab_forward.23} parent=5 // pred_check_branch
      %86 = sbr.rel (%p83) target = $region12
    $region11: #{deeplab_forward.23} parent=5 // pred_region
      %s87 = ssub.s32 %s7, 1
    $region12: #{deeplab_forward.23} parent=5 // pred_fallthru
      _
    %p88 = scmp.lt.s32.totalorder %s7, 2
    // Predicated region
    $region13: #{deeplab_forward.23} parent=5 // pred_check
      %p89 = pneg %p88
    $region14: #{deeplab_forward.23} parent=5 // pred_check_branch
      %91 = sbr.rel (%p89) target = $region16
    $region15: #{deeplab_forward.23} parent=5 // pred_region
      // Predicated region
      $region17: #{deeplab_forward.23} parent=15 // pred_check
        %p92 = pneg %p41
      $region18: #{deeplab_forward.23} parent=15 // pred_check_branch
        %94 = sbr.rel (%p92) target = $region20
      $region19: #{deeplab_forward.23} parent=15 // pred_region
        %s95 = smul.u32 2, %s15
        %p96 = scmp.lt.s32.totalorder %s14, 1
        %s97 = scalar_select %p96, %s14, 1
        %p98 = scmp.lt.s32.totalorder %s95, 1
        %s99 = scalar_select %p98, %s95, 1
        %s100 = smul.addr %s97, 2
        %s101 = sadd.s32 %s99, %s100
        %s102 = smul.addr %s101, 4
        %s103 = scalar_lea.vmem %s0, %s102
        %s104 = smul.u32 2, %s15
      $region20: #{deeplab_forward.23} parent=15 // pred_fallthru
        _
    $region16: #{deeplab_forward.23} parent=5 // pred_fallthru
      _
    %p105 = scmp.le.s32.totalorder 1, %s7
    %p106 = scmp.lt.s32.totalorder %s7, 3
    %p107 = pnand %p105, %p106
    %p108 = pneg %p107
    // Predicated region
    $region21: #{deeplab_forward.23} parent=5 // pred_check
      _
    $region22: #{deeplab_forward.23} parent=5 // pred_check_branch
      %110 = sbr.rel (%p107) target = $region24
    $region23: #{deeplab_forward.23} parent=5 // pred_region
      %s111 = ssub.s32 %s7, 1
      %s112 = smul.u32 2, %s17
      %p113 = scmp.lt.s32.totalorder %s16, 1
      %s114 = scalar_select %p113, %s16, 1
      %p115 = scmp.lt.s32.totalorder %s112, 1
      %s116 = scalar_select %p115, %s112, 1
      %s117 = smul.addr %s114, 2
      %s118 = sadd.s32 %s116, %s117
      %s119 = smul.addr %s118, 4
      %s120 = scalar_lea.vmem %s0, %s119
      %p121 = pneg %p47
      %p122 = pneg %p44
      %p123 = pneg %p73
      %p124 = pneg %p70
      %p125 = scmp.lt.s32.totalorder %s16, 1
      %s126 = scalar_select %p125, %s16, 1
      %s127 = scalar_lea.vmem %s1, %s126
      %s128 = smul.u32 2, %s17
      %p129 = scmp.lt.s32.totalorder %s16, 1
      %s130 = scalar_select %p129, %s16, 1
      %p131 = scmp.lt.s32.totalorder %s128, 1
      %s132 = scalar_select %p131, %s128, 1
      %s133 = smul.addr %s130, 2
      %s134 = sadd.s32 %s132, %s133
      %s135 = smul.addr %s134, 4
      %s136 = scalar_lea.vmem %s0, %s135
      %s137 = smul.u32 2, %s17
      %p138 = scmp.lt.s32.totalorder %s16, 1
      %s139 = scalar_select %p138, %s16, 1
      %s140 = scalar_lea.vmem %s1, %s139
      %p141 = scmp.eq.s32.totalorder %s17, 0
      // Predicated region
      $region25: #{deeplab_forward.23} parent=23 // pred_check
        %p142 = pneg %p141
      $region26: #{deeplab_forward.23} parent=23 // pred_check_branch
        %144 = sbr.rel (%p142) target = $region28
      $region27: #{deeplab_forward.23} parent=23 // pred_region
        %vm145 = vcmask 516096
        %146 = vst.msk [vmem:[%s140] sm:$0x1] %vm145, 0.0
      $region28: #{deeplab_forward.23} parent=23 // pred_fallthru
        _
      %v147 = vld [vmem:[%s140] sm:$0x1]
      %v148 = vld [vmem:[%s136] sm:$0xf]
      %v149 = vld [vmem:[%s136 + $0x4] sm:$0xf]
      %v150 = vunpack.c.l.bf16 %v148
      %v151 = vunpack.c.l.bf16 %v149
      %vm152 = vcmask 523264
      %v153 = vsel %vm152, %v150, 0.0
      %v154 = vsel %vm152, %v151, 0.0
      %v155 = vadd.f32 %v153, %v154
      %v156 = vrot.slane %v155, 4
      %v157 = vadd.f32 %v155, %v156
      %v158 = vrot.slane %v157, 2
      %v159 = vadd.f32 %v157, %v158
      %v160 = vrot.slane %v159, 1
      %v161 = vadd.f32 %v159, %v160
      %v162 = vmul.f32 %v161, 0.0625
      %v163 = vadd.f32 %v147, %v162
      %vm164 = vcmask 516096
      %165 = vst.msk [vmem:[%s140] sm:$0x1] %vm164, %v163
      %p166 = scmp.lt.s32.totalorder %s16, 1
      %s167 = scalar_select %p166, %s16, 1
      %s168 = scalar_lea.vmem %s1, %s167
      // Predicated region
      $region29: #{deeplab_forward.23} parent=23 // pred_check
        %p169 = pneg %p70
      $region30: #{deeplab_forward.23} parent=23 // pred_check_branch
        %171 = sbr.rel (%p169) target = $region32
      $region31: #{deeplab_forward.23} parent=23 // pred_region
        _
      $region32: #{deeplab_forward.23} parent=23 // pred_fallthru
        _
    $region24: #{deeplab_forward.23} parent=5 // pred_fallthru
      _
    %p172 = scmp.le.s32.totalorder 2, %s7
    // Predicated region
    $region33: #{deeplab_forward.23} parent=5 // pred_check
      %p173 = pneg %p172
    $region34: #{deeplab_forward.23} parent=5 // pred_check_branch
      %175 = sbr.rel (%p173) target = $region36
    $region35: #{deeplab_forward.23} parent=5 // pred_region
      %s176 = ssub.s32 %s7, 2
      // Predicated region
      $region37: #{deeplab_forward.23} parent=35 // pred_check
        %p177 = pneg %p76
      $region38: #{deeplab_forward.23} parent=35 // pred_check_branch
        %179 = sbr.rel (%p177) target = $region40
      $region39: #{deeplab_forward.23} parent=35 // pred_region
        %p180 = scmp.lt.s32.totalorder %s18, 1
        %s181 = scalar_select %p180, %s18, 1
        %s182 = scalar_lea.vmem %s1, %s181
      $region40: #{deeplab_forward.23} parent=35 // pred_fallthru
        _
    $region36: #{deeplab_forward.23} parent=5 // pred_fallthru
      _
  $region6: #{deeplab_forward.23} parent=0 // loop_footer
    %s11 = sadd.s32 1, %s7
  $region7: #{deeplab_forward.23} parent=0 // loop_footer_branch
    %6 = sbr.rel target = $region3
  $region8: #{deeplab_forward.23} parent=0 // loop_exit
    _

// kernel: deeplab_forward.20
$region0: #{deeplab_forward.20}
  #allocation0 [shape = 'u32[]', space=smem, size = 0x4, offset = 0x4, fixed_abs, tag = 'smem constant byte address 0x4 - core index']
  #allocation1 [shape = 'u32[144,128]{1,0:T(1,128)}', space=vmem, size = 0x12000, scoped, tag = 'internal scratch']
  %s0 = inlined_call_operand.vmem [shape: bf16[32,576], index: 0, kind: input, shape index: {}]
  %s1 = inlined_call_operand.vmem [shape: bf16[576,32], index: 1, kind: input, shape index: {}]
  %s2 = inlined_call_operand.vmem [shape: f32[1,32], index: 2, kind: input, shape index: {}]
  %s3 = inlined_call_operand.vmem [shape: bf16[32,32], index: 3, kind: output, shape index: {}]
  %s4 = sld [smem:[#allocation0]]
  $region22: #{deeplab_forward.20} parent=0
    _
  %s6 = ssub.s32 1, %s4
  %s7 = scalar_select 0, %s6, %s4
  // Predicated region
  $region2: #{deeplab_forward.20} parent=0 // pred_check
    _
  $region3: #{deeplab_forward.20} parent=0 // pred_check_branch
    %9 = sbr.rel (0) target = $region5
  $region4: #{deeplab_forward.20} parent=0 // pred_region
    _
  $region5: #{deeplab_forward.20} parent=0 // pred_fallthru
    _
  // Predicated region
  $region6: #{deeplab_forward.20} parent=0 // pred_check
    _
  $region7: #{deeplab_forward.20} parent=0 // pred_check_branch
    %11 = sbr.rel (0) target = $region9
  $region8: #{deeplab_forward.20} parent=0 // pred_region
    _
  $region9: #{deeplab_forward.20} parent=0 // pred_fallthru
    _
  // Predicated region
  $region10: #{deeplab_forward.20} parent=0 // pred_check
    _
  $region11: #{deeplab_forward.20} parent=0 // pred_check_branch
    %13 = sbr.rel (0) target = $region13
  $region12: #{deeplab_forward.20} parent=0 // pred_region
    _
  $region13: #{deeplab_forward.20} parent=0 // pred_fallthru
    _
  %v15 = vld [vmem:[%s0] sm:$0xff]
  %v16 = vld [vmem:[%s0 + $0x8] sm:$0xff]
  %v17 = vld [vmem:[%s0 + $0x10] sm:$0xf]
  %v18 = vld [vmem:[%s0 + $0x14] sm:$0xff]
  %v19 = vld [vmem:[%s0 + $0x1c] sm:$0xff]
  %v20 = vld [vmem:[%s0 + $0x24] sm:$0xf]
  %v21 = vld [vmem:[%s0 + $0x28] sm:$0xff]
  %v22 = vld [vmem:[%s0 + $0x30] sm:$0xff]
  %v23 = vld [vmem:[%s0 + $0x38] sm:$0xf]
  %v24 = vld [vmem:[%s0 + $0x3c] sm:$0xff]
  %v25 = vld [vmem:[%s0 + $0x44] sm:$0xff]
  %v26 = vld [vmem:[%s0 + $0x4c] sm:$0xf]
  %v27 = vld [vmem:[%s1] sm:$0xf]
  %v28 = vld [vmem:[%s1 + $0x4] sm:$0xf]
  %v29 = vld [vmem:[%s1 + $0x8] sm:$0xf]
  %v30 = vld [vmem:[%s1 + $0xc] sm:$0xf]
  %v31 = vld [vmem:[%s1 + $0x10] sm:$0xf]
  %v32 = vld [vmem:[%s1 + $0x14] sm:$0xf]
  %v33 = vld [vmem:[%s1 + $0x18] sm:$0xf]
  %v34 = vld [vmem:[%s1 + $0x1c] sm:$0xf]
  %v35 = vld [vmem:[%s1 + $0x20] sm:$0xf]
  %v36 = vld [vmem:[%s1 + $0x24] sm:$0xf]
  %v37 = vld [vmem:[%s1 + $0x28] sm:$0xf]
  %v38 = vld [vmem:[%s1 + $0x2c] sm:$0xf]
  %v39 = vld [vmem:[%s1 + $0x30] sm:$0xf]
  %v40 = vld [vmem:[%s1 + $0x34] sm:$0xf]
  %v41 = vld [vmem:[%s1 + $0x38] sm:$0xf]
  %v42 = vld [vmem:[%s1 + $0x3c] sm:$0xf]
  %v43 = vld [vmem:[%s1 + $0x40] sm:$0xf]
  %v44 = vld [vmem:[%s1 + $0x44] sm:$0xf]
  %v45 = vld [vmem:[%s1 + $0x48] sm:$0xf]
  %v46 = vld [vmem:[%s1 + $0x4c] sm:$0xf]
  %v47 = vld [vmem:[%s1 + $0x50] sm:$0xf]
  %v48 = vld [vmem:[%s1 + $0x54] sm:$0xf]
  %v49 = vld [vmem:[%s1 + $0x58] sm:$0xf]
  %v50 = vld [vmem:[%s1 + $0x5c] sm:$0xf]
  %v51 = vld [vmem:[%s1 + $0x60] sm:$0xf]
  %v52 = vld [vmem:[%s1 + $0x64] sm:$0xf]
  %v53 = vld [vmem:[%s1 + $0x68] sm:$0xf]
  %v54 = vld [vmem:[%s1 + $0x6c] sm:$0xf]
  %v55 = vld [vmem:[%s1 + $0x70] sm:$0xf]
  %v56 = vld [vmem:[%s1 + $0x74] sm:$0xf]
  %v57 = vld [vmem:[%s1 + $0x78] sm:$0xf]
  %v58 = vld [vmem:[%s1 + $0x7c] sm:$0xf]
  %v59 = vld [vmem:[%s1 + $0x80] sm:$0xf]
  %v60 = vld [vmem:[%s1 + $0x84] sm:$0xf]
  %v61 = vld [vmem:[%s1 + $0x88] sm:$0xf]
  %v62 = vld [vmem:[%s1 + $0x8c] sm:$0xf]
  %v63 = vld [vmem:[%s1 + $0x90] sm:$0xf]
  %v64 = vld [vmem:[%s1 + $0x94] sm:$0xf]
  %v65 = vld [vmem:[%s1 + $0x98] sm:$0xf]
  %v66 = vld [vmem:[%s1 + $0x9c] sm:$0xf]
  %v67 = vld [vmem:[%s1 + $0xa0] sm:$0xf]
  %v68 = vld [vmem:[%s1 + $0xa4] sm:$0xf]
  %v69 = vld [vmem:[%s1 + $0xa8] sm:$0xf]
  %v70 = vld [vmem:[%s1 + $0xac] sm:$0xf]
  %v71 = vld [vmem:[%s1 + $0xb0] sm:$0xf]
  %v72 = vld [vmem:[%s1 + $0xb4] sm:$0xf]
  %v73 = vld [vmem:[%s1 + $0xb8] sm:$0xf]
  %v74 = vld [vmem:[%s1 + $0xbc] sm:$0xf]
  %v75 = vld [vmem:[%s1 + $0xc0] sm:$0xf]
  %v76 = vld [vmem:[%s1 + $0xc4] sm:$0xf]
  %v77 = vld [vmem:[%s1 + $0xc8] sm:$0xf]
  %v78 = vld [vmem:[%s1 + $0xcc] sm:$0xf]
  %v79 = vld [vmem:[%s1 + $0xd0] sm:$0xf]
  %v80 = vld [vmem:[%s1 + $0xd4] sm:$0xf]
  %v81 = vld [vmem:[%s1 + $0xd8] sm:$0xf]
  %v82 = vld [vmem:[%s1 + $0xdc] sm:$0xf]
  %v83 = vld [vmem:[%s1 + $0xe0] sm:$0xf]
  %v84 = vld [vmem:[%s1 + $0xe4] sm:$0xf]
  %v85 = vld [vmem:[%s1 + $0xe8] sm:$0xf]
  %v86 = vld [vmem:[%s1 + $0xec] sm:$0xf]
  %v87 = vld [vmem:[%s1 + $0xf0] sm:$0xf]
  %v88 = vld [vmem:[%s1 + $0xf4] sm:$0xf]
  %v89 = vld [vmem:[%s1 + $0xf8] sm:$0xf]
  %v90 = vld [vmem:[%s1 + $0xfc] sm:$0xf]
  %v91 = vld [vmem:[%s1 + $0x100] sm:$0xf]
  %v92 = vld [vmem:[%s1 + $0x104] sm:$0xf]
  %v93 = vld [vmem:[%s1 + $0x108] sm:$0xf]
  %v94 = vld [vmem:[%s1 + $0x10c] sm:$0xf]
  %v95 = vld [vmem:[%s1 + $0x110] sm:$0xf]
  %v96 = vld [vmem:[%s1 + $0x114] sm:$0xf]
  %v97 = vld [vmem:[%s1 + $0x118] sm:$0xf]
  %v98 = vld [vmem:[%s1 + $0x11c] sm:$0xf]
  %v99 = vld [vmem:[%s2] sm:$0x1]
  %v101 = vlaneseq
  %v102 = vshrl.u32 %v101, 7
  %v103 = vsub.s32 0, %v102
  %v104 = vrot.slane %v99, %v103
  %v118 = vunpack.c.l.b16 %v15
  %v119 = vunpack.c.h.b16 %v15
  %v120 = vunpack.c.l.b16 %v16
  %v121 = vunpack.c.h.b16 %v16
  %v122 = vunpack.c.l.b16 %v17
  %v123 = vunpack.c.l.b16 %v18
  %v124 = vunpack.c.h.b16 %v18
  %v125 = vunpack.c.l.b16 %v19
  %v126 = vunpack.c.h.b16 %v19
  %v127 = vunpack.c.l.b16 %v20
  %v128 = vunpack.c.l.b16 %v21
  %v129 = vunpack.c.h.b16 %v21
  %v130 = vunpack.c.l.b16 %v22
  %v131 = vunpack.c.h.b16 %v22
  %v132 = vunpack.c.l.b16 %v23
  %v133 = vunpack.c.l.b16 %v24
  %v134 = vunpack.c.h.b16 %v24
  %v135 = vunpack.c.l.b16 %v25
  %v136 = vunpack.c.h.b16 %v25
  %v137 = vunpack.c.l.b16 %v26
  %v138 = vpack.c.b16 %v123, %v118
  %v139 = vpack.c.b16 %v124, %v119
  %v140 = vpack.c.b16 %v125, %v120
  %v141 = vpack.c.b16 %v126, %v121
  %v142 = vpack.c.b16 %v127, %v122
  %v143 = vpack.c.b16 %v133, %v128
  %v144 = vpack.c.b16 %v134, %v129
  %v145 = vpack.c.b16 %v135, %v130
  %v146 = vpack.c.b16 %v136, %v131
  %v147 = vpack.c.b16 %v137, %v132
  %v228 = vunpack.c.l.b16 %v27
  %v229 = vunpack.c.l.b16 %v28
  %v230 = vunpack.c.l.b16 %v29
  %v231 = vunpack.c.l.b16 %v30
  %v232 = vunpack.c.l.b16 %v31
  %v233 = vunpack.c.l.b16 %v32
  %v234 = vunpack.c.l.b16 %v33
  %v235 = vunpack.c.l.b16 %v34
  %v236 = vunpack.c.l.b16 %v35
  %v237 = vunpack.c.l.b16 %v36
  %v238 = vunpack.c.l.b16 %v37
  %v239 = vunpack.c.l.b16 %v38
  %v240 = vunpack.c.l.b16 %v39
  %v241 = vunpack.c.l.b16 %v40
  %v242 = vunpack.c.l.b16 %v41
  %v243 = vunpack.c.l.b16 %v42
  %v244 = vunpack.c.l.b16 %v43
  %v245 = vunpack.c.l.b16 %v44
  %v246 = vunpack.c.l.b16 %v45
  %v247 = vunpack.c.l.b16 %v46
  %v248 = vunpack.c.l.b16 %v47
  %v249 = vunpack.c.l.b16 %v48
  %v250 = vunpack.c.l.b16 %v49
  %v251 = vunpack.c.l.b16 %v50
  %v252 = vunpack.c.l.b16 %v51
  %v253 = vunpack.c.l.b16 %v52
  %v254 = vunpack.c.l.b16 %v53
  %v255 = vunpack.c.l.b16 %v54
  %v256 = vunpack.c.l.b16 %v55
  %v257 = vunpack.c.l.b16 %v56
  %v258 = vunpack.c.l.b16 %v57
  %v259 = vunpack.c.l.b16 %v58
  %v260 = vunpack.c.l.b16 %v59
  %v261 = vunpack.c.l.b16 %v60
  %v262 = vunpack.c.l.b16 %v61
  %v263 = vunpack.c.l.b16 %v62
  %v264 = vunpack.c.l.b16 %v63
  %v265 = vunpack.c.l.b16 %v64
  %v266 = vunpack.c.l.b16 %v65
  %v267 = vunpack.c.l.b16 %v66
  %v268 = vunpack.c.l.b16 %v67
  %v269 = vunpack.c.l.b16 %v68
  %v270 = vunpack.c.l.b16 %v69
  %v271 = vunpack.c.l.b16 %v70
  %v272 = vunpack.c.l.b16 %v71
  %v273 = vunpack.c.l.b16 %v72
  %v274 = vunpack.c.l.b16 %v73
  %v275 = vunpack.c.l.b16 %v74
  %v276 = vunpack.c.l.b16 %v75
  %v277 = vunpack.c.l.b16 %v76
  %v278 = vunpack.c.l.b16 %v77
  %v279 = vunpack.c.l.b16 %v78
  %v280 = vunpack.c.l.b16 %v79
  %v281 = vunpack.c.l.b16 %v80
  %v282 = vunpack.c.l.b16 %v81
  %v283 = vunpack.c.l.b16 %v82
  %v284 = vunpack.c.l.b16 %v83
  %v285 = vunpack.c.l.b16 %v84
  %v286 = vunpack.c.l.b16 %v85
  %v287 = vunpack.c.l.b16 %v86
  %v288 = vunpack.c.l.b16 %v87
  %v289 = vunpack.c.l.b16 %v88
  %v290 = vunpack.c.l.b16 %v89
  %v291 = vunpack.c.l.b16 %v90
  %v292 = vunpack.c.l.b16 %v91
  %v293 = vunpack.c.l.b16 %v92
  %v294 = vunpack.c.l.b16 %v93
  %v295 = vunpack.c.l.b16 %v94
  %v296 = vunpack.c.l.b16 %v95
  %v297 = vunpack.c.l.b16 %v96
  %v298 = vunpack.c.l.b16 %v97
  %v299 = vunpack.c.l.b16 %v98
  %v300 = vpack.c.b16 %v229, %v228
  %v301 = vpack.c.b16 %v231, %v230
  %v302 = vpack.c.b16 %v233, %v232
  %v303 = vpack.c.b16 %v235, %v234
  %v304 = vpack.c.b16 %v237, %v236
  %v305 = vpack.c.b16 %v239, %v238
  %v306 = vpack.c.b16 %v241, %v240
  %v307 = vpack.c.b16 %v243, %v242
  %v308 = vpack.c.b16 %v245, %v244
  %v309 = vpack.c.b16 %v247, %v246
  %v310 = vpack.c.b16 %v249, %v248
  %v311 = vpack.c.b16 %v251, %v250
  %v312 = vpack.c.b16 %v253, %v252
  %v313 = vpack.c.b16 %v255, %v254
  %v314 = vpack.c.b16 %v257, %v256
  %v315 = vpack.c.b16 %v259, %v258
  %v316 = vpack.c.b16 %v261, %v260
  %v317 = vpack.c.b16 %v263, %v262
  %v318 = vpack.c.b16 %v265, %v264
  %v319 = vpack.c.b16 %v267, %v266
  %v320 = vpack.c.b16 %v269, %v268
  %v321 = vpack.c.b16 %v271, %v270
  %v322 = vpack.c.b16 %v273, %v272
  %v323 = vpack.c.b16 %v275, %v274
  %v324 = vpack.c.b16 %v277, %v276
  %v325 = vpack.c.b16 %v279, %v278
  %v326 = vpack.c.b16 %v281, %v280
  %v327 = vpack.c.b16 %v283, %v282
  %v328 = vpack.c.b16 %v285, %v284
  %v329 = vpack.c.b16 %v287, %v286
  %v330 = vpack.c.b16 %v289, %v288
  %v331 = vpack.c.b16 %v291, %v290
  %v332 = vpack.c.b16 %v293, %v292
  %v333 = vpack.c.b16 %v295, %v294
  %v334 = vpack.c.b16 %v297, %v296
  %v335 = vpack.c.b16 %v299, %v298
  %vm372 = vcmask 523264
  %v374 = vsel %vm372, %v142, 0
  %v377 = vsel %vm372, %v147, 0
  %379 = vmatprep.subr.bf16.mxu0 0
  %380 = vmatpush1.bf16.msra.mxu0 %v300
  %381 = vmatprep.subr.bf16.mxu0 0
  %382 = vmatpush1.bf16.msra.mxu0 %v301
  %383 = vmatprep.subr.bf16.mxu0 0
  %384 = vmatpush1.bf16.msra.mxu0 %v302
  %385 = vmatprep.subr.bf16.mxu0 0
  %386 = vmatpush1.bf16.msra.mxu0 %v303
  %387 = vmatprep.subr.bf16.mxu0 0
  %388 = vmatpush1.bf16.msra.mxu0 %v304
  %389 = vmatprep.subr.bf16.mxu0 0
  %390 = vmatpush1.bf16.msra.mxu0 %v305
  %391 = vmatprep.subr.bf16.mxu0 0
  %392 = vmatpush1.bf16.msra.mxu0 %v306
  %393 = vmatprep.subr.bf16.mxu0 0
  %394 = vmatpush1.bf16.msra.mxu0 %v307
  %395 = vmatprep.subr.bf16.mxu0 0
  %396 = vmatpush1.bf16.msra.mxu0 %v308
  %397 = vmatprep.subr.bf16.mxu0 0
  %398 = vmatpush1.bf16.msra.mxu0 %v309
  %399 = vmatprep.subr.bf16.mxu0 0
  %400 = vmatpush1.bf16.msra.mxu0 %v310
  %401 = vmatprep.subr.bf16.mxu0 0
  %402 = vmatpush1.bf16.msra.mxu0 %v311
  %403 = vmatprep.subr.bf16.mxu0 0
  %404 = vmatpush1.bf16.msra.mxu0 %v312
  %405 = vmatprep.subr.bf16.mxu0 0
  %406 = vmatpush1.bf16.msra.mxu0 %v313
  %407 = vmatprep.subr.bf16.mxu0 0
  %408 = vmatpush1.bf16.msra.mxu0 %v314
  %409 = vmatprep.subr.bf16.mxu0 0
  %410 = vmatpush1.bf16.msra.mxu0 %v315
  %411 = vmatprep.mubr.bf16.mxu0 %v139
  %412 = vmatmul.mubr.bf16.gmra.mrb[0].mxu0 %v138
  %v413 = vpop.f32.mrb[0].mxu0
  %v414 = vadd.f32 %v104, %v413
  %v415 = vpop.f32.mrb[0].mxu0
  %v416 = vpop.f32.mrb[0].mxu0
  %v417 = vadd.f32 %v104, %v416
  %v418 = vpop.f32.mrb[0].mxu0
  %419 = vmatprep.mubr.bf16.mxu0 %v144
  %420 = vmatmul.mubr.bf16.gmra.mrb[0].mxu0 %v143
  %v421 = vpop.f32.mrb[0].mxu0
  %v422 = vadd.f32 %v104, %v421
  %v423 = vpop.f32.mrb[0].mxu0
  %v424 = vpop.f32.mrb[0].mxu0
  %v425 = vadd.f32 %v104, %v424
  %v426 = vpop.f32.mrb[0].mxu0
  %427 = vdwg.mxu0
  %428 = vmatprep.subr.bf16.mxu0 0
  %429 = vmatpush1.bf16.msra.mxu0 %v316
  %430 = vmatprep.subr.bf16.mxu0 0
  %431 = vmatpush1.bf16.msra.mxu0 %v317
  %432 = vmatprep.subr.bf16.mxu0 0
  %433 = vmatpush1.bf16.msra.mxu0 %v318
  %434 = vmatprep.subr.bf16.mxu0 0
  %435 = vmatpush1.bf16.msra.mxu0 %v319
  %436 = vmatprep.subr.bf16.mxu0 0
  %437 = vmatpush1.bf16.msra.mxu0 %v320
  %438 = vmatprep.subr.bf16.mxu0 0
  %439 = vmatpush1.bf16.msra.mxu0 %v321
  %440 = vmatprep.subr.bf16.mxu0 0
  %441 = vmatpush1.bf16.msra.mxu0 %v322
  %442 = vmatprep.subr.bf16.mxu0 0
  %443 = vmatpush1.bf16.msra.mxu0 %v323
  %444 = vmatprep.subr.bf16.mxu0 0
  %445 = vmatpush1.bf16.msra.mxu0 %v324
  %446 = vmatprep.subr.bf16.mxu0 0
  %447 = vmatpush1.bf16.msra.mxu0 %v325
  %448 = vmatprep.subr.bf16.mxu0 0
  %449 = vmatpush1.bf16.msra.mxu0 %v326
  %450 = vmatprep.subr.bf16.mxu0 0
  %451 = vmatpush1.bf16.msra.mxu0 %v327
  %452 = vmatprep.subr.bf16.mxu0 0
  %453 = vmatpush1.bf16.msra.mxu0 %v328
  %454 = vmatprep.subr.bf16.mxu0 0
  %455 = vmatpush1.bf16.msra.mxu0 %v329
  %456 = vmatprep.subr.bf16.mxu0 0
  %457 = vmatpush1.bf16.msra.mxu0 %v330
  %458 = vmatprep.subr.bf16.mxu0 0
  %459 = vmatpush1.bf16.msra.mxu0 %v331
  %460 = vmatprep.mubr.bf16.mxu0 %v141
  %461 = vmatmul.mubr.bf16.gmra.mrb[0].mxu0 %v140
  %v462 = vpop.f32.mrb[0].mxu0
  %v463 = vadd.f32 %v414, %v462
  %v464 = vpop.f32.mrb[0].mxu0
  %v465 = vpop.f32.mrb[0].mxu0
  %v466 = vadd.f32 %v417, %v465
  %v467 = vpop.f32.mrb[0].mxu0
  %468 = vmatprep.mubr.bf16.mxu0 %v146
  %469 = vmatmul.mubr.bf16.gmra.mrb[0].mxu0 %v145
  %v470 = vpop.f32.mrb[0].mxu0
  %v471 = vadd.f32 %v422, %v470
  %v472 = vpop.f32.mrb[0].mxu0
  %v473 = vpop.f32.mrb[0].mxu0
  %v474 = vadd.f32 %v425, %v473
  %v475 = vpop.f32.mrb[0].mxu0
  %476 = vdwg.mxu0
  %477 = vmatprep.subr.bf16.mxu0 0
  %478 = vmatpush1.bf16.msra.mxu0 %v332
  %479 = vmatprep.subr.bf16.mxu0 0
  %480 = vmatpush1.bf16.msra.mxu0 %v333
  %481 = vmatprep.subr.bf16.mxu0 0
  %482 = vmatpush1.bf16.msra.mxu0 %v334
  %483 = vmatprep.subr.bf16.mxu0 0
  %484 = vmatpush1.bf16.msra.mxu0 %v335
  %485 = vmatprep.subr.bf16.mxu0 0
  %486 = vmatpush1.bf16.msra.mxu0 0
  %487 = vmatprep.subr.bf16.mxu0 0
  %488 = vmatpush1.bf16.msra.mxu0 0
  %489 = vmatprep.subr.bf16.mxu0 0
  %490 = vmatpush1.bf16.msra.mxu0 0
  %491 = vmatprep.subr.bf16.mxu0 0
  %492 = vmatpush1.bf16.msra.mxu0 0
  %493 = vmatprep.subr.bf16.mxu0 0
  %494 = vmatpush1.bf16.msra.mxu0 0
  %495 = vmatprep.subr.bf16.mxu0 0
  %496 = vmatpush1.bf16.msra.mxu0 0
  %497 = vmatprep.subr.bf16.mxu0 0
  %498 = vmatpush1.bf16.msra.mxu0 0
  %499 = vmatprep.subr.bf16.mxu0 0
  %500 = vmatpush1.bf16.msra.mxu0 0
  %501 = vmatprep.subr.bf16.mxu0 0
  %502 = vmatpush1.bf16.msra.mxu0 0
  %503 = vmatprep.subr.bf16.mxu0 0
  %504 = vmatpush1.bf16.msra.mxu0 0
  %505 = vmatprep.subr.bf16.mxu0 0
  %506 = vmatpush1.bf16.msra.mxu0 0
  %507 = vmatprep.subr.bf16.mxu0 0
  %508 = vmatpush1.bf16.msra.mxu0 0
  %509 = vmatprep.mubr.bf16.mxu0 0
  %510 = vmatmul.mubr.bf16.gmra.mrb[0].mxu0 %v374
  %v511 = vpop.f32.mrb[0].mxu0
  %v512 = vadd.f32 %v463, %v511
  %v513 = vpop.f32.mrb[0].mxu0
  %v514 = vpop.f32.mrb[0].mxu0
  %v515 = vadd.f32 %v466, %v514
  %v516 = vpop.f32.mrb[0].mxu0
  %517 = vmatprep.mubr.bf16.mxu0 0
  %518 = vmatmul.mubr.bf16.gmra.mrb[0].mxu0 %v377
  %v519 = vpop.f32.mrb[0].mxu0
  %v520 = vadd.f32 %v471, %v519
  %v521 = vpop.f32.mrb[0].mxu0
  %v522 = vpop.f32.mrb[0].mxu0
  %v523 = vadd.f32 %v474, %v522
  %v524 = vpop.f32.mrb[0].mxu0
  %525 = vdwg.mxu0
  %v526 = vmax.f32 %v512, 0.0
  %v527 = vmax.f32 %v515, 0.0
  %v528 = vmax.f32 %v520, 0.0
  %v529 = vmax.f32 %v523, 0.0
  %v530 = vpack.c.bf16 %v527, %v526
  %v531 = vpack.c.bf16 %v529, %v528
  %v534 = vunpack.c.l.b16 %v530
  %v535 = vunpack.c.h.b16 %v530
  %v536 = vunpack.c.l.b16 %v531
  %v537 = vunpack.c.h.b16 %v531
  %v538 = vpack.c.b16 %v534, %v534
  %v539 = vpack.c.b16 %v535, %v535
  %v540 = vpack.c.b16 %v536, %v536
  %v541 = vpack.c.b16 %v537, %v537
  %vm546 = vcmask 257024
  %547 = vst.msk [vmem:[%s3] sm:$0xf] %vm546, %v538
  %548 = vst.msk [vmem:[%s3 + $0x4] sm:$0xf] %vm546, %v539
  %549 = vst.msk [vmem:[%s3 + $0x8] sm:$0xf] %vm546, %v540
  %550 = vst.msk [vmem:[%s3 + $0xc] sm:$0xf] %vm546, %v541
  // Predicated region
  $region14: #{deeplab_forward.20} parent=0 // pred_check
    _
  $region15: #{deeplab_forward.20} parent=0 // pred_check_branch
    %552 = sbr.rel (0) target = $region17
  $region16: #{deeplab_forward.20} parent=0 // pred_region
    _
  $region17: #{deeplab_forward.20} parent=0 // pred_fallthru
    _
  // Predicated region
  $region18: #{deeplab_forward.20} parent=0 // pred_check
    _
  $region19: #{deeplab_forward.20} parent=0 // pred_check_branch
    %554 = sbr.rel (0) target = $region21
  $region20: #{deeplab_forward.20} parent=0 // pred_region
    _
  $region21: #{deeplab_forward.20} parent=0 // pred_fallthru
    _

// kernel: deeplab_forward.24
$region0: #{deeplab_forward.24}
  #allocation0 [shape = 'u32[]', space=smem, size = 0x4, offset = 0x4, fixed_abs, tag = 'smem constant byte address 0x4 - core index']
  #allocation1 [shape = 'u32[144,128]{1,0:T(1,128)}', space=vmem, size = 0x12000, scoped, tag = 'internal scratch']
  %s0 = inlined_call_operand.vmem [shape: bf16[2,64], index: 0, kind: input, shape index: {}]
  %s1 = inlined_call_operand.vmem [shape: bf16[64,32], index: 1, kind: input, shape index: {}]
  %s2 = inlined_call_operand.vmem [shape: f32[1,32], index: 2, kind: input, shape index: {}]
  %s3 = inlined_call_operand.vmem [shape: f32[2,32], index: 3, kind: output, shape index: {}]
  %s4 = sld [smem:[#allocation0]]
  $region22: #{deeplab_forward.24} parent=0
    _
  %s6 = ssub.s32 1, %s4
  %s7 = scalar_select 0, %s6, %s4
  // Predicated region
  $region2: #{deeplab_forward.24} parent=0 // pred_check
    _
  $region3: #{deeplab_forward.24} parent=0 // pred_check_branch
    %9 = sbr.rel (0) target = $region5
  $region4: #{deeplab_forward.24} parent=0 // pred_region
    _
  $region5: #{deeplab_forward.24} parent=0 // pred_fallthru
    _
  // Predicated region
  $region6: #{deeplab_forward.24} parent=0 // pred_check
    _
  $region7: #{deeplab_forward.24} parent=0 // pred_check_branch
    %11 = sbr.rel (0) target = $region9
  $region8: #{deeplab_forward.24} parent=0 // pred_region
    _
  $region9: #{deeplab_forward.24} parent=0 // pred_fallthru
    _
  // Predicated region
  $region10: #{deeplab_forward.24} parent=0 // pred_check
    _
  $region11: #{deeplab_forward.24} parent=0 // pred_check_branch
    %13 = sbr.rel (0) target = $region13
  $region12: #{deeplab_forward.24} parent=0 // pred_region
    _
  $region13: #{deeplab_forward.24} parent=0 // pred_fallthru
    _
  %v15 = vld [vmem:[%s0] sm:$0x1]
  %v16 = vld [vmem:[%s1] sm:$0xf]
  %v17 = vld [vmem:[%s1 + $0x4] sm:$0xf]
  %v18 = vld [vmem:[%s1 + $0x8] sm:$0xf]
  %v19 = vld [vmem:[%s1 + $0xc] sm:$0xf]
  %v20 = vld [vmem:[%s1 + $0x10] sm:$0xf]
  %v21 = vld [vmem:[%s1 + $0x14] sm:$0xf]
  %v22 = vld [vmem:[%s1 + $0x18] sm:$0xf]
  %v23 = vld [vmem:[%s1 + $0x1c] sm:$0xf]
  %v24 = vld [vmem:[%s2] sm:$0x1]
  %v26 = vlaneseq
  %v27 = vshrl.u32 %v26, 7
  %v28 = vsub.s32 0, %v27
  %v29 = vrot.slane %v24, %v28
  %v39 = vunpack.c.l.b16 %v16
  %v40 = vunpack.c.l.b16 %v17
  %v41 = vunpack.c.l.b16 %v18
  %v42 = vunpack.c.l.b16 %v19
  %v43 = vunpack.c.l.b16 %v20
  %v44 = vunpack.c.l.b16 %v21
  %v45 = vunpack.c.l.b16 %v22
  %v46 = vunpack.c.l.b16 %v23
  %v47 = vpack.c.b16 %v40, %v39
  %v48 = vpack.c.b16 %v42, %v41
  %v49 = vpack.c.b16 %v44, %v43
  %v50 = vpack.c.b16 %v46, %v45
  %vm55 = vcmask 523264
  %v57 = vsel %vm55, %v15, 0
  %59 = vmatprep.subr.bf16.mxu0 0
  %60 = vmatpush1.bf16.msra.mxu0 %v47
  %61 = vmatprep.subr.bf16.mxu0 0
  %62 = vmatpush1.bf16.msra.mxu0 %v48
  %63 = vmatprep.subr.bf16.mxu0 0
  %64 = vmatpush1.bf16.msra.mxu0 %v49
  %65 = vmatprep.subr.bf16.mxu0 0
  %66 = vmatpush1.bf16.msra.mxu0 %v50
  %67 = vmatprep.subr.bf16.mxu0 0
  %68 = vmatpush1.bf16.msra.mxu0 0
  %69 = vmatprep.subr.bf16.mxu0 0
  %70 = vmatpush1.bf16.msra.mxu0 0
  %71 = vmatprep.subr.bf16.mxu0 0
  %72 = vmatpush1.bf16.msra.mxu0 0
  %73 = vmatprep.subr.bf16.mxu0 0
  %74 = vmatpush1.bf16.msra.mxu0 0
  %75 = vmatprep.subr.bf16.mxu0 0
  %76 = vmatpush1.bf16.msra.mxu0 0
  %77 = vmatprep.subr.bf16.mxu0 0
  %78 = vmatpush1.bf16.msra.mxu0 0
  %79 = vmatprep.subr.bf16.mxu0 0
  %80 = vmatpush1.bf16.msra.mxu0 0
  %81 = vmatprep.subr.bf16.mxu0 0
  %82 = vmatpush1.bf16.msra.mxu0 0
  %83 = vmatprep.subr.bf16.mxu0 0
  %84 = vmatpush1.bf16.msra.mxu0 0
  %85 = vmatprep.subr.bf16.mxu0 0
  %86 = vmatpush1.bf16.msra.mxu0 0
  %87 = vmatprep.subr.bf16.mxu0 0
  %88 = vmatpush1.bf16.msra.mxu0 0
  %89 = vmatprep.subr.bf16.mxu0 0
  %90 = vmatpush1.bf16.msra.mxu0 0
  %91 = vmatprep.mubr.bf16.mxu0 0
  %92 = vmatmul.mubr.bf16.gmra.mrb[0].mxu0 %v57
  %v93 = vpop.f32.mrb[0].mxu0
  %v94 = vadd.f32 %v29, %v93
  %v95 = vpop.f32.mrb[0].mxu0
  %v96 = vpop.f32.mrb[0].mxu0
  %v97 = vpop.f32.mrb[0].mxu0
  %98 = vdwg.mxu0
  %v99 = vmax.f32 %v94, 0.0
  %vm100 = vcmask 254976
  %101 = vst.msk [vmem:[%s3] sm:$0x3] %vm100, %v99
  // Predicated region
  $region14: #{deeplab_forward.24} parent=0 // pred_check
    _
  $region15: #{deeplab_forward.24} parent=0 // pred_check_branch
    %103 = sbr.rel (0) target = $region17
  $region16: #{deeplab_forward.24} parent=0 // pred_region
    _
  $region17: #{deeplab_forward.24} parent=0 // pred_fallthru
    _
  // Predicated region
  $region18: #{deeplab_forward.24} parent=0 // pred_check
    _
  $region19: #{deeplab_forward.24} parent=0 // pred_check_branch
    %105 = sbr.rel (0) target = $region21
  $region20: #{deeplab_forward.24} parent=0 // pred_region
    _
  $region21: #{deeplab_forward.24} parent=0 // pred_fallthru
    _

// kernel: deeplab_forward.25
$region0: #{deeplab_forward.25}
  #allocation0 [shape = 'u32[]', space=smem, size = 0x4, offset = 0x4, fixed_abs, tag = 'smem constant byte address 0x4 - core index']
  #allocation1 [shape = 'u32[144,128]{1,0:T(1,128)}', space=vmem, size = 0x12000, scoped, tag = 'internal scratch']
  %s0 = inlined_call_operand.vmem [shape: bf16[2,32], index: 0, kind: input, shape index: {}]
  %s1 = inlined_call_operand.vmem [shape: bf16[32,32], index: 1, kind: input, shape index: {}]
  %s2 = inlined_call_operand.vmem [shape: f32[2,32], index: 2, kind: output, shape index: {}]
  %s3 = sld [smem:[#allocation0]]
  $region18: #{deeplab_forward.25} parent=0
    _
  %s5 = ssub.s32 1, %s3
  %s6 = scalar_select 0, %s5, %s3
  // Predicated region
  $region2: #{deeplab_forward.25} parent=0 // pred_check
    _
  $region3: #{deeplab_forward.25} parent=0 // pred_check_branch
    %8 = sbr.rel (0) target = $region5
  $region4: #{deeplab_forward.25} parent=0 // pred_region
    _
  $region5: #{deeplab_forward.25} parent=0 // pred_fallthru
    _
  // Predicated region
  $region6: #{deeplab_forward.25} parent=0 // pred_check
    _
  $region7: #{deeplab_forward.25} parent=0 // pred_check_branch
    %10 = sbr.rel (0) target = $region9
  $region8: #{deeplab_forward.25} parent=0 // pred_region
    _
  $region9: #{deeplab_forward.25} parent=0 // pred_fallthru
    _
  %v12 = vld [vmem:[%s0] sm:$0x1]
  %v13 = vld [vmem:[%s1] sm:$0xf]
  %v14 = vld [vmem:[%s1 + $0x4] sm:$0xf]
  %v15 = vld [vmem:[%s1 + $0x8] sm:$0xf]
  %v16 = vld [vmem:[%s1 + $0xc] sm:$0xf]
  %v21 = vunpack.c.l.b16 %v13
  %v22 = vunpack.c.l.b16 %v14
  %v23 = vunpack.c.l.b16 %v15
  %v24 = vunpack.c.l.b16 %v16
  %v25 = vpack.c.b16 %v22, %v21
  %v26 = vpack.c.b16 %v24, %v23
  %vm29 = vcmask 261120
  %v31 = vsel %vm29, %v12, 0
  %33 = vmatprep.subr.bf16.mxu0 0
  %34 = vmatpush1.bf16.msra.mxu0 %v25
  %35 = vmatprep.subr.bf16.mxu0 0
  %36 = vmatpush1.bf16.msra.mxu0 %v26
  %37 = vmatprep.subr.bf16.mxu0 0
  %38 = vmatpush1.bf16.msra.mxu0 0
  %39 = vmatprep.subr.bf16.mxu0 0
  %40 = vmatpush1.bf16.msra.mxu0 0
  %41 = vmatprep.subr.bf16.mxu0 0
  %42 = vmatpush1.bf16.msra.mxu0 0
  %43 = vmatprep.subr.bf16.mxu0 0
  %44 = vmatpush1.bf16.msra.mxu0 0
  %45 = vmatprep.subr.bf16.mxu0 0
  %46 = vmatpush1.bf16.msra.mxu0 0
  %47 = vmatprep.subr.bf16.mxu0 0
  %48 = vmatpush1.bf16.msra.mxu0 0
  %49 = vmatprep.subr.bf16.mxu0 0
  %50 = vmatpush1.bf16.msra.mxu0 0
  %51 = vmatprep.subr.bf16.mxu0 0
  %52 = vmatpush1.bf16.msra.mxu0 0
  %53 = vmatprep.subr.bf16.mxu0 0
  %54 = vmatpush1.bf16.msra.mxu0 0
  %55 = vmatprep.subr.bf16.mxu0 0
  %56 = vmatpush1.bf16.msra.mxu0 0
  %57 = vmatprep.subr.bf16.mxu0 0
  %58 = vmatpush1.bf16.msra.mxu0 0
  %59 = vmatprep.subr.bf16.mxu0 0
  %60 = vmatpush1.bf16.msra.mxu0 0
  %61 = vmatprep.subr.bf16.mxu0 0
  %62 = vmatpush1.bf16.msra.mxu0 0
  %63 = vmatprep.subr.bf16.mxu0 0
  %64 = vmatpush1.bf16.msra.mxu0 0
  %65 = vmatprep.mubr.bf16.mxu0 0
  %66 = vmatmul.mubr.bf16.gmra.mrb[0].mxu0 %v31
  %v67 = vpop.f32.mrb[0].mxu0
  %v68 = vadd.f32 0.0, %v67
  %v69 = vpop.f32.mrb[0].mxu0
  %v70 = vpop.f32.mrb[0].mxu0
  %v71 = vpop.f32.mrb[0].mxu0
  %72 = vdwg.mxu0
  %vm73 = vcmask 254976
  %74 = vst.msk [vmem:[%s2] sm:$0x3] %vm73, %v68
  // Predicated region
  $region10: #{deeplab_forward.25} parent=0 // pred_check
    _
  $region11: #{deeplab_forward.25} parent=0 // pred_check_branch
    %76 = sbr.rel (0) target = $region13
  $region12: #{deeplab_forward.25} parent=0 // pred_region
    _
  $region13: #{deeplab_forward.25} parent=0 // pred_fallthru
    _
  // Predicated region
  $region14: #{deeplab_forward.25} parent=0 // pred_check
    _
  $region15: #{deeplab_forward.25} parent=0 // pred_check_branch
    %78 = sbr.rel (0) target = $region17
  $region16: #{deeplab_forward.25} parent=0 // pred_region
    _
  $region17: #{deeplab_forward.25} parent=0 // pred_fallthru
    _

// kernel: deeplab_forward.19
$region0: #{deeplab_forward.19}
  #allocation0 [shape = 'u32[]', space=smem, size = 0x4, offset = 0x4, fixed_abs, tag = 'smem constant byte address 0x4 - core index']
  #allocation1 [shape = 'u32[144,128]{1,0:T(1,128)}', space=vmem, size = 0x12000, scoped, tag = 'internal scratch']
  %s0 = inlined_call_operand.vmem [shape: bf16[32,64], index: 0, kind: input, shape index: {}]
  %s1 = inlined_call_operand.vmem [shape: bf16[64,32], index: 1, kind: input, shape index: {}]
  %s2 = inlined_call_operand.vmem [shape: f32[1,32], index: 2, kind: input, shape index: {}]
  %s3 = inlined_call_operand.vmem [shape: bf16[32,32], index: 3, kind: output, shape index: {}]
  %s4 = sld [smem:[#allocation0]]
  $region22: #{deeplab_forward.19} parent=0
    _
  %s6 = ssub.s32 1, %s4
  %s7 = scalar_select 0, %s6, %s4
  // Predicated region
  $region2: #{deeplab_forward.19} parent=0 // pred_check
    _
  $region3: #{deeplab_forward.19} parent=0 // pred_check_branch
    %9 = sbr.rel (0) target = $region5
  $region4: #{deeplab_forward.19} parent=0 // pred_region
    _
  $region5: #{deeplab_forward.19} parent=0 // pred_fallthru
    _
  // Predicated region
  $region6: #{deeplab_forward.19} parent=0 // pred_check
    _
  $region7: #{deeplab_forward.19} parent=0 // pred_check_branch
    %11 = sbr.rel (0) target = $region9
  $region8: #{deeplab_forward.19} parent=0 // pred_region
    _
  $region9: #{deeplab_forward.19} parent=0 // pred_fallthru
    _
  // Predicated region
  $region10: #{deeplab_forward.19} parent=0 // pred_check
    _
  $region11: #{deeplab_forward.19} parent=0 // pred_check_branch
    %13 = sbr.rel (0) target = $region13
  $region12: #{deeplab_forward.19} parent=0 // pred_region
    _
  $region13: #{deeplab_forward.19} parent=0 // pred_fallthru
    _
  %v15 = vld [vmem:[%s0] sm:$0xf]
  %v16 = vld [vmem:[%s0 + $0x4] sm:$0xf]
  %v17 = vld [vmem:[%s0 + $0x8] sm:$0xf]
  %v18 = vld [vmem:[%s0 + $0xc] sm:$0xf]
  %v19 = vld [vmem:[%s1] sm:$0xf]
  %v20 = vld [vmem:[%s1 + $0x4] sm:$0xf]
  %v21 = vld [vmem:[%s1 + $0x8] sm:$0xf]
  %v22 = vld [vmem:[%s1 + $0xc] sm:$0xf]
  %v23 = vld [vmem:[%s1 + $0x10] sm:$0xf]
  %v24 = vld [vmem:[%s1 + $0x14] sm:$0xf]
  %v25 = vld [vmem:[%s1 + $0x18] sm:$0xf]
  %v26 = vld [vmem:[%s1 + $0x1c] sm:$0xf]
  %v27 = vld [vmem:[%s2] sm:$0x1]
  %v29 = vlaneseq
  %v30 = vshrl.u32 %v29, 7
  %v31 = vsub.s32 0, %v30
  %v32 = vrot.slane %v27, %v31
  %v38 = vunpack.c.l.b16 %v15
  %v39 = vunpack.c.l.b16 %v16
  %v40 = vunpack.c.l.b16 %v17
  %v41 = vunpack.c.l.b16 %v18
  %v42 = vpack.c.b16 %v39, %v38
  %v43 = vpack.c.b16 %v41, %v40
  %v52 = vunpack.c.l.b16 %v19
  %v53 = vunpack.c.l.b16 %v20
  %v54 = vunpack.c.l.b16 %v21
  %v55 = vunpack.c.l.b16 %v22
  %v56 = vunpack.c.l.b16 %v23
  %v57 = vunpack.c.l.b16 %v24
  %v58 = vunpack.c.l.b16 %v25
  %v59 = vunpack.c.l.b16 %v26
  %v60 = vpack.c.b16 %v53, %v52
  %v61 = vpack.c.b16 %v55, %v54
  %v62 = vpack.c.b16 %v57, %v56
  %v63 = vpack.c.b16 %v59, %v58
  %vm68 = vcmask 523264
  %v70 = vsel %vm68, %v42, 0
  %v73 = vsel %vm68, %v43, 0
  %75 = vmatprep.subr.bf16.mxu0 0
  %76 = vmatpush1.bf16.msra.mxu0 %v60
  %77 = vmatprep.subr.bf16.mxu0 0
  %78 = vmatpush1.bf16.msra.mxu0 %v61
  %79 = vmatprep.subr.bf16.mxu0 0
  %80 = vmatpush1.bf16.msra.mxu0 %v62
  %81 = vmatprep.subr.bf16.mxu0 0
  %82 = vmatpush1.bf16.msra.mxu0 %v63
  %83 = vmatprep.subr.bf16.mxu0 0
  %84 = vmatpush1.bf16.msra.mxu0 0
  %85 = vmatprep.subr.bf16.mxu0 0
  %86 = vmatpush1.bf16.msra.mxu0 0
  %87 = vmatprep.subr.bf16.mxu0 0
  %88 = vmatpush1.bf16.msra.mxu0 0
  %89 = vmatprep.subr.bf16.mxu0 0
  %90 = vmatpush1.bf16.msra.mxu0 0
  %91 = vmatprep.subr.bf16.mxu0 0
  %92 = vmatpush1.bf16.msra.mxu0 0
  %93 = vmatprep.subr.bf16.mxu0 0
  %94 = vmatpush1.bf16.msra.mxu0 0
  %95 = vmatprep.subr.bf16.mxu0 0
  %96 = vmatpush1.bf16.msra.mxu0 0
  %97 = vmatprep.subr.bf16.mxu0 0
  %98 = vmatpush1.bf16.msra.mxu0 0
  %99 = vmatprep.subr.bf16.mxu0 0
  %100 = vmatpush1.bf16.msra.mxu0 0
  %101 = vmatprep.subr.bf16.mxu0 0
  %102 = vmatpush1.bf16.msra.mxu0 0
  %103 = vmatprep.subr.bf16.mxu0 0
  %104 = vmatpush1.bf16.msra.mxu0 0
  %105 = vmatprep.subr.bf16.mxu0 0
  %106 = vmatpush1.bf16.msra.mxu0 0
  %107 = vmatprep.mubr.bf16.mxu0 0
  %108 = vmatmul.mubr.bf16.gmra.mrb[0].mxu0 %v70
  %v109 = vpop.f32.mrb[0].mxu0
  %v110 = vadd.f32 %v32, %v109
  %v111 = vpop.f32.mrb[0].mxu0
  %v112 = vpop.f32.mrb[0].mxu0
  %v113 = vadd.f32 %v32, %v112
  %v114 = vpop.f32.mrb[0].mxu0
  %115 = vmatprep.mubr.bf16.mxu0 0
  %116 = vmatmul.mubr.bf16.gmra.mrb[0].mxu0 %v73
  %v117 = vpop.f32.mrb[0].mxu0
  %v118 = vadd.f32 %v32, %v117
  %v119 = vpop.f32.mrb[0].mxu0
  %v120 = vpop.f32.mrb[0].mxu0
  %v121 = vadd.f32 %v32, %v120
  %v122 = vpop.f32.mrb[0].mxu0
  %123 = vdwg.mxu0
  %v124 = vmax.f32 %v110, 0.0
  %v125 = vmax.f32 %v113, 0.0
  %v126 = vmax.f32 %v118, 0.0
  %v127 = vmax.f32 %v121, 0.0
  %v128 = vpack.c.bf16 %v125, %v124
  %v129 = vpack.c.bf16 %v127, %v126
  %v132 = vunpack.c.l.b16 %v128
  %v133 = vunpack.c.h.b16 %v128
  %v134 = vunpack.c.l.b16 %v129
  %v135 = vunpack.c.h.b16 %v129
  %v136 = vpack.c.b16 %v132, %v132
  %v137 = vpack.c.b16 %v133, %v133
  %v138 = vpack.c.b16 %v134, %v134
  %v139 = vpack.c.b16 %v135, %v135
  %vm144 = vcmask 257024
  %145 = vst.msk [vmem:[%s3] sm:$0xf] %vm144, %v136
  %146 = vst.msk [vmem:[%s3 + $0x4] sm:$0xf] %vm144, %v137
  %147 = vst.msk [vmem:[%s3 + $0x8] sm:$0xf] %vm144, %v138
  %148 = vst.msk [vmem:[%s3 + $0xc] sm:$0xf] %vm144, %v139
  // Predicated region
  $region14: #{deeplab_forward.19} parent=0 // pred_check
    _
  $region15: #{deeplab_forward.19} parent=0 // pred_check_branch
    %150 = sbr.rel (0) target = $region17
  $region16: #{deeplab_forward.19} parent=0 // pred_region
    _
  $region17: #{deeplab_forward.19} parent=0 // pred_fallthru
    _
  // Predicated region
  $region18: #{deeplab_forward.19} parent=0 // pred_check
    _
  $region19: #{deeplab_forward.19} parent=0 // pred_check_branch
    %152 = sbr.rel (0) target = $region21
  $region20: #{deeplab_forward.19} parent=0 // pred_region
    _
  $region21: #{deeplab_forward.19} parent=0 // pred_fallthru
    _

// kernel: deeplab_forward.26
$region0: #{deeplab_forward.26}
  #allocation0 [shape = 'u32[]', space=smem, size = 0x4, offset = 0x4, fixed_abs, tag = 'smem constant byte address 0x4 - core index']
  #allocation1 [shape = 'u32[144,128]{1,0:T(1,128)}', space=vmem, size = 0x12000, scoped, tag = 'internal scratch']
  %s0 = inlined_call_operand.vmem [shape: bf16[2,16,32], index: 0, kind: input, shape index: {}]
  %s1 = inlined_call_operand.vmem [shape: bf16[2,16,32], index: 1, kind: input, shape index: {}]
  %s2 = inlined_call_operand.vmem [shape: bf16[2,16,32], index: 2, kind: input, shape index: {}]
  %s3 = inlined_call_operand.vmem [shape: bf16[2,16,32], index: 3, kind: input, shape index: {}]
  %s4 = inlined_call_operand.vmem [shape: bf16[32,32], index: 4, kind: input, shape index: {}]
  %s5 = inlined_call_operand.vmem [shape: bf16[32,32], index: 5, kind: input, shape index: {}]
  %s6 = inlined_call_operand.vmem [shape: bf16[32,32], index: 6, kind: input, shape index: {}]
  %s7 = inlined_call_operand.vmem [shape: bf16[32,32], index: 7, kind: input, shape index: {}]
  %s8 = inlined_call_operand.vmem [shape: f32[1,32], index: 8, kind: input, shape index: {}]
  %s9 = inlined_call_operand.vmem [shape: f32[2,1,32], index: 9, kind: input, shape index: {}]
  %s10 = inlined_call_operand.vmem [shape: bf16[2,16,32], index: 10, kind: output, shape index: {}]
  %s11 = sld [smem:[#allocation0]]
  $region73: #{deeplab_forward.26} parent=0
    _
  %s13 = ssub.s32 1, %s11
  %s14 = scalar_select 0, %s13, %s11
  loop: start=0, step=1, limit=4
  $region2: #{deeplab_forward.26} parent=0 // loop_pre_header
    _
  $region3: #{deeplab_forward.26} parent=0 // loop_header
    %s16 = sphi 0, %s20
    %p17 = scmp.ge.s32.totalorder %s16, 4
    %s23 = sphi 0, %s35
    %s24 = sphi 0, %s31
    %s25 = sphi 0, %s23
    %s26 = sphi 0, %s24
    %s27 = sphi 0, %s25
    %s28 = sphi 0, %s26
    %s40 = sphi 0, %s42
    %s43 = sphi 0, %s40
    %s44 = sphi 0, %s43
    %s60 = sphi 0, %s44
    %s68 = sphi 0, %s70
    %s71 = sphi 0, %s68
    %s72 = sphi 0, %s71
    %s88 = sphi 0, %s72
    %s96 = sphi 0, %s98
    %s99 = sphi 0, %s96
    %s100 = sphi 0, %s99
    %s116 = sphi 0, %s100
    %s124 = sphi 0, %s126
    %s127 = sphi 0, %s124
    %s128 = sphi 0, %s127
    %s144 = sphi 0, %s128
    %s148 = sphi 0, %s148
    %s150 = sphi 0, %s148
    %s151 = sphi 0, %s150
    %s165 = sphi 0, %s151
    %s169 = sphi 0, %s169
    %s171 = sphi 0, %s169
    %s172 = sphi 0, %s171
    %s186 = sphi 0, %s172
    %s190 = sphi 0, %s190
    %s192 = sphi 0, %s190
    %s193 = sphi 0, %s192
    %s207 = sphi 0, %s193
    %s211 = sphi 0, %s211
    %s213 = sphi 0, %s211
    %s214 = sphi 0, %s213
    %s228 = sphi 0, %s214
    %s232 = sphi 0, %s232
    %s234 = sphi 0, %s232
    %s235 = sphi 0, %s234
    %s249 = sphi 0, %s235
    %s255 = sphi 0, %s257
    %s258 = sphi 0, %s255
    %s259 = sphi 0, %s258
    %s275 = sphi 0, %s259
    %s283 = sphi 0, %s285
    %s286 = sphi 0, %s283
    %s287 = sphi 0, %s286
    %s303 = sphi 0, %s287
  $region4: #{deeplab_forward.26} parent=0 // loop_header_branch
    %19 = sbr.rel (%p17) target = $region8
  $region5: #{deeplab_forward.26} parent=0 // loop_body
    %s21 = ssub.s32 %s16, 1
    %s22 = ssub.s32 %s16, 2
    %s29 = sadd.s32 1, %s24
    %p30 = scmp.ge.s32.totalorder %s29, 1
    %s31 = scalar_select %p30, 0, %s29
    %s32 = sadd.s32 1, %s23
    %s33 = scalar_select %p30, %s32, %s23
    %p34 = scmp.ge.s32.totalorder %s33, 2
    %s35 = scalar_select %p34, 0, %s33
    %s36 = ssub.s32 %s23, %s35
    %s37 = ssub.s32 %s24, %s31
    %s38 = sor.u32 %s36, %s37
    %p39 = scmp.eq.s32.totalorder %s38, 0
    %s41 = sadd.s32 %s40, 1
    %s42 = scalar_select %p39, %s40, %s41
    %p45 = pneg %p39
    %p46 = scmp.eq.s32.totalorder %s16, 1
    %p47 = por %p45, %p46
    %p48 = scmp.ne.s32.totalorder %s40, %s43
    %p49 = scmp.eq.s32.totalorder %s16, 0
    %p50 = por %p48, %p49
    %p51 = scmp.ne.s32.totalorder %s40, %s43
    %p52 = scmp.eq.s32.totalorder %s21, 1
    %p53 = por %p51, %p52
    %p54 = scmp.ne.s32.totalorder %s43, %s44
    %p55 = scmp.eq.s32.totalorder %s21, 0
    %p56 = por %p54, %p55
    %p57 = scmp.ne.s32.totalorder %s43, %s44
    %p58 = scmp.eq.s32.totalorder %s22, 1
    %p59 = por %p57, %p58
    %p61 = scmp.ne.s32.totalorder %s44, %s60
    %p62 = scmp.eq.s32.totalorder %s22, 0
    %p63 = por %p61, %p62
    %s64 = ssub.s32 %s23, %s35
    %s65 = ssub.s32 %s24, %s31
    %s66 = sor.u32 %s64, %s65
    %p67 = scmp.eq.s32.totalorder %s66, 0
    %s69 = sadd.s32 %s68, 1
    %s70 = scalar_select %p67, %s68, %s69
    %p73 = pneg %p67
    %p74 = scmp.eq.s32.totalorder %s16, 1
    %p75 = por %p73, %p74
    %p76 = scmp.ne.s32.totalorder %s68, %s71
    %p77 = scmp.eq.s32.totalorder %s16, 0
    %p78 = por %p76, %p77
    %p79 = scmp.ne.s32.totalorder %s68, %s71
    %p80 = scmp.eq.s32.totalorder %s21, 1
    %p81 = por %p79, %p80
    %p82 = scmp.ne.s32.totalorder %s71, %s72
    %p83 = scmp.eq.s32.totalorder %s21, 0
    %p84 = por %p82, %p83
    %p85 = scmp.ne.s32.totalorder %s71, %s72
    %p86 = scmp.eq.s32.totalorder %s22, 1
    %p87 = por %p85, %p86
    %p89 = scmp.ne.s32.totalorder %s72, %s88
    %p90 = scmp.eq.s32.totalorder %s22, 0
    %p91 = por %p89, %p90
    %s92 = ssub.s32 %s23, %s35
    %s93 = ssub.s32 %s24, %s31
    %s94 = sor.u32 %s92, %s93
    %p95 = scmp.eq.s32.totalorder %s94, 0
    %s97 = sadd.s32 %s96, 1
    %s98 = scalar_select %p95, %s96, %s97
    %p101 = pneg %p95
    %p102 = scmp.eq.s32.totalorder %s16, 1
    %p103 = por %p101, %p102
    %p104 = scmp.ne.s32.totalorder %s96, %s99
    %p105 = scmp.eq.s32.totalorder %s16, 0
    %p106 = por %p104, %p105
    %p107 = scmp.ne.s32.totalorder %s96, %s99
    %p108 = scmp.eq.s32.totalorder %s21, 1
    %p109 = por %p107, %p108
    %p110 = scmp.ne.s32.totalorder %s99, %s100
    %p111 = scmp.eq.s32.totalorder %s21, 0
    %p112 = por %p110, %p111
    %p113 = scmp.ne.s32.totalorder %s99, %s100
    %p114 = scmp.eq.s32.totalorder %s22, 1
    %p115 = por %p113, %p114
    %p117 = scmp.ne.s32.totalorder %s100, %s116
    %p118 = scmp.eq.s32.totalorder %s22, 0
    %p119 = por %p117, %p118
    %s120 = ssub.s32 %s23, %s35
    %s121 = ssub.s32 %s24, %s31
    %s122 = sor.u32 %s120, %s121
    %p123 = scmp.eq.s32.totalorder %s122, 0
    %s125 = sadd.s32 %s124, 1
    %s126 = scalar_select %p123, %s124, %s125
    %p129 = pneg %p123
    %p130 = scmp.eq.s32.totalorder %s16, 1
    %p131 = por %p129, %p130
    %p132 = scmp.ne.s32.totalorder %s124, %s127
    %p133 = scmp.eq.s32.totalorder %s16, 0
    %p134 = por %p132, %p133
    %p135 = scmp.ne.s32.totalorder %s124, %s127
    %p136 = scmp.eq.s32.totalorder %s21, 1
    %p137 = por %p135, %p136
    %p138 = scmp.ne.s32.totalorder %s127, %s128
    %p139 = scmp.eq.s32.totalorder %s21, 0
    %p140 = por %p138, %p139
    %p141 = scmp.ne.s32.totalorder %s127, %s128
    %p142 = scmp.eq.s32.totalorder %s22, 1
    %p143 = por %p141, %p142
    %p145 = scmp.ne.s32.totalorder %s128, %s144
    %p146 = scmp.eq.s32.totalorder %s22, 0
    %p147 = por %p145, %p146
    %s149 = sadd.s32 %s148, 1
    %p152 = scmp.eq.s32.totalorder %s16, 1
    %p153 = scmp.ne.s32.totalorder %s148, %s150
    %p154 = scmp.eq.s32.totalorder %s16, 0
    %p155 = por %p153, %p154
    %p156 = scmp.ne.s32.totalorder %s148, %s150
    %p157 = scmp.eq.s32.totalorder %s21, 1
    %p158 = por %p156, %p157
    %p159 = scmp.ne.s32.totalorder %s150, %s151
    %p160 = scmp.eq.s32.totalorder %s21, 0
    %p161 = por %p159, %p160
    %p162 = scmp.ne.s32.totalorder %s150, %s151
    %p163 = scmp.eq.s32.totalorder %s22, 1
    %p164 = por %p162, %p163
    %p166 = scmp.ne.s32.totalorder %s151, %s165
    %p167 = scmp.eq.s32.totalorder %s22, 0
    %p168 = por %p166, %p167
    %s170 = sadd.s32 %s169, 1
    %p173 = scmp.eq.s32.totalorder %s16, 1
    %p174 = scmp.ne.s32.totalorder %s169, %s171
    %p175 = scmp.eq.s32.totalorder %s16, 0
    %p176 = por %p174, %p175
    %p177 = scmp.ne.s32.totalorder %s169, %s171
    %p178 = scmp.eq.s32.totalorder %s21, 1
    %p179 = por %p177, %p178
    %p180 = scmp.ne.s32.totalorder %s171, %s172
    %p181 = scmp.eq.s32.totalorder %s21, 0
    %p182 = por %p180, %p181
    %p183 = scmp.ne.s32.totalorder %s171, %s172
    %p184 = scmp.eq.s32.totalorder %s22, 1
    %p185 = por %p183, %p184
    %p187 = scmp.ne.s32.totalorder %s172, %s186
    %p188 = scmp.eq.s32.totalorder %s22, 0
    %p189 = por %p187, %p188
    %s191 = sadd.s32 %s190, 1
    %p194 = scmp.eq.s32.totalorder %s16, 1
    %p195 = scmp.ne.s32.totalorder %s190, %s192
    %p196 = scmp.eq.s32.totalorder %s16, 0
    %p197 = por %p195, %p196
    %p198 = scmp.ne.s32.totalorder %s190, %s192
    %p199 = scmp.eq.s32.totalorder %s21, 1
    %p200 = por %p198, %p199
    %p201 = scmp.ne.s32.totalorder %s192, %s193
    %p202 = scmp.eq.s32.totalorder %s21, 0
    %p203 = por %p201, %p202
    %p204 = scmp.ne.s32.totalorder %s192, %s193
    %p205 = scmp.eq.s32.totalorder %s22, 1
    %p206 = por %p204, %p205
    %p208 = scmp.ne.s32.totalorder %s193, %s207
    %p209 = scmp.eq.s32.totalorder %s22, 0
    %p210 = por %p208, %p209
    %s212 = sadd.s32 %s211, 1
    %p215 = scmp.eq.s32.totalorder %s16, 1
    %p216 = scmp.ne.s32.totalorder %s211, %s213
    %p217 = scmp.eq.s32.totalorder %s16, 0
    %p218 = por %p216, %p217
    %p219 = scmp.ne.s32.totalorder %s211, %s213
    %p220 = scmp.eq.s32.totalorder %s21, 1
    %p221 = por %p219, %p220
    %p222 = scmp.ne.s32.totalorder %s213, %s214
    %p223 = scmp.eq.s32.totalorder %s21, 0
    %p224 = por %p222, %p223
    %p225 = scmp.ne.s32.totalorder %s213, %s214
    %p226 = scmp.eq.s32.totalorder %s22, 1
    %p227 = por %p225, %p226
    %p229 = scmp.ne.s32.totalorder %s214, %s228
    %p230 = scmp.eq.s32.totalorder %s22, 0
    %p231 = por %p229, %p230
    %s233 = sadd.s32 %s232, 1
    %p236 = scmp.eq.s32.totalorder %s16, 1
    %p237 = scmp.ne.s32.totalorder %s232, %s234
    %p238 = scmp.eq.s32.totalorder %s16, 0
    %p239 = por %p237, %p238
    %p240 = scmp.ne.s32.totalorder %s232, %s234
    %p241 = scmp.eq.s32.totalorder %s21, 1
    %p242 = por %p240, %p241
    %p243 = scmp.ne.s32.totalorder %s234, %s235
    %p244 = scmp.eq.s32.totalorder %s21, 0
    %p245 = por %p243, %p244
    %p246 = scmp.ne.s32.totalorder %s234, %s235
    %p247 = scmp.eq.s32.totalorder %s22, 1
    %p248 = por %p246, %p247
    %p250 = scmp.ne.s32.totalorder %s235, %s249
    %p251 = scmp.eq.s32.totalorder %s22, 0
    %p252 = por %p250, %p251
    %s253 = ssub.s32 %s23, %s35
    %p254 = scmp.eq.s32.totalorder %s253, 0
    %s256 = sadd.s32 %s255, 1
    %s257 = scalar_select %p254, %s255, %s256
    %p260 = pneg %p254
    %p261 = scmp.eq.s32.totalorder %s16, 1
    %p262 = por %p260, %p261
    %p263 = scmp.ne.s32.totalorder %s255, %s258
    %p264 = scmp.eq.s32.totalorder %s16, 0
    %p265 = por %p263, %p264
    %p266 = scmp.ne.s32.totalorder %s255, %s258
    %p267 = scmp.eq.s32.totalorder %s21, 1
    %p268 = por %p266, %p267
    %p269 = scmp.ne.s32.totalorder %s258, %s259
    %p270 = scmp.eq.s32.totalorder %s21, 0
    %p271 = por %p269, %p270
    %p272 = scmp.ne.s32.totalorder %s258, %s259
    %p273 = scmp.eq.s32.totalorder %s22, 1
    %p274 = por %p272, %p273
    %p276 = scmp.ne.s32.totalorder %s259, %s275
    %p277 = scmp.eq.s32.totalorder %s22, 0
    %p278 = por %p276, %p277
    %s279 = ssub.s32 %s23, %s35
    %s280 = ssub.s32 %s24, %s31
    %s281 = sor.u32 %s279, %s280
    %p282 = scmp.eq.s32.totalorder %s281, 0
    %s284 = sadd.s32 %s283, 1
    %s285 = scalar_select %p282, %s283, %s284
    %p288 = pneg %p282
    %p289 = scmp.eq.s32.totalorder %s16, 1
    %p290 = por %p288, %p289
    %p291 = scmp.ne.s32.totalorder %s283, %s286
    %p292 = scmp.eq.s32.totalorder %s16, 0
    %p293 = por %p291, %p292
    %p294 = scmp.ne.s32.totalorder %s283, %s286
    %p295 = scmp.eq.s32.totalorder %s21, 1
    %p296 = por %p294, %p295
    %p297 = scmp.ne.s32.totalorder %s286, %s287
    %p298 = scmp.eq.s32.totalorder %s21, 0
    %p299 = por %p297, %p298
    %p300 = scmp.ne.s32.totalorder %s286, %s287
    %p301 = scmp.eq.s32.totalorder %s22, 1
    %p302 = por %p300, %p301
    %p304 = scmp.ne.s32.totalorder %s287, %s303
    %p305 = scmp.eq.s32.totalorder %s22, 0
    %p306 = por %p304, %p305
    %p307 = scmp.le.s32.totalorder 1, %s16
    %p308 = scmp.lt.s32.totalorder %s16, 3
    %p309 = pnand %p307, %p308
    %p310 = pneg %p309
    // Predicated region
    $region9: #{deeplab_forward.26} parent=5 // pred_check
      _
    $region10: #{deeplab_forward.26} parent=5 // pred_check_branch
      %312 = sbr.rel (%p309) target = $region12
    $region11: #{deeplab_forward.26} parent=5 // pred_region
      %s313 = ssub.s32 %s16, 1
      // Predicated region
      $region13: #{deeplab_forward.26} parent=11 // pred_check
        %p314 = pneg %p161
      $region14: #{deeplab_forward.26} parent=11 // pred_check_branch
        %316 = sbr.rel (%p314) target = $region16
      $region15: #{deeplab_forward.26} parent=11 // pred_region
        _
      $region16: #{deeplab_forward.26} parent=11 // pred_fallthru
        _
      // Predicated region
      $region17: #{deeplab_forward.26} parent=11 // pred_check
        %p317 = pneg %p182
      $region18: #{deeplab_forward.26} parent=11 // pred_check_branch
        %319 = sbr.rel (%p317) target = $region20
      $region19: #{deeplab_forward.26} parent=11 // pred_region
        _
      $region20: #{deeplab_forward.26} parent=11 // pred_fallthru
        _
      // Predicated region
      $region21: #{deeplab_forward.26} parent=11 // pred_check
        %p320 = pneg %p203
      $region22: #{deeplab_forward.26} parent=11 // pred_check_branch
        %322 = sbr.rel (%p320) target = $region24
      $region23: #{deeplab_forward.26} parent=11 // pred_region
        _
      $region24: #{deeplab_forward.26} parent=11 // pred_fallthru
        _
      // Predicated region
      $region25: #{deeplab_forward.26} parent=11 // pred_check
        %p323 = pneg %p224
      $region26: #{deeplab_forward.26} parent=11 // pred_check_branch
        %325 = sbr.rel (%p323) target = $region28
      $region27: #{deeplab_forward.26} parent=11 // pred_region
        _
      $region28: #{deeplab_forward.26} parent=11 // pred_fallthru
        _
      // Predicated region
      $region29: #{deeplab_forward.26} parent=11 // pred_check
        %p326 = pneg %p245
      $region30: #{deeplab_forward.26} parent=11 // pred_check_branch
        %328 = sbr.rel (%p326) target = $region32
      $region31: #{deeplab_forward.26} parent=11 // pred_region
        _
      $region32: #{deeplab_forward.26} parent=11 // pred_fallthru
        _
    $region12: #{deeplab_forward.26} parent=5 // pred_fallthru
      _
    %p329 = scmp.lt.s32.totalorder %s16, 2
    // Predicated region
    $region33: #{deeplab_forward.26} parent=5 // pred_check
      %p330 = pneg %p329
    $region34: #{deeplab_forward.26} parent=5 // pred_check_branch
      %332 = sbr.rel (%p330) target = $region36
    $region35: #{deeplab_forward.26} parent=5 // pred_region
      // Predicated region
      $region37: #{deeplab_forward.26} parent=35 // pred_check
        %p333 = pneg %p50
      $region38: #{deeplab_forward.26} parent=35 // pred_check_branch
        %335 = sbr.rel (%p333) target = $region40
      $region39: #{deeplab_forward.26} parent=35 // pred_region
        %s336 = smul.u32 2, %s24
        %p337 = scmp.lt.s32.totalorder %s23, 1
        %s338 = scalar_select %p337, %s23, 1
        %p339 = scmp.lt.s32.totalorder %s336, 1
        %s340 = scalar_select %p339, %s336, 1
        %s341 = smul.addr %s338, 2
        %s342 = sadd.s32 %s340, %s341
        %s343 = smul.addr %s342, 4
        %s344 = scalar_lea.vmem %s0, %s343
        %s345 = smul.u32 2, %s24
      $region40: #{deeplab_forward.26} parent=35 // pred_fallthru
        _
      // Predicated region
      $region41: #{deeplab_forward.26} parent=35 // pred_check
        %p346 = pneg %p78
      $region42: #{deeplab_forward.26} parent=35 // pred_check_branch
        %348 = sbr.rel (%p346) target = $region44
      $region43: #{deeplab_forward.26} parent=35 // pred_region
        %s349 = smul.u32 2, %s24
        %p350 = scmp.lt.s32.totalorder %s23, 1
        %s351 = scalar_select %p350, %s23, 1
        %p352 = scmp.lt.s32.totalorder %s349, 1
        %s353 = scalar_select %p352, %s349, 1
        %s354 = smul.addr %s351, 2
        %s355 = sadd.s32 %s353, %s354
        %s356 = smul.addr %s355, 4
        %s357 = scalar_lea.vmem %s1, %s356
        %s358 = smul.u32 2, %s24
      $region44: #{deeplab_forward.26} parent=35 // pred_fallthru
        _
      // Predicated region
      $region45: #{deeplab_forward.26} parent=35 // pred_check
        %p359 = pneg %p106
      $region46: #{deeplab_forward.26} parent=35 // pred_check_branch
        %361 = sbr.rel (%p359) target = $region48
      $region47: #{deeplab_forward.26} parent=35 // pred_region
        %s362 = smul.u32 2, %s24
        %p363 = scmp.lt.s32.totalorder %s23, 1
        %s364 = scalar_select %p363, %s23, 1
        %p365 = scmp.lt.s32.totalorder %s362, 1
        %s366 = scalar_select %p365, %s362, 1
        %s367 = smul.addr %s364, 2
        %s368 = sadd.s32 %s366, %s367
        %s369 = smul.addr %s368, 4
        %s370 = scalar_lea.vmem %s2, %s369
        %s371 = smul.u32 2, %s24
      $region48: #{deeplab_forward.26} parent=35 // pred_fallthru
        _
      // Predicated region
      $region49: #{deeplab_forward.26} parent=35 // pred_check
        %p372 = pneg %p134
      $region50: #{deeplab_forward.26} parent=35 // pred_check_branch
        %374 = sbr.rel (%p372) target = $region52
      $region51: #{deeplab_forward.26} parent=35 // pred_region
        %s375 = smul.u32 2, %s24
        %p376 = scmp.lt.s32.totalorder %s23, 1
        %s377 = scalar_select %p376, %s23, 1
        %p378 = scmp.lt.s32.totalorder %s375, 1
        %s379 = scalar_select %p378, %s375, 1
        %s380 = smul.addr %s377, 2
        %s381 = sadd.s32 %s379, %s380
        %s382 = smul.addr %s381, 4
        %s383 = scalar_lea.vmem %s3, %s382
        %s384 = smul.u32 2, %s24
      $region52: #{deeplab_forward.26} parent=35 // pred_fallthru
        _
      // Predicated region
      $region53: #{deeplab_forward.26} parent=35 // pred_check
        %p385 = pneg %p265
      $region54: #{deeplab_forward.26} parent=35 // pred_check_branch
        %387 = sbr.rel (%p385) target = $region56
      $region55: #{deeplab_forward.26} parent=35 // pred_region
        %p388 = scmp.lt.s32.totalorder %s23, 1
        %s389 = scalar_select %p388, %s23, 1
        %s390 = scalar_lea.vmem %s9, %s389
      $region56: #{deeplab_forward.26} parent=35 // pred_fallthru
        _
    $region36: #{deeplab_forward.26} parent=5 // pred_fallthru
      _
    %p391 = scmp.le.s32.totalorder 1, %s16
    %p392 = scmp.lt.s32.totalorder %s16, 3
    %p393 = pnand %p391, %p392
    %p394 = pneg %p393
    // Predicated region
    $region57: #{deeplab_forward.26} parent=5 // pred_check
      _
    $region58: #{deeplab_forward.26} parent=5 // pred_check_branch
      %396 = sbr.rel (%p393) target = $region60
    $region59: #{deeplab_forward.26} parent=5 // pred_region
      %s397 = ssub.s32 %s16, 1
      %s398 = smul.u32 2, %s26
      %p399 = scmp.lt.s32.totalorder %s25, 1
      %s400 = scalar_select %p399, %s25, 1
      %p401 = scmp.lt.s32.totalorder %s398, 1
      %s402 = scalar_select %p401, %s398, 1
      %s403 = smul.addr %s400, 2
      %s404 = sadd.s32 %s402, %s403
      %s405 = smul.addr %s404, 4
      %s406 = scalar_lea.vmem %s0, %s405
      %p407 = pneg %p56
      %p408 = pneg %p53
      %s409 = smul.u32 2, %s26
      %p410 = scmp.lt.s32.totalorder %s25, 1
      %s411 = scalar_select %p410, %s25, 1
      %p412 = scmp.lt.s32.totalorder %s409, 1
      %s413 = scalar_select %p412, %s409, 1
      %s414 = smul.addr %s411, 2
      %s415 = sadd.s32 %s413, %s414
      %s416 = smul.addr %s415, 4
      %s417 = scalar_lea.vmem %s1, %s416
      %p418 = pneg %p84
      %p419 = pneg %p81
      %s420 = smul.u32 2, %s26
      %p421 = scmp.lt.s32.totalorder %s25, 1
      %s422 = scalar_select %p421, %s25, 1
      %p423 = scmp.lt.s32.totalorder %s420, 1
      %s424 = scalar_select %p423, %s420, 1
      %s425 = smul.addr %s422, 2
      %s426 = sadd.s32 %s424, %s425
      %s427 = smul.addr %s426, 4
      %s428 = scalar_lea.vmem %s2, %s427
      %p429 = pneg %p112
      %p430 = pneg %p109
      %s431 = smul.u32 2, %s26
      %p432 = scmp.lt.s32.totalorder %s25, 1
      %s433 = scalar_select %p432, %s25, 1
      %p434 = scmp.lt.s32.totalorder %s431, 1
      %s435 = scalar_select %p434, %s431, 1
      %s436 = smul.addr %s433, 2
      %s437 = sadd.s32 %s435, %s436
      %s438 = smul.addr %s437, 4
      %s439 = scalar_lea.vmem %s3, %s438
      %p440 = pneg %p140
      %p441 = pneg %p137
      %p442 = pneg %p161
      %p443 = pneg %p158
      %p444 = pneg %p182
      %p445 = pneg %p179
      %p446 = pneg %p203
      %p447 = pneg %p200
      %p448 = pneg %p224
      %p449 = pneg %p221
      %p450 = pneg %p245
      %p451 = pneg %p242
      %p452 = scmp.lt.s32.totalorder %s25, 1
      %s453 = scalar_select %p452, %s25, 1
      %s454 = scalar_lea.vmem %s9, %s453
      %p455 = pneg %p271
      %p456 = pneg %p268
      %p457 = pneg %p299
      %p458 = pneg %p296
      %s459 = smul.u32 2, %s26
      %p460 = scmp.lt.s32.totalorder %s25, 1
      %s461 = scalar_select %p460, %s25, 1
      %p462 = scmp.lt.s32.totalorder %s459, 1
      %s463 = scalar_select %p462, %s459, 1
      %s464 = smul.addr %s461, 2
      %s465 = sadd.s32 %s463, %s464
      %s466 = smul.addr %s465, 4
      %s467 = scalar_lea.vmem %s10, %s466
      %s468 = smul.u32 2, %s26
      %p469 = scmp.lt.s32.totalorder %s25, 1
      %s470 = scalar_select %p469, %s25, 1
      %p471 = scmp.lt.s32.totalorder %s468, 1
      %s472 = scalar_select %p471, %s468, 1
      %s473 = smul.addr %s470, 2
      %s474 = sadd.s32 %s472, %s473
      %s475 = smul.addr %s474, 4
      %s476 = scalar_lea.vmem %s0, %s475
      %s477 = smul.u32 2, %s26
      %s478 = smul.u32 2, %s26
      %p479 = scmp.lt.s32.totalorder %s25, 1
      %s480 = scalar_select %p479, %s25, 1
      %p481 = scmp.lt.s32.totalorder %s478, 1
      %s482 = scalar_select %p481, %s478, 1
      %s483 = smul.addr %s480, 2
      %s484 = sadd.s32 %s482, %s483
      %s485 = smul.addr %s484, 4
      %s486 = scalar_lea.vmem %s1, %s485
      %s487 = smul.u32 2, %s26
      %s488 = smul.u32 2, %s26
      %p489 = scmp.lt.s32.totalorder %s25, 1
      %s490 = scalar_select %p489, %s25, 1
      %p491 = scmp.lt.s32.totalorder %s488, 1
      %s492 = scalar_select %p491, %s488, 1
      %s493 = smul.addr %s490, 2
      %s494 = sadd.s32 %s492, %s493
      %s495 = smul.addr %s494, 4
      %s496 = scalar_lea.vmem %s2, %s495
      %s497 = smul.u32 2, %s26
      %s498 = smul.u32 2, %s26
      %p499 = scmp.lt.s32.totalorder %s25, 1
      %s500 = scalar_select %p499, %s25, 1
      %p501 = scmp.lt.s32.totalorder %s498, 1
      %s502 = scalar_select %p501, %s498, 1
      %s503 = smul.addr %s500, 2
      %s504 = sadd.s32 %s502, %s503
      %s505 = smul.addr %s504, 4
      %s506 = scalar_lea.vmem %s3, %s505
      %s507 = smul.u32 2, %s26
      %p508 = scmp.lt.s32.totalorder %s25, 1
      %s509 = scalar_select %p508, %s25, 1
      %s510 = scalar_lea.vmem %s9, %s509
      %s511 = smul.u32 2, %s26
      %p512 = scmp.lt.s32.totalorder %s25, 1
      %s513 = scalar_select %p512, %s25, 1
      %p514 = scmp.lt.s32.totalorder %s511, 1
      %s515 = scalar_select %p514, %s511, 1
      %s516 = smul.addr %s513, 2
      %s517 = sadd.s32 %s515, %s516
      %s518 = smul.addr %s517, 4
      %s519 = scalar_lea.vmem %s10, %s518
      %s520 = smul.u32 2, %s26
      %v522 = vld [vmem:[%s476] sm:$0xf]
      %v523 = vld [vmem:[%s476 + $0x4] sm:$0xf]
      %v524 = vld [vmem:[%s4] sm:$0xf]
      %v525 = vld [vmem:[%s4 + $0x4] sm:$0xf]
      %v526 = vld [vmem:[%s4 + $0x8] sm:$0xf]
      %v527 = vld [vmem:[%s4 + $0xc] sm:$0xf]
      %v528 = vld [vmem:[%s486] sm:$0xf]
      %v529 = vld [vmem:[%s486 + $0x4] sm:$0xf]
      %v530 = vld [vmem:[%s5] sm:$0xf]
      %v531 = vld [vmem:[%s5 + $0x4] sm:$0xf]
      %v532 = vld [vmem:[%s5 + $0x8] sm:$0xf]
      %v533 = vld [vmem:[%s5 + $0xc] sm:$0xf]
      %v536 = vunpack.c.l.b16 %v528
      %v537 = vunpack.c.l.b16 %v529
      %v538 = vpack.c.b16 %v537, %v536
      %v543 = vunpack.c.l.b16 %v530
      %v544 = vunpack.c.l.b16 %v531
      %v545 = vunpack.c.l.b16 %v532
      %v546 = vunpack.c.l.b16 %v533
      %v547 = vpack.c.b16 %v544, %v543
      %v548 = vpack.c.b16 %v546, %v545
      %vm551 = vcmask 261120
      %v553 = vsel %vm551, %v538, 0
      %555 = vmatprep.subr.bf16.mxu0 0
      %556 = vmatpush1.bf16.msra.mxu0 %v547
      %557 = vmatprep.subr.bf16.mxu0 0
      %558 = vmatpush1.bf16.msra.mxu0 %v548
      %559 = vmatprep.subr.bf16.mxu0 0
      %560 = vmatpush1.bf16.msra.mxu0 0
      %561 = vmatprep.subr.bf16.mxu0 0
      %562 = vmatpush1.bf16.msra.mxu0 0
      %563 = vmatprep.subr.bf16.mxu0 0
      %564 = vmatpush1.bf16.msra.mxu0 0
      %565 = vmatprep.subr.bf16.mxu0 0
      %566 = vmatpush1.bf16.msra.mxu0 0
      %567 = vmatprep.subr.bf16.mxu0 0
      %568 = vmatpush1.bf16.msra.mxu0 0
      %569 = vmatprep.subr.bf16.mxu0 0
      %570 = vmatpush1.bf16.msra.mxu0 0
      %571 = vmatprep.subr.bf16.mxu0 0
      %572 = vmatpush1.bf16.msra.mxu0 0
      %573 = vmatprep.subr.bf16.mxu0 0
      %574 = vmatpush1.bf16.msra.mxu0 0
      %575 = vmatprep.subr.bf16.mxu0 0
      %576 = vmatpush1.bf16.msra.mxu0 0
      %577 = vmatprep.subr.bf16.mxu0 0
      %578 = vmatpush1.bf16.msra.mxu0 0
      %579 = vmatprep.subr.bf16.mxu0 0
      %580 = vmatpush1.bf16.msra.mxu0 0
      %581 = vmatprep.subr.bf16.mxu0 0
      %582 = vmatpush1.bf16.msra.mxu0 0
      %583 = vmatprep.subr.bf16.mxu0 0
      %584 = vmatpush1.bf16.msra.mxu0 0
      %585 = vmatprep.subr.bf16.mxu0 0
      %586 = vmatpush1.bf16.msra.mxu0 0
      %587 = vmatprep.mubr.bf16.mxu0 0
      %588 = vmatmul.mubr.bf16.gmra.mrb[0].mxu0 %v553
      %v589 = vpop.f32.mrb[0].mxu0
      %v590 = vadd.f32 0.0, %v589
      %v591 = vpop.f32.mrb[0].mxu0
      %v592 = vpop.f32.mrb[0].mxu0
      %v593 = vadd.f32 0.0, %v592
      %v594 = vpop.f32.mrb[0].mxu0
      %595 = vdwg.mxu0
      %v598 = vunpack.c.l.b16 %v522
      %v599 = vunpack.c.l.b16 %v523
      %v600 = vpack.c.b16 %v599, %v598
      %v605 = vunpack.c.l.b16 %v524
      %v606 = vunpack.c.l.b16 %v525
      %v607 = vunpack.c.l.b16 %v526
      %v608 = vunpack.c.l.b16 %v527
      %v609 = vpack.c.b16 %v606, %v605
      %v610 = vpack.c.b16 %v608, %v607
      %v614 = vsel %vm551, %v600, 0
      %616 = vmatprep.subr.bf16.mxu0 0
      %617 = vmatpush1.bf16.msra.mxu0 %v609
      %618 = vmatprep.subr.bf16.mxu0 0
      %619 = vmatpush1.bf16.msra.mxu0 %v610
      %620 = vmatprep.subr.bf16.mxu0 0
      %621 = vmatpush1.bf16.msra.mxu0 0
      %622 = vmatprep.subr.bf16.mxu0 0
      %623 = vmatpush1.bf16.msra.mxu0 0
      %624 = vmatprep.subr.bf16.mxu0 0
      %625 = vmatpush1.bf16.msra.mxu0 0
      %626 = vmatprep.subr.bf16.mxu0 0
      %627 = vmatpush1.bf16.msra.mxu0 0
      %628 = vmatprep.subr.bf16.mxu0 0
      %629 = vmatpush1.bf16.msra.mxu0 0
      %630 = vmatprep.subr.bf16.mxu0 0
      %631 = vmatpush1.bf16.msra.mxu0 0
      %632 = vmatprep.subr.bf16.mxu0 0
      %633 = vmatpush1.bf16.msra.mxu0 0
      %634 = vmatprep.subr.bf16.mxu0 0
      %635 = vmatpush1.bf16.msra.mxu0 0
      %636 = vmatprep.subr.bf16.mxu0 0
      %637 = vmatpush1.bf16.msra.mxu0 0
      %638 = vmatprep.subr.bf16.mxu0 0
      %639 = vmatpush1.bf16.msra.mxu0 0
      %640 = vmatprep.subr.bf16.mxu0 0
      %641 = vmatpush1.bf16.msra.mxu0 0
      %642 = vmatprep.subr.bf16.mxu0 0
      %643 = vmatpush1.bf16.msra.mxu0 0
      %644 = vmatprep.subr.bf16.mxu0 0
      %645 = vmatpush1.bf16.msra.mxu0 0
      %646 = vmatprep.subr.bf16.mxu0 0
      %647 = vmatpush1.bf16.msra.mxu0 0
      %648 = vmatprep.mubr.bf16.mxu0 0
      %649 = vmatmul.mubr.bf16.gmra.mrb[0].mxu0 %v614
      %v650 = vpop.f32.mrb[0].mxu0
      %v651 = vadd.f32 %v590, %v650
      %v652 = vpop.f32.mrb[0].mxu0
      %v653 = vpop.f32.mrb[0].mxu0
      %v654 = vadd.f32 %v593, %v653
      %v655 = vpop.f32.mrb[0].mxu0
      %656 = vdwg.mxu0
      %v657 = vld [vmem:[%s496] sm:$0xf]
      %v658 = vld [vmem:[%s496 + $0x4] sm:$0xf]
      %v659 = vld [vmem:[%s6] sm:$0xf]
      %v660 = vld [vmem:[%s6 + $0x4] sm:$0xf]
      %v661 = vld [vmem:[%s6 + $0x8] sm:$0xf]
      %v662 = vld [vmem:[%s6 + $0xc] sm:$0xf]
      %v665 = vunpack.c.l.b16 %v657
      %v666 = vunpack.c.l.b16 %v658
      %v667 = vpack.c.b16 %v666, %v665
      %v672 = vunpack.c.l.b16 %v659
      %v673 = vunpack.c.l.b16 %v660
      %v674 = vunpack.c.l.b16 %v661
      %v675 = vunpack.c.l.b16 %v662
      %v676 = vpack.c.b16 %v673, %v672
      %v677 = vpack.c.b16 %v675, %v674
      %v681 = vsel %vm551, %v667, 0
      %683 = vmatprep.subr.bf16.mxu0 0
      %684 = vmatpush1.bf16.msra.mxu0 %v676
      %685 = vmatprep.subr.bf16.mxu0 0
      %686 = vmatpush1.bf16.msra.mxu0 %v677
      %687 = vmatprep.subr.bf16.mxu0 0
      %688 = vmatpush1.bf16.msra.mxu0 0
      %689 = vmatprep.subr.bf16.mxu0 0
      %690 = vmatpush1.bf16.msra.mxu0 0
      %691 = vmatprep.subr.bf16.mxu0 0
      %692 = vmatpush1.bf16.msra.mxu0 0
      %693 = vmatprep.subr.bf16.mxu0 0
      %694 = vmatpush1.bf16.msra.mxu0 0
      %695 = vmatprep.subr.bf16.mxu0 0
      %696 = vmatpush1.bf16.msra.mxu0 0
      %697 = vmatprep.subr.bf16.mxu0 0
      %698 = vmatpush1.bf16.msra.mxu0 0
      %699 = vmatprep.subr.bf16.mxu0 0
      %700 = vmatpush1.bf16.msra.mxu0 0
      %701 = vmatprep.subr.bf16.mxu0 0
      %702 = vmatpush1.bf16.msra.mxu0 0
      %703 = vmatprep.subr.bf16.mxu0 0
      %704 = vmatpush1.bf16.msra.mxu0 0
      %705 = vmatprep.subr.bf16.mxu0 0
      %706 = vmatpush1.bf16.msra.mxu0 0
      %707 = vmatprep.subr.bf16.mxu0 0
      %708 = vmatpush1.bf16.msra.mxu0 0
      %709 = vmatprep.subr.bf16.mxu0 0
      %710 = vmatpush1.bf16.msra.mxu0 0
      %711 = vmatprep.subr.bf16.mxu0 0
      %712 = vmatpush1.bf16.msra.mxu0 0
      %713 = vmatprep.subr.bf16.mxu0 0
      %714 = vmatpush1.bf16.msra.mxu0 0
      %715 = vmatprep.mubr.bf16.mxu0 0
      %716 = vmatmul.mubr.bf16.gmra.mrb[0].mxu0 %v681
      %v717 = vpop.f32.mrb[0].mxu0
      %v718 = vadd.f32 0.0, %v717
      %v719 = vpop.f32.mrb[0].mxu0
      %v720 = vpop.f32.mrb[0].mxu0
      %v721 = vadd.f32 0.0, %v720
      %v722 = vpop.f32.mrb[0].mxu0
      %723 = vdwg.mxu0
      %v724 = vadd.f32 %v651, %v718
      %v725 = vadd.f32 %v654, %v721
      %v726 = vld [vmem:[%s506] sm:$0xf]
      %v727 = vld [vmem:[%s506 + $0x4] sm:$0xf]
      %v728 = vld [vmem:[%s7] sm:$0xf]
      %v729 = vld [vmem:[%s7 + $0x4] sm:$0xf]
      %v730 = vld [vmem:[%s7 + $0x8] sm:$0xf]
      %v731 = vld [vmem:[%s7 + $0xc] sm:$0xf]
      %v734 = vunpack.c.l.b16 %v726
      %v735 = vunpack.c.l.b16 %v727
      %v736 = vpack.c.b16 %v735, %v734
      %v741 = vunpack.c.l.b16 %v728
      %v742 = vunpack.c.l.b16 %v729
      %v743 = vunpack.c.l.b16 %v730
      %v744 = vunpack.c.l.b16 %v731
      %v745 = vpack.c.b16 %v742, %v741
      %v746 = vpack.c.b16 %v744, %v743
      %v750 = vsel %vm551, %v736, 0
      %752 = vmatprep.subr.bf16.mxu0 0
      %753 = vmatpush1.bf16.msra.mxu0 %v745
      %754 = vmatprep.subr.bf16.mxu0 0
      %755 = vmatpush1.bf16.msra.mxu0 %v746
      %756 = vmatprep.subr.bf16.mxu0 0
      %757 = vmatpush1.bf16.msra.mxu0 0
      %758 = vmatprep.subr.bf16.mxu0 0
      %759 = vmatpush1.bf16.msra.mxu0 0
      %760 = vmatprep.subr.bf16.mxu0 0
      %761 = vmatpush1.bf16.msra.mxu0 0
      %762 = vmatprep.subr.bf16.mxu0 0
      %763 = vmatpush1.bf16.msra.mxu0 0
      %764 = vmatprep.subr.bf16.mxu0 0
      %765 = vmatpush1.bf16.msra.mxu0 0
      %766 = vmatprep.subr.bf16.mxu0 0
      %767 = vmatpush1.bf16.msra.mxu0 0
      %768 = vmatprep.subr.bf16.mxu0 0
      %769 = vmatpush1.bf16.msra.mxu0 0
      %770 = vmatprep.subr.bf16.mxu0 0
      %771 = vmatpush1.bf16.msra.mxu0 0
      %772 = vmatprep.subr.bf16.mxu0 0
      %773 = vmatpush1.bf16.msra.mxu0 0
      %774 = vmatprep.subr.bf16.mxu0 0
      %775 = vmatpush1.bf16.msra.mxu0 0
      %776 = vmatprep.subr.bf16.mxu0 0
      %777 = vmatpush1.bf16.msra.mxu0 0
      %778 = vmatprep.subr.bf16.mxu0 0
      %779 = vmatpush1.bf16.msra.mxu0 0
      %780 = vmatprep.subr.bf16.mxu0 0
      %781 = vmatpush1.bf16.msra.mxu0 0
      %782 = vmatprep.subr.bf16.mxu0 0
      %783 = vmatpush1.bf16.msra.mxu0 0
      %784 = vmatprep.mubr.bf16.mxu0 0
      %785 = vmatmul.mubr.bf16.gmra.mrb[0].mxu0 %v750
      %v786 = vpop.f32.mrb[0].mxu0
      %v787 = vadd.f32 0.0, %v786
      %v788 = vpop.f32.mrb[0].mxu0
      %v789 = vpop.f32.mrb[0].mxu0
      %v790 = vadd.f32 0.0, %v789
      %v791 = vpop.f32.mrb[0].mxu0
      %792 = vdwg.mxu0
      %v793 = vadd.f32 %v724, %v787
      %v794 = vadd.f32 %v725, %v790
      %v795 = vld [vmem:[%s8] sm:$0x1]
      %v797 = vlaneseq
      %v798 = vshrl.u32 %v797, 7
      %v799 = vsub.s32 0, %v798
      %v800 = vrot.slane %v795, %v799
      %v802 = vadd.f32 %v793, %v800
      %v803 = vadd.f32 %v794, %v800
      %v804 = vld [vmem:[%s510] sm:$0x1]
      %v806 = vlaneseq
      %v807 = vshrl.u32 %v806, 7
      %v808 = vsub.s32 0, %v807
      %v809 = vrot.slane %v804, %v808
      %v811 = vadd.f32 %v802, %v809
      %v812 = vadd.f32 %v803, %v809
      %v813 = vmax.f32 %v811, 0.0
      %v814 = vmax.f32 %v812, 0.0
      %v815 = vpack.c.bf16 %v814, %v813
      %v817 = vunpack.c.l.b16 %v815
      %v818 = vunpack.c.h.b16 %v815
      %v819 = vpack.c.b16 %v817, %v817
      %v820 = vpack.c.b16 %v818, %v818
      %vm823 = vcmask 257024
      %824 = vst.msk [vmem:[%s519] sm:$0xf] %vm823, %v819
      %825 = vst.msk [vmem:[%s519 + $0x4] sm:$0xf] %vm823, %v820
      %s826 = smul.u32 2, %s26
      %p827 = scmp.lt.s32.totalorder %s25, 1
      %s828 = scalar_select %p827, %s25, 1
      %p829 = scmp.lt.s32.totalorder %s826, 1
      %s830 = scalar_select %p829, %s826, 1
      %s831 = smul.addr %s828, 2
      %s832 = sadd.s32 %s830, %s831
      %s833 = smul.addr %s832, 4
      %s834 = scalar_lea.vmem %s10, %s833
      // Predicated region
      $region61: #{deeplab_forward.26} parent=59 // pred_check
        %p835 = pneg %p296
      $region62: #{deeplab_forward.26} parent=59 // pred_check_branch
        %837 = sbr.rel (%p835) target = $region64
      $region63: #{deeplab_forward.26} parent=59 // pred_region
        %s838 = smul.u32 2, %s26
      $region64: #{deeplab_forward.26} parent=59 // pred_fallthru
        _
    $region60: #{deeplab_forward.26} parent=5 // pred_fallthru
      _
    %p839 = scmp.le.s32.totalorder 2, %s16
    // Predicated region
    $region65: #{deeplab_forward.26} parent=5 // pred_check
      %p840 = pneg %p839
    $region66: #{deeplab_forward.26} parent=5 // pred_check_branch
      %842 = sbr.rel (%p840) target = $region68
    $region67: #{deeplab_forward.26} parent=5 // pred_region
      %s843 = ssub.s32 %s16, 2
      // Predicated region
      $region69: #{deeplab_forward.26} parent=67 // pred_check
        %p844 = pneg %p302
      $region70: #{deeplab_forward.26} parent=67 // pred_check_branch
        %846 = sbr.rel (%p844) target = $region72
      $region71: #{deeplab_forward.26} parent=67 // pred_region
        %s847 = smul.u32 2, %s28
        %p848 = scmp.lt.s32.totalorder %s27, 1
        %s849 = scalar_select %p848, %s27, 1
        %p850 = scmp.lt.s32.totalorder %s847, 1
        %s851 = scalar_select %p850, %s847, 1
        %s852 = smul.addr %s849, 2
        %s853 = sadd.s32 %s851, %s852
        %s854 = smul.addr %s853, 4
        %s855 = scalar_lea.vmem %s10, %s854
      $region72: #{deeplab_forward.26} parent=67 // pred_fallthru
        _
    $region68: #{deeplab_forward.26} parent=5 // pred_fallthru
      _
  $region6: #{deeplab_forward.26} parent=0 // loop_footer
    %s20 = sadd.s32 1, %s16
  $region7: #{deeplab_forward.26} parent=0 // loop_footer_branch
    %15 = sbr.rel target = $region3
  $region8: #{deeplab_forward.26} parent=0 // loop_exit
    _

// kernel: deeplab_forward.27
$region0: #{deeplab_forward.27}
  #allocation0 [shape = 'u32[]', space=smem, size = 0x4, offset = 0x4, fixed_abs, tag = 'smem constant byte address 0x4 - core index']
  #allocation1 [shape = 'u32[144,128]{1,0:T(1,128)}', space=vmem, size = 0x12000, scoped, tag = 'internal scratch']
  %s0 = inlined_call_operand.vmem [shape: bf16[32,288], index: 0, kind: input, shape index: {}]
  %s1 = inlined_call_operand.vmem [shape: bf16[288,32], index: 1, kind: input, shape index: {}]
  %s2 = inlined_call_operand.vmem [shape: f32[1,32], index: 2, kind: input, shape index: {}]
  %s3 = inlined_call_operand.vmem [shape: bf16[32,32], index: 3, kind: output, shape index: {}]
  %s4 = sld [smem:[#allocation0]]
  $region22: #{deeplab_forward.27} parent=0
    _
  %s6 = ssub.s32 1, %s4
  %s7 = scalar_select 0, %s6, %s4
  // Predicated region
  $region2: #{deeplab_forward.27} parent=0 // pred_check
    _
  $region3: #{deeplab_forward.27} parent=0 // pred_check_branch
    %9 = sbr.rel (0) target = $region5
  $region4: #{deeplab_forward.27} parent=0 // pred_region
    _
  $region5: #{deeplab_forward.27} parent=0 // pred_fallthru
    _
  // Predicated region
  $region6: #{deeplab_forward.27} parent=0 // pred_check
    _
  $region7: #{deeplab_forward.27} parent=0 // pred_check_branch
    %11 = sbr.rel (0) target = $region9
  $region8: #{deeplab_forward.27} parent=0 // pred_region
    _
  $region9: #{deeplab_forward.27} parent=0 // pred_fallthru
    _
  // Predicated region
  $region10: #{deeplab_forward.27} parent=0 // pred_check
    _
  $region11: #{deeplab_forward.27} parent=0 // pred_check_branch
    %13 = sbr.rel (0) target = $region13
  $region12: #{deeplab_forward.27} parent=0 // pred_region
    _
  $region13: #{deeplab_forward.27} parent=0 // pred_fallthru
    _
  %v15 = vld [vmem:[%s0] sm:$0xff]
  %v16 = vld [vmem:[%s0 + $0x8] sm:$0xf]
  %v17 = vld [vmem:[%s0 + $0xc] sm:$0xff]
  %v18 = vld [vmem:[%s0 + $0x14] sm:$0xf]
  %v19 = vld [vmem:[%s0 + $0x18] sm:$0xff]
  %v20 = vld [vmem:[%s0 + $0x20] sm:$0xf]
  %v21 = vld [vmem:[%s0 + $0x24] sm:$0xff]
  %v22 = vld [vmem:[%s0 + $0x2c] sm:$0xf]
  %v23 = vld [vmem:[%s1] sm:$0xf]
  %v24 = vld [vmem:[%s1 + $0x4] sm:$0xf]
  %v25 = vld [vmem:[%s1 + $0x8] sm:$0xf]
  %v26 = vld [vmem:[%s1 + $0xc] sm:$0xf]
  %v27 = vld [vmem:[%s1 + $0x10] sm:$0xf]
  %v28 = vld [vmem:[%s1 + $0x14] sm:$0xf]
  %v29 = vld [vmem:[%s1 + $0x18] sm:$0xf]
  %v30 = vld [vmem:[%s1 + $0x1c] sm:$0xf]
  %v31 = vld [vmem:[%s1 + $0x20] sm:$0xf]
  %v32 = vld [vmem:[%s1 + $0x24] sm:$0xf]
  %v33 = vld [vmem:[%s1 + $0x28] sm:$0xf]
  %v34 = vld [vmem:[%s1 + $0x2c] sm:$0xf]
  %v35 = vld [vmem:[%s1 + $0x30] sm:$0xf]
  %v36 = vld [vmem:[%s1 + $0x34] sm:$0xf]
  %v37 = vld [vmem:[%s1 + $0x38] sm:$0xf]
  %v38 = vld [vmem:[%s1 + $0x3c] sm:$0xf]
  %v39 = vld [vmem:[%s1 + $0x40] sm:$0xf]
  %v40 = vld [vmem:[%s1 + $0x44] sm:$0xf]
  %v41 = vld [vmem:[%s1 + $0x48] sm:$0xf]
  %v42 = vld [vmem:[%s1 + $0x4c] sm:$0xf]
  %v43 = vld [vmem:[%s1 + $0x50] sm:$0xf]
  %v44 = vld [vmem:[%s1 + $0x54] sm:$0xf]
  %v45 = vld [vmem:[%s1 + $0x58] sm:$0xf]
  %v46 = vld [vmem:[%s1 + $0x5c] sm:$0xf]
  %v47 = vld [vmem:[%s1 + $0x60] sm:$0xf]
  %v48 = vld [vmem:[%s1 + $0x64] sm:$0xf]
  %v49 = vld [vmem:[%s1 + $0x68] sm:$0xf]
  %v50 = vld [vmem:[%s1 + $0x6c] sm:$0xf]
  %v51 = vld [vmem:[%s1 + $0x70] sm:$0xf]
  %v52 = vld [vmem:[%s1 + $0x74] sm:$0xf]
  %v53 = vld [vmem:[%s1 + $0x78] sm:$0xf]
  %v54 = vld [vmem:[%s1 + $0x7c] sm:$0xf]
  %v55 = vld [vmem:[%s1 + $0x80] sm:$0xf]
  %v56 = vld [vmem:[%s1 + $0x84] sm:$0xf]
  %v57 = vld [vmem:[%s1 + $0x88] sm:$0xf]
  %v58 = vld [vmem:[%s1 + $0x8c] sm:$0xf]
  %v59 = vld [vmem:[%s2] sm:$0x1]
  %v61 = vlaneseq
  %v62 = vshrl.u32 %v61, 7
  %v63 = vsub.s32 0, %v62
  %v64 = vrot.slane %v59, %v63
  %v74 = vunpack.c.l.b16 %v15
  %v75 = vunpack.c.h.b16 %v15
  %v76 = vunpack.c.l.b16 %v16
  %v77 = vunpack.c.l.b16 %v17
  %v78 = vunpack.c.h.b16 %v17
  %v79 = vunpack.c.l.b16 %v18
  %v80 = vunpack.c.l.b16 %v19
  %v81 = vunpack.c.h.b16 %v19
  %v82 = vunpack.c.l.b16 %v20
  %v83 = vunpack.c.l.b16 %v21
  %v84 = vunpack.c.h.b16 %v21
  %v85 = vunpack.c.l.b16 %v22
  %v86 = vpack.c.b16 %v77, %v74
  %v87 = vpack.c.b16 %v78, %v75
  %v88 = vpack.c.b16 %v79, %v76
  %v89 = vpack.c.b16 %v83, %v80
  %v90 = vpack.c.b16 %v84, %v81
  %v91 = vpack.c.b16 %v85, %v82
  %v132 = vunpack.c.l.b16 %v23
  %v133 = vunpack.c.l.b16 %v24
  %v134 = vunpack.c.l.b16 %v25
  %v135 = vunpack.c.l.b16 %v26
  %v136 = vunpack.c.l.b16 %v27
  %v137 = vunpack.c.l.b16 %v28
  %v138 = vunpack.c.l.b16 %v29
  %v139 = vunpack.c.l.b16 %v30
  %v140 = vunpack.c.l.b16 %v31
  %v141 = vunpack.c.l.b16 %v32
  %v142 = vunpack.c.l.b16 %v33
  %v143 = vunpack.c.l.b16 %v34
  %v144 = vunpack.c.l.b16 %v35
  %v145 = vunpack.c.l.b16 %v36
  %v146 = vunpack.c.l.b16 %v37
  %v147 = vunpack.c.l.b16 %v38
  %v148 = vunpack.c.l.b16 %v39
  %v149 = vunpack.c.l.b16 %v40
  %v150 = vunpack.c.l.b16 %v41
  %v151 = vunpack.c.l.b16 %v42
  %v152 = vunpack.c.l.b16 %v43
  %v153 = vunpack.c.l.b16 %v44
  %v154 = vunpack.c.l.b16 %v45
  %v155 = vunpack.c.l.b16 %v46
  %v156 = vunpack.c.l.b16 %v47
  %v157 = vunpack.c.l.b16 %v48
  %v158 = vunpack.c.l.b16 %v49
  %v159 = vunpack.c.l.b16 %v50
  %v160 = vunpack.c.l.b16 %v51
  %v161 = vunpack.c.l.b16 %v52
  %v162 = vunpack.c.l.b16 %v53
  %v163 = vunpack.c.l.b16 %v54
  %v164 = vunpack.c.l.b16 %v55
  %v165 = vunpack.c.l.b16 %v56
  %v166 = vunpack.c.l.b16 %v57
  %v167 = vunpack.c.l.b16 %v58
  %v168 = vpack.c.b16 %v133, %v132
  %v169 = vpack.c.b16 %v135, %v134
  %v170 = vpack.c.b16 %v137, %v136
  %v171 = vpack.c.b16 %v139, %v138
  %v172 = vpack.c.b16 %v141, %v140
  %v173 = vpack.c.b16 %v143, %v142
  %v174 = vpack.c.b16 %v145, %v144
  %v175 = vpack.c.b16 %v147, %v146
  %v176 = vpack.c.b16 %v149, %v148
  %v177 = vpack.c.b16 %v151, %v150
  %v178 = vpack.c.b16 %v153, %v152
  %v179 = vpack.c.b16 %v155, %v154
  %v180 = vpack.c.b16 %v157, %v156
  %v181 = vpack.c.b16 %v159, %v158
  %v182 = vpack.c.b16 %v161, %v160
  %v183 = vpack.c.b16 %v163, %v162
  %v184 = vpack.c.b16 %v165, %v164
  %v185 = vpack.c.b16 %v167, %v166
  %vm204 = vcmask 261120
  %v206 = vsel %vm204, %v88, 0
  %v209 = vsel %vm204, %v91, 0
  %211 = vmatprep.subr.bf16.mxu0 0
  %212 = vmatpush1.bf16.msra.mxu0 %v168
  %213 = vmatprep.subr.bf16.mxu0 0
  %214 = vmatpush1.bf16.msra.mxu0 %v169
  %215 = vmatprep.subr.bf16.mxu0 0
  %216 = vmatpush1.bf16.msra.mxu0 %v170
  %217 = vmatprep.subr.bf16.mxu0 0
  %218 = vmatpush1.bf16.msra.mxu0 %v171
  %219 = vmatprep.subr.bf16.mxu0 0
  %220 = vmatpush1.bf16.msra.mxu0 %v172
  %221 = vmatprep.subr.bf16.mxu0 0
  %222 = vmatpush1.bf16.msra.mxu0 %v173
  %223 = vmatprep.subr.bf16.mxu0 0
  %224 = vmatpush1.bf16.msra.mxu0 %v174
  %225 = vmatprep.subr.bf16.mxu0 0
  %226 = vmatpush1.bf16.msra.mxu0 %v175
  %227 = vmatprep.subr.bf16.mxu0 0
  %228 = vmatpush1.bf16.msra.mxu0 %v176
  %229 = vmatprep.subr.bf16.mxu0 0
  %230 = vmatpush1.bf16.msra.mxu0 %v177
  %231 = vmatprep.subr.bf16.mxu0 0
  %232 = vmatpush1.bf16.msra.mxu0 %v178
  %233 = vmatprep.subr.bf16.mxu0 0
  %234 = vmatpush1.bf16.msra.mxu0 %v179
  %235 = vmatprep.subr.bf16.mxu0 0
  %236 = vmatpush1.bf16.msra.mxu0 %v180
  %237 = vmatprep.subr.bf16.mxu0 0
  %238 = vmatpush1.bf16.msra.mxu0 %v181
  %239 = vmatprep.subr.bf16.mxu0 0
  %240 = vmatpush1.bf16.msra.mxu0 %v182
  %241 = vmatprep.subr.bf16.mxu0 0
  %242 = vmatpush1.bf16.msra.mxu0 %v183
  %243 = vmatprep.mubr.bf16.mxu0 %v87
  %244 = vmatmul.mubr.bf16.gmra.mrb[0].mxu0 %v86
  %v245 = vpop.f32.mrb[0].mxu0
  %v246 = vadd.f32 %v64, %v245
  %v247 = vpop.f32.mrb[0].mxu0
  %v248 = vpop.f32.mrb[0].mxu0
  %v249 = vadd.f32 %v64, %v248
  %v250 = vpop.f32.mrb[0].mxu0
  %251 = vmatprep.mubr.bf16.mxu0 %v90
  %252 = vmatmul.mubr.bf16.gmra.mrb[0].mxu0 %v89
  %v253 = vpop.f32.mrb[0].mxu0
  %v254 = vadd.f32 %v64, %v253
  %v255 = vpop.f32.mrb[0].mxu0
  %v256 = vpop.f32.mrb[0].mxu0
  %v257 = vadd.f32 %v64, %v256
  %v258 = vpop.f32.mrb[0].mxu0
  %259 = vdwg.mxu0
  %260 = vmatprep.subr.bf16.mxu0 0
  %261 = vmatpush1.bf16.msra.mxu0 %v184
  %262 = vmatprep.subr.bf16.mxu0 0
  %263 = vmatpush1.bf16.msra.mxu0 %v185
  %264 = vmatprep.subr.bf16.mxu0 0
  %265 = vmatpush1.bf16.msra.mxu0 0
  %266 = vmatprep.subr.bf16.mxu0 0
  %267 = vmatpush1.bf16.msra.mxu0 0
  %268 = vmatprep.subr.bf16.mxu0 0
  %269 = vmatpush1.bf16.msra.mxu0 0
  %270 = vmatprep.subr.bf16.mxu0 0
  %271 = vmatpush1.bf16.msra.mxu0 0
  %272 = vmatprep.subr.bf16.mxu0 0
  %273 = vmatpush1.bf16.msra.mxu0 0
  %274 = vmatprep.subr.bf16.mxu0 0
  %275 = vmatpush1.bf16.msra.mxu0 0
  %276 = vmatprep.subr.bf16.mxu0 0
  %277 = vmatpush1.bf16.msra.mxu0 0
  %278 = vmatprep.subr.bf16.mxu0 0
  %279 = vmatpush1.bf16.msra.mxu0 0
  %280 = vmatprep.subr.bf16.mxu0 0
  %281 = vmatpush1.bf16.msra.mxu0 0
  %282 = vmatprep.subr.bf16.mxu0 0
  %283 = vmatpush1.bf16.msra.mxu0 0
  %284 = vmatprep.subr.bf16.mxu0 0
  %285 = vmatpush1.bf16.msra.mxu0 0
  %286 = vmatprep.subr.bf16.mxu0 0
  %287 = vmatpush1.bf16.msra.mxu0 0
  %288 = vmatprep.subr.bf16.mxu0 0
  %289 = vmatpush1.bf16.msra.mxu0 0
  %290 = vmatprep.subr.bf16.mxu0 0
  %291 = vmatpush1.bf16.msra.mxu0 0
  %292 = vmatprep.mubr.bf16.mxu0 0
  %293 = vmatmul.mubr.bf16.gmra.mrb[0].mxu0 %v206
  %v294 = vpop.f32.mrb[0].mxu0
  %v295 = vadd.f32 %v246, %v294
  %v296 = vpop.f32.mrb[0].mxu0
  %v297 = vpop.f32.mrb[0].mxu0
  %v298 = vadd.f32 %v249, %v297
  %v299 = vpop.f32.mrb[0].mxu0
  %300 = vmatprep.mubr.bf16.mxu0 0
  %301 = vmatmul.mubr.bf16.gmra.mrb[0].mxu0 %v209
  %v302 = vpop.f32.mrb[0].mxu0
  %v303 = vadd.f32 %v254, %v302
  %v304 = vpop.f32.mrb[0].mxu0
  %v305 = vpop.f32.mrb[0].mxu0
  %v306 = vadd.f32 %v257, %v305
  %v307 = vpop.f32.mrb[0].mxu0
  %308 = vdwg.mxu0
  %v309 = vmax.f32 %v295, 0.0
  %v310 = vmax.f32 %v298, 0.0
  %v311 = vmax.f32 %v303, 0.0
  %v312 = vmax.f32 %v306, 0.0
  %v313 = vpack.c.bf16 %v310, %v309
  %v314 = vpack.c.bf16 %v312, %v311
  %v317 = vunpack.c.l.b16 %v313
  %v318 = vunpack.c.h.b16 %v313
  %v319 = vunpack.c.l.b16 %v314
  %v320 = vunpack.c.h.b16 %v314
  %v321 = vpack.c.b16 %v317, %v317
  %v322 = vpack.c.b16 %v318, %v318
  %v323 = vpack.c.b16 %v319, %v319
  %v324 = vpack.c.b16 %v320, %v320
  %vm329 = vcmask 257024
  %330 = vst.msk [vmem:[%s3] sm:$0xf] %vm329, %v321
  %331 = vst.msk [vmem:[%s3 + $0x4] sm:$0xf] %vm329, %v322
  %332 = vst.msk [vmem:[%s3 + $0x8] sm:$0xf] %vm329, %v323
  %333 = vst.msk [vmem:[%s3 + $0xc] sm:$0xf] %vm329, %v324
  // Predicated region
  $region14: #{deeplab_forward.27} parent=0 // pred_check
    _
  $region15: #{deeplab_forward.27} parent=0 // pred_check_branch
    %335 = sbr.rel (0) target = $region17
  $region16: #{deeplab_forward.27} parent=0 // pred_region
    _
  $region17: #{deeplab_forward.27} parent=0 // pred_fallthru
    _
  // Predicated region
  $region18: #{deeplab_forward.27} parent=0 // pred_check
    _
  $region19: #{deeplab_forward.27} parent=0 // pred_check_branch
    %337 = sbr.rel (0) target = $region21
  $region20: #{deeplab_forward.27} parent=0 // pred_region
    _
  $region21: #{deeplab_forward.27} parent=0 // pred_fallthru
    _

// kernel: deeplab_forward.29
$region0: #{deeplab_forward.29}
  #allocation0 [shape = 'u32[]', space=smem, size = 0x4, offset = 0x4, fixed_abs, tag = 'smem constant byte address 0x4 - core index']
  #allocation1 [shape = 'u32[144,128]{1,0:T(1,128)}', space=vmem, size = 0x12000, scoped, tag = 'internal scratch']
  %s0 = inlined_call_operand.vmem [shape: f32[24,4], index: 0, kind: input, shape index: {}]
  %s1 = inlined_call_operand.vmem [shape: f32[4,32], index: 1, kind: input, shape index: {}]
  %s2 = inlined_call_operand.vmem [shape: f32[24,32], index: 2, kind: output, shape index: {}]
  %s3 = sld [smem:[#allocation0]]
  $region18: #{deeplab_forward.29} parent=0
    _
  %s5 = ssub.s32 1, %s3
  %s6 = scalar_select 0, %s5, %s3
  // Predicated region
  $region2: #{deeplab_forward.29} parent=0 // pred_check
    _
  $region3: #{deeplab_forward.29} parent=0 // pred_check_branch
    %8 = sbr.rel (0) target = $region5
  $region4: #{deeplab_forward.29} parent=0 // pred_region
    _
  $region5: #{deeplab_forward.29} parent=0 // pred_fallthru
    _
  // Predicated region
  $region6: #{deeplab_forward.29} parent=0 // pred_check
    _
  $region7: #{deeplab_forward.29} parent=0 // pred_check_branch
    %10 = sbr.rel (0) target = $region9
  $region8: #{deeplab_forward.29} parent=0 // pred_region
    _
  $region9: #{deeplab_forward.29} parent=0 // pred_fallthru
    _
  %v11 = vld [vmem:[%s0] sm:$0xff]
  %v12 = vld [vmem:[%s0 + $0x8] sm:$0xff]
  %v13 = vld [vmem:[%s0 + $0x10] sm:$0xff]
  %v14 = vld [vmem:[%s1] sm:$0xf]
  %vm15 = vcmask 31744
  %v17 = vsel %vm15, %v11, 0
  %v20 = vsel %vm15, %v12, 0
  %v23 = vsel %vm15, %v13, 0
  %vm25 = vcmask 1043456
  %v27 = vsel %vm25, %v14, 0
  %29 = vmatprep.subr.mxu0 0.0
  %30 = vmatpush1.msra.mxu0 %v27
  %31 = vmatprep.subr.mxu0 0.0
  %32 = vmatpush1.msra.mxu0 0.0
  %33 = vmatprep.subr.mxu0 0.0
  %34 = vmatpush1.msra.mxu0 0.0
  %35 = vmatprep.subr.mxu0 0.0
  %36 = vmatpush1.msra.mxu0 0.0
  %37 = vmatprep.subr.mxu0 0.0
  %38 = vmatpush1.msra.mxu0 0.0
  %39 = vmatprep.subr.mxu0 0.0
  %40 = vmatpush1.msra.mxu0 0.0
  %41 = vmatprep.subr.mxu0 0.0
  %42 = vmatpush1.msra.mxu0 0.0
  %43 = vmatprep.subr.mxu0 0.0
  %44 = vmatpush1.msra.mxu0 0.0
  %45 = vmatprep.subr.mxu0 0.0
  %46 = vmatpush1.msra.mxu0 0.0
  %47 = vmatprep.subr.mxu0 0.0
  %48 = vmatpush1.msra.mxu0 0.0
  %49 = vmatprep.subr.mxu0 0.0
  %50 = vmatpush1.msra.mxu0 0.0
  %51 = vmatprep.subr.mxu0 0.0
  %52 = vmatpush1.msra.mxu0 0.0
  %53 = vmatprep.subr.mxu0 0.0
  %54 = vmatpush1.msra.mxu0 0.0
  %55 = vmatprep.subr.mxu0 0.0
  %56 = vmatpush1.msra.mxu0 0.0
  %57 = vmatprep.subr.mxu0 0.0
  %58 = vmatpush1.msra.mxu0 0.0
  %59 = vmatprep.subr.mxu0 0.0
  %60 = vmatpush1.msra.mxu0 0.0
  %61 = vmatprep.subr.mxu0 0.0
  %62 = vmatpush1.msra.mxu0 0.0
  %63 = vmatprep.subr.mxu0 0.0
  %64 = vmatpush1.msra.mxu0 0.0
  %65 = vmatprep.subr.mxu0 0.0
  %66 = vmatpush1.msra.mxu0 0.0
  %67 = vmatprep.subr.mxu0 0.0
  %68 = vmatpush1.msra.mxu0 0.0
  %69 = vmatprep.subr.mxu0 0.0
  %70 = vmatpush1.msra.mxu0 0.0
  %71 = vmatprep.subr.mxu0 0.0
  %72 = vmatpush1.msra.mxu0 0.0
  %73 = vmatprep.subr.mxu0 0.0
  %74 = vmatpush1.msra.mxu0 0.0
  %75 = vmatprep.subr.mxu0 0.0
  %76 = vmatpush1.msra.mxu0 0.0
  %77 = vmatprep.subr.mxu0 0.0
  %78 = vmatpush1.msra.mxu0 0.0
  %79 = vmatprep.subr.mxu0 0.0
  %80 = vmatpush1.msra.mxu0 0.0
  %81 = vmatprep.subr.mxu0 0.0
  %82 = vmatpush1.msra.mxu0 0.0
  %83 = vmatprep.subr.mxu0 0.0
  %84 = vmatpush1.msra.mxu0 0.0
  %85 = vmatprep.subr.mxu0 0.0
  %86 = vmatpush1.msra.mxu0 0.0
  %87 = vmatprep.subr.mxu0 0.0
  %88 = vmatpush1.msra.mxu0 0.0
  %89 = vmatprep.subr.mxu0 0.0
  %90 = vmatpush1.msra.mxu0 0.0
  %91 = vmatprep.subr.mxu0 0.0
  %92 = vmatpush1.msra.mxu0 0.0
  %93 = vmatprep.mubr.f32.mxu0 0.0
  %94 = vmatmul.mubr.f32.gmra.mrb[0].mxu0 %v17
  %v95 = vpop.f32.mrb[0].mxu0
  %v96 = vadd.f32 0.0, %v95
  %v97 = vpop.f32.mrb[0].mxu0
  %98 = vmatprep.mubr.f32.mxu0 0.0
  %99 = vmatmul.mubr.f32.gmra.mrb[0].mxu0 %v20
  %v100 = vpop.f32.mrb[0].mxu0
  %v101 = vadd.f32 0.0, %v100
  %v102 = vpop.f32.mrb[0].mxu0
  %103 = vmatprep.mubr.f32.mxu0 0.0
  %104 = vmatmul.mubr.f32.gmra.mrb[0].mxu0 %v23
  %v105 = vpop.f32.mrb[0].mxu0
  %v106 = vadd.f32 0.0, %v105
  %v107 = vpop.f32.mrb[0].mxu0
  %108 = vdwg.mxu0
  %vm109 = vcmask 261120
  %110 = vst.msk [vmem:[%s2] sm:$0xff] %vm109, %v96
  %111 = vst.msk [vmem:[%s2 + $0x8] sm:$0xff] %vm109, %v101
  %112 = vst.msk [vmem:[%s2 + $0x10] sm:$0xff] %vm109, %v106
  // Predicated region
  $region10: #{deeplab_forward.29} parent=0 // pred_check
    _
  $region11: #{deeplab_forward.29} parent=0 // pred_check_branch
    %114 = sbr.rel (0) target = $region13
  $region12: #{deeplab_forward.29} parent=0 // pred_region
    _
  $region13: #{deeplab_forward.29} parent=0 // pred_fallthru
    _
  // Predicated region
  $region14: #{deeplab_forward.29} parent=0 // pred_check
    _
  $region15: #{deeplab_forward.29} parent=0 // pred_check_branch
    %116 = sbr.rel (0) target = $region17
  $region16: #{deeplab_forward.29} parent=0 // pred_region
    _
  $region17: #{deeplab_forward.29} parent=0 // pred_fallthru
    _

// kernel: deeplab_forward.28
$region0: #{deeplab_forward.28}
  #allocation0 [shape = 'u32[]', space=smem, size = 0x4, offset = 0x4, fixed_abs, tag = 'smem constant byte address 0x4 - core index']
  #allocation1 [shape = 'u32[144,128]{1,0:T(1,128)}', space=vmem, size = 0x12000, scoped, tag = 'internal scratch']
  %s0 = inlined_call_operand.vmem [shape: bf16[2,16,32], index: 0, kind: input, shape index: {}]
  %s1 = inlined_call_operand.vmem [shape: bf16[3,32], index: 1, kind: input, shape index: {}]
  %s2 = inlined_call_operand.vmem [shape: f32[3,1], index: 2, kind: input, shape index: {}]
  %s3 = inlined_call_operand.vmem [shape: f32[2,3,16], index: 3, kind: output, shape index: {}]
  %s4 = sld [smem:[#allocation0]]
  $region45: #{deeplab_forward.28} parent=0
    _
  %s6 = ssub.s32 1, %s4
  %s7 = scalar_select 0, %s6, %s4
  loop: start=0, step=1, limit=4
  $region2: #{deeplab_forward.28} parent=0 // loop_pre_header
    _
  $region3: #{deeplab_forward.28} parent=0 // loop_header
    %s9 = sphi 0, %s13
    %p10 = scmp.ge.s32.totalorder %s9, 4
    %s16 = sphi 0, %s28
    %s17 = sphi 0, %s24
    %s18 = sphi 0, %s16
    %s19 = sphi 0, %s17
    %s20 = sphi 0, %s18
    %s21 = sphi 0, %s19
    %s33 = sphi 0, %s35
    %s36 = sphi 0, %s33
    %s37 = sphi 0, %s36
    %s53 = sphi 0, %s37
    %s57 = sphi 0, %s57
    %s59 = sphi 0, %s57
    %s60 = sphi 0, %s59
    %s74 = sphi 0, %s60
    %s78 = sphi 0, %s78
    %s80 = sphi 0, %s78
    %s81 = sphi 0, %s80
    %s95 = sphi 0, %s81
    %s103 = sphi 0, %s105
    %s106 = sphi 0, %s103
    %s107 = sphi 0, %s106
    %s123 = sphi 0, %s107
  $region4: #{deeplab_forward.28} parent=0 // loop_header_branch
    %12 = sbr.rel (%p10) target = $region8
  $region5: #{deeplab_forward.28} parent=0 // loop_body
    %s14 = ssub.s32 %s9, 1
    %s15 = ssub.s32 %s9, 2
    %s22 = sadd.s32 1, %s17
    %p23 = scmp.ge.s32.totalorder %s22, 1
    %s24 = scalar_select %p23, 0, %s22
    %s25 = sadd.s32 1, %s16
    %s26 = scalar_select %p23, %s25, %s16
    %p27 = scmp.ge.s32.totalorder %s26, 2
    %s28 = scalar_select %p27, 0, %s26
    %s29 = ssub.s32 %s16, %s28
    %s30 = ssub.s32 %s17, %s24
    %s31 = sor.u32 %s29, %s30
    %p32 = scmp.eq.s32.totalorder %s31, 0
    %s34 = sadd.s32 %s33, 1
    %s35 = scalar_select %p32, %s33, %s34
    %p38 = pneg %p32
    %p39 = scmp.eq.s32.totalorder %s9, 1
    %p40 = por %p38, %p39
    %p41 = scmp.ne.s32.totalorder %s33, %s36
    %p42 = scmp.eq.s32.totalorder %s9, 0
    %p43 = por %p41, %p42
    %p44 = scmp.ne.s32.totalorder %s33, %s36
    %p45 = scmp.eq.s32.totalorder %s14, 1
    %p46 = por %p44, %p45
    %p47 = scmp.ne.s32.totalorder %s36, %s37
    %p48 = scmp.eq.s32.totalorder %s14, 0
    %p49 = por %p47, %p48
    %p50 = scmp.ne.s32.totalorder %s36, %s37
    %p51 = scmp.eq.s32.totalorder %s15, 1
    %p52 = por %p50, %p51
    %p54 = scmp.ne.s32.totalorder %s37, %s53
    %p55 = scmp.eq.s32.totalorder %s15, 0
    %p56 = por %p54, %p55
    %s58 = sadd.s32 %s57, 1
    %p61 = scmp.eq.s32.totalorder %s9, 1
    %p62 = scmp.ne.s32.totalorder %s57, %s59
    %p63 = scmp.eq.s32.totalorder %s9, 0
    %p64 = por %p62, %p63
    %p65 = scmp.ne.s32.totalorder %s57, %s59
    %p66 = scmp.eq.s32.totalorder %s14, 1
    %p67 = por %p65, %p66
    %p68 = scmp.ne.s32.totalorder %s59, %s60
    %p69 = scmp.eq.s32.totalorder %s14, 0
    %p70 = por %p68, %p69
    %p71 = scmp.ne.s32.totalorder %s59, %s60
    %p72 = scmp.eq.s32.totalorder %s15, 1
    %p73 = por %p71, %p72
    %p75 = scmp.ne.s32.totalorder %s60, %s74
    %p76 = scmp.eq.s32.totalorder %s15, 0
    %p77 = por %p75, %p76
    %s79 = sadd.s32 %s78, 1
    %p82 = scmp.eq.s32.totalorder %s9, 1
    %p83 = scmp.ne.s32.totalorder %s78, %s80
    %p84 = scmp.eq.s32.totalorder %s9, 0
    %p85 = por %p83, %p84
    %p86 = scmp.ne.s32.totalorder %s78, %s80
    %p87 = scmp.eq.s32.totalorder %s14, 1
    %p88 = por %p86, %p87
    %p89 = scmp.ne.s32.totalorder %s80, %s81
    %p90 = scmp.eq.s32.totalorder %s14, 0
    %p91 = por %p89, %p90
    %p92 = scmp.ne.s32.totalorder %s80, %s81
    %p93 = scmp.eq.s32.totalorder %s15, 1
    %p94 = por %p92, %p93
    %p96 = scmp.ne.s32.totalorder %s81, %s95
    %p97 = scmp.eq.s32.totalorder %s15, 0
    %p98 = por %p96, %p97
    %s99 = ssub.s32 %s16, %s28
    %s100 = ssub.s32 %s17, %s24
    %s101 = sor.u32 %s99, %s100
    %p102 = scmp.eq.s32.totalorder %s101, 0
    %s104 = sadd.s32 %s103, 1
    %s105 = scalar_select %p102, %s103, %s104
    %p108 = pneg %p102
    %p109 = scmp.eq.s32.totalorder %s9, 1
    %p110 = por %p108, %p109
    %p111 = scmp.ne.s32.totalorder %s103, %s106
    %p112 = scmp.eq.s32.totalorder %s9, 0
    %p113 = por %p111, %p112
    %p114 = scmp.ne.s32.totalorder %s103, %s106
    %p115 = scmp.eq.s32.totalorder %s14, 1
    %p116 = por %p114, %p115
    %p117 = scmp.ne.s32.totalorder %s106, %s107
    %p118 = scmp.eq.s32.totalorder %s14, 0
    %p119 = por %p117, %p118
    %p120 = scmp.ne.s32.totalorder %s106, %s107
    %p121 = scmp.eq.s32.totalorder %s15, 1
    %p122 = por %p120, %p121
    %p124 = scmp.ne.s32.totalorder %s107, %s123
    %p125 = scmp.eq.s32.totalorder %s15, 0
    %p126 = por %p124, %p125
    %p127 = scmp.le.s32.totalorder 1, %s9
    %p128 = scmp.lt.s32.totalorder %s9, 3
    %p129 = pnand %p127, %p128
    %p130 = pneg %p129
    // Predicated region
    $region9: #{deeplab_forward.28} parent=5 // pred_check
      _
    $region10: #{deeplab_forward.28} parent=5 // pred_check_branch
      %132 = sbr.rel (%p129) target = $region12
    $region11: #{deeplab_forward.28} parent=5 // pred_region
      %s133 = ssub.s32 %s9, 1
      // Predicated region
      $region13: #{deeplab_forward.28} parent=11 // pred_check
        %p134 = pneg %p70
      $region14: #{deeplab_forward.28} parent=11 // pred_check_branch
        %136 = sbr.rel (%p134) target = $region16
      $region15: #{deeplab_forward.28} parent=11 // pred_region
        _
      $region16: #{deeplab_forward.28} parent=11 // pred_fallthru
        _
      // Predicated region
      $region17: #{deeplab_forward.28} parent=11 // pred_check
        %p137 = pneg %p91
      $region18: #{deeplab_forward.28} parent=11 // pred_check_branch
        %139 = sbr.rel (%p137) target = $region20
      $region19: #{deeplab_forward.28} parent=11 // pred_region
        _
      $region20: #{deeplab_forward.28} parent=11 // pred_fallthru
        _
    $region12: #{deeplab_forward.28} parent=5 // pred_fallthru
      _
    %p140 = scmp.lt.s32.totalorder %s9, 2
    // Predicated region
    $region21: #{deeplab_forward.28} parent=5 // pred_check
      %p141 = pneg %p140
    $region22: #{deeplab_forward.28} parent=5 // pred_check_branch
      %143 = sbr.rel (%p141) target = $region24
    $region23: #{deeplab_forward.28} parent=5 // pred_region
      // Predicated region
      $region25: #{deeplab_forward.28} parent=23 // pred_check
        %p144 = pneg %p43
      $region26: #{deeplab_forward.28} parent=23 // pred_check_branch
        %146 = sbr.rel (%p144) target = $region28
      $region27: #{deeplab_forward.28} parent=23 // pred_region
        %s147 = smul.u32 2, %s17
        %p148 = scmp.lt.s32.totalorder %s16, 1
        %s149 = scalar_select %p148, %s16, 1
        %p150 = scmp.lt.s32.totalorder %s147, 1
        %s151 = scalar_select %p150, %s147, 1
        %s152 = smul.addr %s149, 2
        %s153 = sadd.s32 %s151, %s152
        %s154 = smul.addr %s153, 4
        %s155 = scalar_lea.vmem %s0, %s154
        %s156 = smul.u32 2, %s17
      $region28: #{deeplab_forward.28} parent=23 // pred_fallthru
        _
    $region24: #{deeplab_forward.28} parent=5 // pred_fallthru
      _
    %p157 = scmp.le.s32.totalorder 1, %s9
    %p158 = scmp.lt.s32.totalorder %s9, 3
    %p159 = pnand %p157, %p158
    %p160 = pneg %p159
    // Predicated region
    $region29: #{deeplab_forward.28} parent=5 // pred_check
      _
    $region30: #{deeplab_forward.28} parent=5 // pred_check_branch
      %162 = sbr.rel (%p159) target = $region32
    $region31: #{deeplab_forward.28} parent=5 // pred_region
      %s163 = ssub.s32 %s9, 1
      %s164 = smul.u32 2, %s19
      %p165 = scmp.lt.s32.totalorder %s18, 1
      %s166 = scalar_select %p165, %s18, 1
      %p167 = scmp.lt.s32.totalorder %s164, 1
      %s168 = scalar_select %p167, %s164, 1
      %s169 = smul.addr %s166, 2
      %s170 = sadd.s32 %s168, %s169
      %s171 = smul.addr %s170, 4
      %s172 = scalar_lea.vmem %s0, %s171
      %p173 = pneg %p49
      %p174 = pneg %p46
      %p175 = pneg %p70
      %p176 = pneg %p67
      %p177 = pneg %p91
      %p178 = pneg %p88
      %p179 = pneg %p119
      %p180 = pneg %p116
      %p181 = scmp.lt.s32.totalorder %s18, 1
      %s182 = scalar_select %p181, %s18, 1
      %p183 = scmp.lt.s32.totalorder %s19, 0
      %s184 = scalar_select %p183, %s19, 0
      %s185 = sadd.s32 %s184, %s182
      %s186 = smul.addr %s185, 4
      %s187 = scalar_lea.vmem %s3, %s186
      %s188 = smul.u32 2, %s19
      %p189 = scmp.lt.s32.totalorder %s18, 1
      %s190 = scalar_select %p189, %s18, 1
      %p191 = scmp.lt.s32.totalorder %s188, 1
      %s192 = scalar_select %p191, %s188, 1
      %s193 = smul.addr %s190, 2
      %s194 = sadd.s32 %s192, %s193
      %s195 = smul.addr %s194, 4
      %s196 = scalar_lea.vmem %s0, %s195
      %s197 = smul.u32 2, %s19
      %p198 = scmp.lt.s32.totalorder %s18, 1
      %s199 = scalar_select %p198, %s18, 1
      %p200 = scmp.lt.s32.totalorder %s19, 0
      %s201 = scalar_select %p200, %s19, 0
      %s202 = sadd.s32 %s201, %s199
      %s203 = smul.addr %s202, 4
      %s204 = scalar_lea.vmem %s3, %s203
      %v206 = vld [vmem:[%s1] sm:$0x3]
      %v207 = vld [vmem:[%s196] sm:$0xf]
      %v208 = vld [vmem:[%s196 + $0x4] sm:$0xf]
      %v209 = vld [vmem:[%s2] sm:$0x7]
      %211 = vset.pattern.permute.xlu0 0
      %212 = vperm.xlu0 %211, %v209
      %v213 = vpop.permute.xlu0 %212
      %v217 = vunpack.c.l.b16 %v207
      %v218 = vunpack.c.l.b16 %v208
      %v219 = vpack.c.b16 %v218, %v217
      %vm220 = vcmask 261120
      %v222 = vsel %vm220, %v206, 0
      %v225 = vsel %vm220, %v219, 0
      %227 = vmatprep.subr.bf16.mxu0 0
      %228 = vmatpush1.bf16.xpose.msra.mxu0 %v225
      %229 = vmatprep.subr.bf16.mxu0 0
      %230 = vmatpush1.bf16.xpose.msra.mxu0 0
      %231 = vmatprep.subr.bf16.mxu0 0
      %232 = vmatpush1.bf16.xpose.msra.mxu0 0
      %233 = vmatprep.subr.bf16.mxu0 0
      %234 = vmatpush1.bf16.xpose.msra.mxu0 0
      %235 = vmatprep.subr.bf16.mxu0 0
      %236 = vmatpush1.bf16.xpose.msra.mxu0 0
      %237 = vmatprep.subr.bf16.mxu0 0
      %238 = vmatpush1.bf16.xpose.msra.mxu0 0
      %239 = vmatprep.subr.bf16.mxu0 0
      %240 = vmatpush1.bf16.xpose.msra.mxu0 0
      %241 = vmatprep.subr.bf16.mxu0 0
      %242 = vmatpush1.bf16.xpose.msra.mxu0 0
      %243 = vmatprep.subr.bf16.mxu0 0
      %244 = vmatpush1.bf16.xpose.msra.mxu0 0
      %245 = vmatprep.subr.bf16.mxu0 0
      %246 = vmatpush1.bf16.xpose.msra.mxu0 0
      %247 = vmatprep.subr.bf16.mxu0 0
      %248 = vmatpush1.bf16.xpose.msra.mxu0 0
      %249 = vmatprep.subr.bf16.mxu0 0
      %250 = vmatpush1.bf16.xpose.msra.mxu0 0
      %251 = vmatprep.subr.bf16.mxu0 0
      %252 = vmatpush1.bf16.xpose.msra.mxu0 0
      %253 = vmatprep.subr.bf16.mxu0 0
      %254 = vmatpush1.bf16.xpose.msra.mxu0 0
      %255 = vmatprep.subr.bf16.mxu0 0
      %256 = vmatpush1.bf16.xpose.msra.mxu0 0
      %257 = vmatprep.subr.bf16.mxu0 0
      %258 = vmatpush1.bf16.xpose.msra.mxu0 0
      %259 = vmatprep.mubr.bf16.mxu0 0
      %260 = vmatmul.mubr.bf16.gmra.mrb[0].mxu0 %v222
      %v261 = vpop.f32.mrb[0].mxu0
      %v262 = vadd.f32 %v213, %v261
      %v263 = vpop.f32.mrb[0].mxu0
      %v264 = vpop.f32.mrb[0].mxu0
      %v265 = vpop.f32.mrb[0].mxu0
      %266 = vdwg.mxu0
      %vm267 = vcmask 124928
      %268 = vst.msk [vmem:[%s204] sm:$0x7] %vm267, %v262
      %p269 = scmp.lt.s32.totalorder %s18, 1
      %s270 = scalar_select %p269, %s18, 1
      %p271 = scmp.lt.s32.totalorder %s19, 0
      %s272 = scalar_select %p271, %s19, 0
      %s273 = sadd.s32 %s272, %s270
      %s274 = smul.addr %s273, 4
      %s275 = scalar_lea.vmem %s3, %s274
      // Predicated region
      $region33: #{deeplab_forward.28} parent=31 // pred_check
        %p276 = pneg %p116
      $region34: #{deeplab_forward.28} parent=31 // pred_check_branch
        %278 = sbr.rel (%p276) target = $region36
      $region35: #{deeplab_forward.28} parent=31 // pred_region
        _
      $region36: #{deeplab_forward.28} parent=31 // pred_fallthru
        _
    $region32: #{deeplab_forward.28} parent=5 // pred_fallthru
      _
    %p279 = scmp.le.s32.totalorder 2, %s9
    // Predicated region
    $region37: #{deeplab_forward.28} parent=5 // pred_check
      %p280 = pneg %p279
    $region38: #{deeplab_forward.28} parent=5 // pred_check_branch
      %282 = sbr.rel (%p280) target = $region40
    $region39: #{deeplab_forward.28} parent=5 // pred_region
      %s283 = ssub.s32 %s9, 2
      // Predicated region
      $region41: #{deeplab_forward.28} parent=39 // pred_check
        %p284 = pneg %p122
      $region42: #{deeplab_forward.28} parent=39 // pred_check_branch
        %286 = sbr.rel (%p284) target = $region44
      $region43: #{deeplab_forward.28} parent=39 // pred_region
        %p287 = scmp.lt.s32.totalorder %s20, 1
        %s288 = scalar_select %p287, %s20, 1
        %p289 = scmp.lt.s32.totalorder %s21, 0
        %s290 = scalar_select %p289, %s21, 0
        %s291 = sadd.s32 %s290, %s288
        %s292 = smul.addr %s291, 4
        %s293 = scalar_lea.vmem %s3, %s292
      $region44: #{deeplab_forward.28} parent=39 // pred_fallthru
        _
    $region40: #{deeplab_forward.28} parent=5 // pred_fallthru
      _
  $region6: #{deeplab_forward.28} parent=0 // loop_footer
    %s13 = sadd.s32 1, %s9
  $region7: #{deeplab_forward.28} parent=0 // loop_footer_branch
    %8 = sbr.rel target = $region3
  $region8: #{deeplab_forward.28} parent=0 // loop_exit
    _

// kernel: deeplab_forward.30
$region0: #{deeplab_forward.30}
  #allocation0 [shape = 'u32[]', space=smem, size = 0x4, offset = 0x4, fixed_abs, tag = 'smem constant byte address 0x4 - core index']
  #allocation1 [shape = 'u32[144,128]{1,0:T(1,128)}', space=vmem, size = 0x12000, scoped, tag = 'internal scratch']
  %s0 = inlined_call_operand.vmem [shape: f32[32,4], index: 0, kind: input, shape index: {}]
  %s1 = inlined_call_operand.vmem [shape: f32[6,4,32], index: 1, kind: input, shape index: {}]
  %s2 = inlined_call_operand.vmem [shape: f32[6,32,32], index: 2, kind: output, shape index: {}]
  %s3 = sld [smem:[#allocation0]]
  $region41: #{deeplab_forward.30} parent=0
    _
  %s5 = ssub.s32 1, %s3
  %s6 = scalar_select 0, %s5, %s3
  loop: start=0, step=1, limit=8
  $region2: #{deeplab_forward.30} parent=0 // loop_pre_header
    _
  $region3: #{deeplab_forward.30} parent=0 // loop_header
    %s8 = sphi 0, %s12
    %p9 = scmp.ge.s32.totalorder %s8, 8
    %s16 = sphi 0, %s16
    %s18 = sphi 0, %s16
    %s19 = sphi 0, %s18
    %s33 = sphi 0, %s19
    %s39 = sphi 0, %s41
    %s42 = sphi 0, %s39
    %s43 = sphi 0, %s42
    %s59 = sphi 0, %s43
    %s65 = sphi 0, %s67
    %s68 = sphi 0, %s65
    %s69 = sphi 0, %s68
    %s85 = sphi 0, %s69
  $region4: #{deeplab_forward.30} parent=0 // loop_header_branch
    %11 = sbr.rel (%p9) target = $region8
  $region5: #{deeplab_forward.30} parent=0 // loop_body
    %s13 = ssub.s32 %s8, 1
    %s14 = ssub.s32 %s8, 2
    %s15 = sadd.s32 %s8, 1
    %s17 = sadd.s32 %s16, 1
    %p20 = scmp.eq.s32.totalorder %s8, 5
    %p21 = scmp.ne.s32.totalorder %s16, %s18
    %p22 = scmp.eq.s32.totalorder %s8, 0
    %p23 = por %p21, %p22
    %p24 = scmp.ne.s32.totalorder %s16, %s18
    %p25 = scmp.eq.s32.totalorder %s13, 5
    %p26 = por %p24, %p25
    %p27 = scmp.ne.s32.totalorder %s18, %s19
    %p28 = scmp.eq.s32.totalorder %s13, 0
    %p29 = por %p27, %p28
    %p30 = scmp.ne.s32.totalorder %s18, %s19
    %p31 = scmp.eq.s32.totalorder %s14, 5
    %p32 = por %p30, %p31
    %p34 = scmp.ne.s32.totalorder %s19, %s33
    %p35 = scmp.eq.s32.totalorder %s14, 0
    %p36 = por %p34, %p35
    %s37 = ssub.s32 %s8, %s15
    %p38 = scmp.eq.s32.totalorder %s37, 0
    %s40 = sadd.s32 %s39, 1
    %s41 = scalar_select %p38, %s39, %s40
    %p44 = pneg %p38
    %p45 = scmp.eq.s32.totalorder %s8, 5
    %p46 = por %p44, %p45
    %p47 = scmp.ne.s32.totalorder %s39, %s42
    %p48 = scmp.eq.s32.totalorder %s8, 0
    %p49 = por %p47, %p48
    %p50 = scmp.ne.s32.totalorder %s39, %s42
    %p51 = scmp.eq.s32.totalorder %s13, 5
    %p52 = por %p50, %p51
    %p53 = scmp.ne.s32.totalorder %s42, %s43
    %p54 = scmp.eq.s32.totalorder %s13, 0
    %p55 = por %p53, %p54
    %p56 = scmp.ne.s32.totalorder %s42, %s43
    %p57 = scmp.eq.s32.totalorder %s14, 5
    %p58 = por %p56, %p57
    %p60 = scmp.ne.s32.totalorder %s43, %s59
    %p61 = scmp.eq.s32.totalorder %s14, 0
    %p62 = por %p60, %p61
    %s63 = ssub.s32 %s8, %s15
    %p64 = scmp.eq.s32.totalorder %s63, 0
    %s66 = sadd.s32 %s65, 1
    %s67 = scalar_select %p64, %s65, %s66
    %p70 = pneg %p64
    %p71 = scmp.eq.s32.totalorder %s8, 5
    %p72 = por %p70, %p71
    %p73 = scmp.ne.s32.totalorder %s65, %s68
    %p74 = scmp.eq.s32.totalorder %s8, 0
    %p75 = por %p73, %p74
    %p76 = scmp.ne.s32.totalorder %s65, %s68
    %p77 = scmp.eq.s32.totalorder %s13, 5
    %p78 = por %p76, %p77
    %p79 = scmp.ne.s32.totalorder %s68, %s69
    %p80 = scmp.eq.s32.totalorder %s13, 0
    %p81 = por %p79, %p80
    %p82 = scmp.ne.s32.totalorder %s68, %s69
    %p83 = scmp.eq.s32.totalorder %s14, 5
    %p84 = por %p82, %p83
    %p86 = scmp.ne.s32.totalorder %s69, %s85
    %p87 = scmp.eq.s32.totalorder %s14, 0
    %p88 = por %p86, %p87
    %p89 = scmp.le.s32.totalorder 1, %s8
    %p90 = scmp.lt.s32.totalorder %s8, 7
    %p91 = pnand %p89, %p90
    %p92 = pneg %p91
    // Predicated region
    $region9: #{deeplab_forward.30} parent=5 // pred_check
      _
    $region10: #{deeplab_forward.30} parent=5 // pred_check_branch
      %94 = sbr.rel (%p91) target = $region12
    $region11: #{deeplab_forward.30} parent=5 // pred_region
      %s95 = ssub.s32 %s8, 1
      // Predicated region
      $region13: #{deeplab_forward.30} parent=11 // pred_check
        %p96 = pneg %p29
      $region14: #{deeplab_forward.30} parent=11 // pred_check_branch
        %98 = sbr.rel (%p96) target = $region16
      $region15: #{deeplab_forward.30} parent=11 // pred_region
        _
      $region16: #{deeplab_forward.30} parent=11 // pred_fallthru
        _
    $region12: #{deeplab_forward.30} parent=5 // pred_fallthru
      _
    %p99 = scmp.lt.s32.totalorder %s8, 6
    // Predicated region
    $region17: #{deeplab_forward.30} parent=5 // pred_check
      %p100 = pneg %p99
    $region18: #{deeplab_forward.30} parent=5 // pred_check_branch
      %102 = sbr.rel (%p100) target = $region20
    $region19: #{deeplab_forward.30} parent=5 // pred_region
      // Predicated region
      $region21: #{deeplab_forward.30} parent=19 // pred_check
        %p103 = pneg %p49
      $region22: #{deeplab_forward.30} parent=19 // pred_check_branch
        %105 = sbr.rel (%p103) target = $region24
      $region23: #{deeplab_forward.30} parent=19 // pred_region
        %p106 = scmp.lt.s32.totalorder %s8, 5
        %s107 = scalar_select %p106, %s8, 5
        %s108 = smul.addr %s107, 4
        %s109 = scalar_lea.vmem %s1, %s108
      $region24: #{deeplab_forward.30} parent=19 // pred_fallthru
        _
    $region20: #{deeplab_forward.30} parent=5 // pred_fallthru
      _
    %p110 = scmp.le.s32.totalorder 1, %s8
    %p111 = scmp.lt.s32.totalorder %s8, 7
    %p112 = pnand %p110, %p111
    %p113 = pneg %p112
    // Predicated region
    $region25: #{deeplab_forward.30} parent=5 // pred_check
      _
    $region26: #{deeplab_forward.30} parent=5 // pred_check_branch
      %115 = sbr.rel (%p112) target = $region28
    $region27: #{deeplab_forward.30} parent=5 // pred_region
      %s116 = ssub.s32 %s8, 1
      %p117 = pneg %p29
      %p118 = pneg %p26
      %p119 = scmp.lt.s32.totalorder %s13, 5
      %s120 = scalar_select %p119, %s13, 5
      %s121 = smul.addr %s120, 4
      %s122 = scalar_lea.vmem %s1, %s121
      %p123 = pneg %p55
      %p124 = pneg %p52
      %p125 = pneg %p81
      %p126 = pneg %p78
      %p127 = scmp.lt.s32.totalorder %s13, 5
      %s128 = scalar_select %p127, %s13, 5
      %s129 = smul.addr %s128, 4
      %s130 = smul.addr %s129, 8
      %s131 = scalar_lea.vmem %s2, %s130
      %p132 = scmp.lt.s32.totalorder %s13, 5
      %s133 = scalar_select %p132, %s13, 5
      %s134 = smul.addr %s133, 4
      %s135 = scalar_lea.vmem %s1, %s134
      %p136 = scmp.lt.s32.totalorder %s13, 5
      %s137 = scalar_select %p136, %s13, 5
      %s138 = smul.addr %s137, 4
      %s139 = smul.addr %s138, 8
      %s140 = scalar_lea.vmem %s2, %s139
      %v141 = vld [vmem:[%s0] sm:$0xff]
      %v142 = vld [vmem:[%s0 + $0x8] sm:$0xff]
      %v143 = vld [vmem:[%s0 + $0x10] sm:$0xff]
      %v144 = vld [vmem:[%s0 + $0x18] sm:$0xff]
      %v145 = vld [vmem:[%s135] sm:$0xf]
      %vm146 = vcmask 31744
      %v148 = vsel %vm146, %v141, 0
      %v151 = vsel %vm146, %v142, 0
      %v154 = vsel %vm146, %v143, 0
      %v157 = vsel %vm146, %v144, 0
      %vm159 = vcmask 1043456
      %v161 = vsel %vm159, %v145, 0
      %163 = vmatprep.subr.mxu0 0.0
      %164 = vmatpush1.msra.mxu0 %v161
      %165 = vmatprep.subr.mxu0 0.0
      %166 = vmatpush1.msra.mxu0 0.0
      %167 = vmatprep.subr.mxu0 0.0
      %168 = vmatpush1.msra.mxu0 0.0
      %169 = vmatprep.subr.mxu0 0.0
      %170 = vmatpush1.msra.mxu0 0.0
      %171 = vmatprep.subr.mxu0 0.0
      %172 = vmatpush1.msra.mxu0 0.0
      %173 = vmatprep.subr.mxu0 0.0
      %174 = vmatpush1.msra.mxu0 0.0
      %175 = vmatprep.subr.mxu0 0.0
      %176 = vmatpush1.msra.mxu0 0.0
      %177 = vmatprep.subr.mxu0 0.0
      %178 = vmatpush1.msra.mxu0 0.0
      %179 = vmatprep.subr.mxu0 0.0
      %180 = vmatpush1.msra.mxu0 0.0
      %181 = vmatprep.subr.mxu0 0.0
      %182 = vmatpush1.msra.mxu0 0.0
      %183 = vmatprep.subr.mxu0 0.0
      %184 = vmatpush1.msra.mxu0 0.0
      %185 = vmatprep.subr.mxu0 0.0
      %186 = vmatpush1.msra.mxu0 0.0
      %187 = vmatprep.subr.mxu0 0.0
      %188 = vmatpush1.msra.mxu0 0.0
      %189 = vmatprep.subr.mxu0 0.0
      %190 = vmatpush1.msra.mxu0 0.0
      %191 = vmatprep.subr.mxu0 0.0
      %192 = vmatpush1.msra.mxu0 0.0
      %193 = vmatprep.subr.mxu0 0.0
      %194 = vmatpush1.msra.mxu0 0.0
      %195 = vmatprep.subr.mxu0 0.0
      %196 = vmatpush1.msra.mxu0 0.0
      %197 = vmatprep.subr.mxu0 0.0
      %198 = vmatpush1.msra.mxu0 0.0
      %199 = vmatprep.subr.mxu0 0.0
      %200 = vmatpush1.msra.mxu0 0.0
      %201 = vmatprep.subr.mxu0 0.0
      %202 = vmatpush1.msra.mxu0 0.0
      %203 = vmatprep.subr.mxu0 0.0
      %204 = vmatpush1.msra.mxu0 0.0
      %205 = vmatprep.subr.mxu0 0.0
      %206 = vmatpush1.msra.mxu0 0.0
      %207 = vmatprep.subr.mxu0 0.0
      %208 = vmatpush1.msra.mxu0 0.0
      %209 = vmatprep.subr.mxu0 0.0
      %210 = vmatpush1.msra.mxu0 0.0
      %211 = vmatprep.subr.mxu0 0.0
      %212 = vmatpush1.msra.mxu0 0.0
      %213 = vmatprep.subr.mxu0 0.0
      %214 = vmatpush1.msra.mxu0 0.0
      %215 = vmatprep.subr.mxu0 0.0
      %216 = vmatpush1.msra.mxu0 0.0
      %217 = vmatprep.subr.mxu0 0.0
      %218 = vmatpush1.msra.mxu0 0.0
      %219 = vmatprep.subr.mxu0 0.0
      %220 = vmatpush1.msra.mxu0 0.0
      %221 = vmatprep.subr.mxu0 0.0
      %222 = vmatpush1.msra.mxu0 0.0
      %223 = vmatprep.subr.mxu0 0.0
      %224 = vmatpush1.msra.mxu0 0.0
      %225 = vmatprep.subr.mxu0 0.0
      %226 = vmatpush1.msra.mxu0 0.0
      %227 = vmatprep.mubr.f32.mxu0 0.0
      %228 = vmatmul.mubr.f32.gmra.mrb[0].mxu0 %v148
      %v229 = vpop.f32.mrb[0].mxu0
      %v230 = vadd.f32 0.0, %v229
      %v231 = vpop.f32.mrb[0].mxu0
      %232 = vmatprep.mubr.f32.mxu0 0.0
      %233 = vmatmul.mubr.f32.gmra.mrb[0].mxu0 %v151
      %v234 = vpop.f32.mrb[0].mxu0
      %v235 = vadd.f32 0.0, %v234
      %v236 = vpop.f32.mrb[0].mxu0
      %237 = vmatprep.mubr.f32.mxu0 0.0
      %238 = vmatmul.mubr.f32.gmra.mrb[0].mxu0 %v154
      %v239 = vpop.f32.mrb[0].mxu0
      %v240 = vadd.f32 0.0, %v239
      %v241 = vpop.f32.mrb[0].mxu0
      %242 = vmatprep.mubr.f32.mxu0 0.0
      %243 = vmatmul.mubr.f32.gmra.mrb[0].mxu0 %v157
      %v244 = vpop.f32.mrb[0].mxu0
      %v245 = vadd.f32 0.0, %v244
      %v246 = vpop.f32.mrb[0].mxu0
      %247 = vdwg.mxu0
      %vm248 = vcmask 261120
      %249 = vst.msk [vmem:[%s140] sm:$0xff] %vm248, %v230
      %250 = vst.msk [vmem:[%s140 + $0x8] sm:$0xff] %vm248, %v235
      %251 = vst.msk [vmem:[%s140 + $0x10] sm:$0xff] %vm248, %v240
      %252 = vst.msk [vmem:[%s140 + $0x18] sm:$0xff] %vm248, %v245
      %p253 = scmp.lt.s32.totalorder %s13, 5
      %s254 = scalar_select %p253, %s13, 5
      %s255 = smul.addr %s254, 4
      %s256 = smul.addr %s255, 8
      %s257 = scalar_lea.vmem %s2, %s256
      // Predicated region
      $region29: #{deeplab_forward.30} parent=27 // pred_check
        %p258 = pneg %p78
      $region30: #{deeplab_forward.30} parent=27 // pred_check_branch
        %260 = sbr.rel (%p258) target = $region32
      $region31: #{deeplab_forward.30} parent=27 // pred_region
        _
      $region32: #{deeplab_forward.30} parent=27 // pred_fallthru
        _
    $region28: #{deeplab_forward.30} parent=5 // pred_fallthru
      _
    %p261 = scmp.le.s32.totalorder 2, %s8
    // Predicated region
    $region33: #{deeplab_forward.30} parent=5 // pred_check
      %p262 = pneg %p261
    $region34: #{deeplab_forward.30} parent=5 // pred_check_branch
      %264 = sbr.rel (%p262) target = $region36
    $region35: #{deeplab_forward.30} parent=5 // pred_region
      %s265 = ssub.s32 %s8, 2
      // Predicated region
      $region37: #{deeplab_forward.30} parent=35 // pred_check
        %p266 = pneg %p84
      $region38: #{deeplab_forward.30} parent=35 // pred_check_branch
        %268 = sbr.rel (%p266) target = $region40
      $region39: #{deeplab_forward.30} parent=35 // pred_region
        %p269 = scmp.lt.s32.totalorder %s14, 5
        %s270 = scalar_select %p269, %s14, 5
        %s271 = smul.addr %s270, 4
        %s272 = smul.addr %s271, 8
        %s273 = scalar_lea.vmem %s2, %s272
      $region40: #{deeplab_forward.30} parent=35 // pred_fallthru
        _
    $region36: #{deeplab_forward.30} parent=5 // pred_fallthru
      _
  $region6: #{deeplab_forward.30} parent=0 // loop_footer
    %s12 = sadd.s32 1, %s8
  $region7: #{deeplab_forward.30} parent=0 // loop_footer_branch
    %7 = sbr.rel target = $region3
  $region8: #{deeplab_forward.30} parent=0 // loop_exit
    _

// kernel: deeplab_forward.31
$region0: #{deeplab_forward.31}
  #allocation0 [shape = 'u32[]', space=smem, size = 0x4, offset = 0x4, fixed_abs, tag = 'smem constant byte address 0x4 - core index']
  #allocation1 [shape = 'u32[144,128]{1,0:T(1,128)}', space=vmem, size = 0x12000, scoped, tag = 'internal scratch']
  %s0 = inlined_call_operand.vmem [shape: f32[2,3,1024], index: 0, kind: input, shape index: {}]
  %s1 = inlined_call_operand.vmem [shape: f32[2,3,1024], index: 1, kind: output, shape index: {}]
  %s2 = sld [smem:[#allocation0]]
  $region37: #{deeplab_forward.31} parent=0
    _
  %s4 = ssub.s32 1, %s2
  %s5 = scalar_select 0, %s4, %s2
  loop: start=0, step=1, limit=4
  $region2: #{deeplab_forward.31} parent=0 // loop_pre_header
    _
  $region3: #{deeplab_forward.31} parent=0 // loop_header
    %s7 = sphi 0, %s11
    %p8 = scmp.ge.s32.totalorder %s7, 4
    %s14 = sphi 0, %s26
    %s15 = sphi 0, %s22
    %s16 = sphi 0, %s14
    %s17 = sphi 0, %s15
    %s18 = sphi 0, %s16
    %s19 = sphi 0, %s17
    %s31 = sphi 0, %s33
    %s34 = sphi 0, %s31
    %s35 = sphi 0, %s34
    %s51 = sphi 0, %s35
    %s59 = sphi 0, %s61
    %s62 = sphi 0, %s59
    %s63 = sphi 0, %s62
    %s79 = sphi 0, %s63
  $region4: #{deeplab_forward.31} parent=0 // loop_header_branch
    %10 = sbr.rel (%p8) target = $region8
  $region5: #{deeplab_forward.31} parent=0 // loop_body
    %s12 = ssub.s32 %s7, 1
    %s13 = ssub.s32 %s7, 2
    %s20 = sadd.s32 1, %s15
    %p21 = scmp.ge.s32.totalorder %s20, 1
    %s22 = scalar_select %p21, 0, %s20
    %s23 = sadd.s32 1, %s14
    %s24 = scalar_select %p21, %s23, %s14
    %p25 = scmp.ge.s32.totalorder %s24, 2
    %s26 = scalar_select %p25, 0, %s24
    %s27 = ssub.s32 %s14, %s26
    %s28 = ssub.s32 %s15, %s22
    %s29 = sor.u32 %s27, %s28
    %p30 = scmp.eq.s32.totalorder %s29, 0
    %s32 = sadd.s32 %s31, 1
    %s33 = scalar_select %p30, %s31, %s32
    %p36 = pneg %p30
    %p37 = scmp.eq.s32.totalorder %s7, 1
    %p38 = por %p36, %p37
    %p39 = scmp.ne.s32.totalorder %s31, %s34
    %p40 = scmp.eq.s32.totalorder %s7, 0
    %p41 = por %p39, %p40
    %p42 = scmp.ne.s32.totalorder %s31, %s34
    %p43 = scmp.eq.s32.totalorder %s12, 1
    %p44 = por %p42, %p43
    %p45 = scmp.ne.s32.totalorder %s34, %s35
    %p46 = scmp.eq.s32.totalorder %s12, 0
    %p47 = por %p45, %p46
    %p48 = scmp.ne.s32.totalorder %s34, %s35
    %p49 = scmp.eq.s32.totalorder %s13, 1
    %p50 = por %p48, %p49
    %p52 = scmp.ne.s32.totalorder %s35, %s51
    %p53 = scmp.eq.s32.totalorder %s13, 0
    %p54 = por %p52, %p53
    %s55 = ssub.s32 %s14, %s26
    %s56 = ssub.s32 %s15, %s22
    %s57 = sor.u32 %s55, %s56
    %p58 = scmp.eq.s32.totalorder %s57, 0
    %s60 = sadd.s32 %s59, 1
    %s61 = scalar_select %p58, %s59, %s60
    %p64 = pneg %p58
    %p65 = scmp.eq.s32.totalorder %s7, 1
    %p66 = por %p64, %p65
    %p67 = scmp.ne.s32.totalorder %s59, %s62
    %p68 = scmp.eq.s32.totalorder %s7, 0
    %p69 = por %p67, %p68
    %p70 = scmp.ne.s32.totalorder %s59, %s62
    %p71 = scmp.eq.s32.totalorder %s12, 1
    %p72 = por %p70, %p71
    %p73 = scmp.ne.s32.totalorder %s62, %s63
    %p74 = scmp.eq.s32.totalorder %s12, 0
    %p75 = por %p73, %p74
    %p76 = scmp.ne.s32.totalorder %s62, %s63
    %p77 = scmp.eq.s32.totalorder %s13, 1
    %p78 = por %p76, %p77
    %p80 = scmp.ne.s32.totalorder %s63, %s79
    %p81 = scmp.eq.s32.totalorder %s13, 0
    %p82 = por %p80, %p81
    %p83 = scmp.le.s32.totalorder 1, %s7
    %p84 = scmp.lt.s32.totalorder %s7, 3
    %p85 = pnand %p83, %p84
    %p86 = pneg %p85
    // Predicated region
    $region9: #{deeplab_forward.31} parent=5 // pred_check
      _
    $region10: #{deeplab_forward.31} parent=5 // pred_check_branch
      %88 = sbr.rel (%p85) target = $region12
    $region11: #{deeplab_forward.31} parent=5 // pred_region
      %s89 = ssub.s32 %s7, 1
    $region12: #{deeplab_forward.31} parent=5 // pred_fallthru
      _
    %p90 = scmp.lt.s32.totalorder %s7, 2
    // Predicated region
    $region13: #{deeplab_forward.31} parent=5 // pred_check
      %p91 = pneg %p90
    $region14: #{deeplab_forward.31} parent=5 // pred_check_branch
      %93 = sbr.rel (%p91) target = $region16
    $region15: #{deeplab_forward.31} parent=5 // pred_region
      // Predicated region
      $region17: #{deeplab_forward.31} parent=15 // pred_check
        %p94 = pneg %p41
      $region18: #{deeplab_forward.31} parent=15 // pred_check_branch
        %96 = sbr.rel (%p94) target = $region20
      $region19: #{deeplab_forward.31} parent=15 // pred_region
        %s97 = smul.u32 8, %s15
        %p98 = scmp.lt.s32.totalorder %s14, 1
        %s99 = scalar_select %p98, %s14, 1
        %p100 = scmp.lt.s32.totalorder %s97, 7
        %s101 = scalar_select %p100, %s97, 7
        %s102 = smul.addr %s99, 8
        %s103 = sadd.s32 %s101, %s102
        %s104 = smul.addr %s103, 4
        %s105 = scalar_lea.vmem %s0, %s104
        %s106 = smul.u32 8, %s15
      $region20: #{deeplab_forward.31} parent=15 // pred_fallthru
        _
    $region16: #{deeplab_forward.31} parent=5 // pred_fallthru
      _
    %p107 = scmp.le.s32.totalorder 1, %s7
    %p108 = scmp.lt.s32.totalorder %s7, 3
    %p109 = pnand %p107, %p108
    %p110 = pneg %p109
    // Predicated region
    $region21: #{deeplab_forward.31} parent=5 // pred_check
      _
    $region22: #{deeplab_forward.31} parent=5 // pred_check_branch
      %112 = sbr.rel (%p109) target = $region24
    $region23: #{deeplab_forward.31} parent=5 // pred_region
      %s113 = ssub.s32 %s7, 1
      %s114 = smul.u32 8, %s17
      %p115 = scmp.lt.s32.totalorder %s16, 1
      %s116 = scalar_select %p115, %s16, 1
      %p117 = scmp.lt.s32.totalorder %s114, 7
      %s118 = scalar_select %p117, %s114, 7
      %s119 = smul.addr %s116, 8
      %s120 = sadd.s32 %s118, %s119
      %s121 = smul.addr %s120, 4
      %s122 = scalar_lea.vmem %s0, %s121
      %p123 = pneg %p47
      %p124 = pneg %p44
      %p125 = pneg %p75
      %p126 = pneg %p72
      %s127 = smul.u32 8, %s17
      %p128 = scmp.lt.s32.totalorder %s16, 1
      %s129 = scalar_select %p128, %s16, 1
      %p130 = scmp.lt.s32.totalorder %s127, 7
      %s131 = scalar_select %p130, %s127, 7
      %s132 = smul.addr %s129, 8
      %s133 = sadd.s32 %s131, %s132
      %s134 = smul.addr %s133, 4
      %s135 = scalar_lea.vmem %s1, %s134
      %s136 = smul.u32 8, %s17
      %p137 = scmp.lt.s32.totalorder %s16, 1
      %s138 = scalar_select %p137, %s16, 1
      %p139 = scmp.lt.s32.totalorder %s136, 7
      %s140 = scalar_select %p139, %s136, 7
      %s141 = smul.addr %s138, 8
      %s142 = sadd.s32 %s140, %s141
      %s143 = smul.addr %s142, 4
      %s144 = scalar_lea.vmem %s0, %s143
      %s145 = smul.u32 8, %s17
      %s146 = smul.u32 8, %s17
      %p147 = scmp.lt.s32.totalorder %s16, 1
      %s148 = scalar_select %p147, %s16, 1
      %p149 = scmp.lt.s32.totalorder %s146, 7
      %s150 = scalar_select %p149, %s146, 7
      %s151 = smul.addr %s148, 8
      %s152 = sadd.s32 %s150, %s151
      %s153 = smul.addr %s152, 4
      %s154 = scalar_lea.vmem %s1, %s153
      %s155 = smul.u32 8, %s17
      %v156 = vld [vmem:[%s144] sm:$0x77]
      %v157 = vld [vmem:[%s144 + $0x8] sm:$0x77]
      %v158 = vld [vmem:[%s144 + $0x10] sm:$0x77]
      %v159 = vld [vmem:[%s144 + $0x18] sm:$0x77]
      %v164 = vcombine.high %v156, %v156
      %v165 = vcombine.high %v157, %v157
      %v166 = vcombine.high %v158, %v158
      %v167 = vcombine.high %v159, %v159
      %vm172 = vcmask 1042432
      %v173 = vsel %vm172, %v156, -inf
      %v174 = vrot.slane %v173, 4
      %v175 = vmax.f32 %v173, %v174
      %v176 = vrot.slane %v175, 2
      %v177 = vmax.f32 %v175, %v176
      %v178 = vrot.slane %v177, 1
      %v179 = vmax.f32 %v177, %v178
      %v180 = vsel %vm172, %v164, -inf
      %v181 = vrot.slane %v180, 4
      %v182 = vmax.f32 %v180, %v181
      %v183 = vrot.slane %v182, 2
      %v184 = vmax.f32 %v182, %v183
      %v185 = vrot.slane %v184, 1
      %v186 = vmax.f32 %v184, %v185
      %v187 = vsel %vm172, %v157, -inf
      %v188 = vrot.slane %v187, 4
      %v189 = vmax.f32 %v187, %v188
      %v190 = vrot.slane %v189, 2
      %v191 = vmax.f32 %v189, %v190
      %v192 = vrot.slane %v191, 1
      %v193 = vmax.f32 %v191, %v192
      %v194 = vsel %vm172, %v165, -inf
      %v195 = vrot.slane %v194, 4
      %v196 = vmax.f32 %v194, %v195
      %v197 = vrot.slane %v196, 2
      %v198 = vmax.f32 %v196, %v197
      %v199 = vrot.slane %v198, 1
      %v200 = vmax.f32 %v198, %v199
      %v201 = vsel %vm172, %v158, -inf
      %v202 = vrot.slane %v201, 4
      %v203 = vmax.f32 %v201, %v202
      %v204 = vrot.slane %v203, 2
      %v205 = vmax.f32 %v203, %v204
      %v206 = vrot.slane %v205, 1
      %v207 = vmax.f32 %v205, %v206
      %v208 = vsel %vm172, %v166, -inf
      %v209 = vrot.slane %v208, 4
      %v210 = vmax.f32 %v208, %v209
      %v211 = vrot.slane %v210, 2
      %v212 = vmax.f32 %v210, %v211
      %v213 = vrot.slane %v212, 1
      %v214 = vmax.f32 %v212, %v213
      %v215 = vsel %vm172, %v159, -inf
      %v216 = vrot.slane %v215, 4
      %v217 = vmax.f32 %v215, %v216
      %v218 = vrot.slane %v217, 2
      %v219 = vmax.f32 %v217, %v218
      %v220 = vrot.slane %v219, 1
      %v221 = vmax.f32 %v219, %v220
      %v222 = vsel %vm172, %v167, -inf
      %v223 = vrot.slane %v222, 4
      %v224 = vmax.f32 %v222, %v223
      %v225 = vrot.slane %v224, 2
      %v226 = vmax.f32 %v224, %v225
      %v227 = vrot.slane %v226, 1
      %v228 = vmax.f32 %v226, %v227
      %v237 = vcombine.low %v179, %v186
      %v238 = vcombine.low %v193, %v200
      %v239 = vcombine.low %v207, %v214
      %v240 = vcombine.low %v221, %v228
      %v245 = vsub.f32 %v156, %v237
      %v246 = vsub.f32 %v157, %v238
      %v247 = vsub.f32 %v158, %v239
      %v248 = vsub.f32 %v159, %v240
      %v249 = vmul.f32 %v245, 1.442695
      %v250 = vpow.pop %v249
      %v251 = vmul.f32 %v246, 1.442695
      %v252 = vpow.pop %v251
      %v253 = vmul.f32 %v247, 1.442695
      %v254 = vpow.pop %v253
      %v255 = vmul.f32 %v248, 1.442695
      %v256 = vpow.pop %v255
      %v261 = vcombine.high %v250, %v250
      %v262 = vcombine.high %v252, %v252
      %v263 = vcombine.high %v254, %v254
      %v264 = vcombine.high %v256, %v256
      %v269 = vsel %vm172, %v250, 0.0
      %v270 = vrot.slane %v269, 4
      %v271 = vadd.f32 %v269, %v270
      %v272 = vrot.slane %v271, 2
      %v273 = vadd.f32 %v271, %v272
      %v274 = vrot.slane %v273, 1
      %v275 = vadd.f32 %v273, %v274
      %v276 = vsel %vm172, %v261, 0.0
      %v277 = vrot.slane %v276, 4
      %v278 = vadd.f32 %v276, %v277
      %v279 = vrot.slane %v278, 2
      %v280 = vadd.f32 %v278, %v279
      %v281 = vrot.slane %v280, 1
      %v282 = vadd.f32 %v280, %v281
      %v283 = vsel %vm172, %v252, 0.0
      %v284 = vrot.slane %v283, 4
      %v285 = vadd.f32 %v283, %v284
      %v286 = vrot.slane %v285, 2
      %v287 = vadd.f32 %v285, %v286
      %v288 = vrot.slane %v287, 1
      %v289 = vadd.f32 %v287, %v288
      %v290 = vsel %vm172, %v262, 0.0
      %v291 = vrot.slane %v290, 4
      %v292 = vadd.f32 %v290, %v291
      %v293 = vrot.slane %v292, 2
      %v294 = vadd.f32 %v292, %v293
      %v295 = vrot.slane %v294, 1
      %v296 = vadd.f32 %v294, %v295
      %v297 = vsel %vm172, %v254, 0.0
      %v298 = vrot.slane %v297, 4
      %v299 = vadd.f32 %v297, %v298
      %v300 = vrot.slane %v299, 2
      %v301 = vadd.f32 %v299, %v300
      %v302 = vrot.slane %v301, 1
      %v303 = vadd.f32 %v301, %v302
      %v304 = vsel %vm172, %v263, 0.0
      %v305 = vrot.slane %v304, 4
      %v306 = vadd.f32 %v304, %v305
      %v307 = vrot.slane %v306, 2
      %v308 = vadd.f32 %v306, %v307
      %v309 = vrot.slane %v308, 1
      %v310 = vadd.f32 %v308, %v309
      %v311 = vsel %vm172, %v256, 0.0
      %v312 = vrot.slane %v311, 4
      %v313 = vadd.f32 %v311, %v312
      %v314 = vrot.slane %v313, 2
      %v315 = vadd.f32 %v313, %v314
      %v316 = vrot.slane %v315, 1
      %v317 = vadd.f32 %v315, %v316
      %v318 = vsel %vm172, %v264, 0.0
      %v319 = vrot.slane %v318, 4
      %v320 = vadd.f32 %v318, %v319
      %v321 = vrot.slane %v320, 2
      %v322 = vadd.f32 %v320, %v321
      %v323 = vrot.slane %v322, 1
      %v324 = vadd.f32 %v322, %v323
      %v333 = vcombine.low %v275, %v282
      %v334 = vcombine.low %v289, %v296
      %v335 = vcombine.low %v303, %v310
      %v336 = vcombine.low %v317, %v324
      %v341 = vrcp.pop %v333
      %v342 = vmul.f32 %v250, %v341
      %v343 = vrcp.pop %v334
      %v344 = vmul.f32 %v252, %v343
      %v345 = vrcp.pop %v335
      %v346 = vmul.f32 %v254, %v345
      %v347 = vrcp.pop %v336
      %v348 = vmul.f32 %v256, %v347
      %349 = vst [vmem:[%s154] sm:$0x77] %v342
      %350 = vst [vmem:[%s154 + $0x8] sm:$0x77] %v344
      %351 = vst [vmem:[%s154 + $0x10] sm:$0x77] %v346
      %352 = vst [vmem:[%s154 + $0x18] sm:$0x77] %v348
      %s353 = smul.u32 8, %s17
      %p354 = scmp.lt.s32.totalorder %s16, 1
      %s355 = scalar_select %p354, %s16, 1
      %p356 = scmp.lt.s32.totalorder %s353, 7
      %s357 = scalar_select %p356, %s353, 7
      %s358 = smul.addr %s355, 8
      %s359 = sadd.s32 %s357, %s358
      %s360 = smul.addr %s359, 4
      %s361 = scalar_lea.vmem %s1, %s360
      // Predicated region
      $region25: #{deeplab_forward.31} parent=23 // pred_check
        %p362 = pneg %p72
      $region26: #{deeplab_forward.31} parent=23 // pred_check_branch
        %364 = sbr.rel (%p362) target = $region28
      $region27: #{deeplab_forward.31} parent=23 // pred_region
        %s365 = smul.u32 8, %s17
      $region28: #{deeplab_forward.31} parent=23 // pred_fallthru
        _
    $region24: #{deeplab_forward.31} parent=5 // pred_fallthru
      _
    %p366 = scmp.le.s32.totalorder 2, %s7
    // Predicated region
    $region29: #{deeplab_forward.31} parent=5 // pred_check
      %p367 = pneg %p366
    $region30: #{deeplab_forward.31} parent=5 // pred_check_branch
      %369 = sbr.rel (%p367) target = $region32
    $region31: #{deeplab_forward.31} parent=5 // pred_region
      %s370 = ssub.s32 %s7, 2
      // Predicated region
      $region33: #{deeplab_forward.31} parent=31 // pred_check
        %p371 = pneg %p78
      $region34: #{deeplab_forward.31} parent=31 // pred_check_branch
        %373 = sbr.rel (%p371) target = $region36
      $region35: #{deeplab_forward.31} parent=31 // pred_region
        %s374 = smul.u32 8, %s19
        %p375 = scmp.lt.s32.totalorder %s18, 1
        %s376 = scalar_select %p375, %s18, 1
        %p377 = scmp.lt.s32.totalorder %s374, 7
        %s378 = scalar_select %p377, %s374, 7
        %s379 = smul.addr %s376, 8
        %s380 = sadd.s32 %s378, %s379
        %s381 = smul.addr %s380, 4
        %s382 = scalar_lea.vmem %s1, %s381
      $region36: #{deeplab_forward.31} parent=31 // pred_fallthru
        _
    $region32: #{deeplab_forward.31} parent=5 // pred_fallthru
      _
  $region6: #{deeplab_forward.31} parent=0 // loop_footer
    %s11 = sadd.s32 1, %s7
  $region7: #{deeplab_forward.31} parent=0 // loop_footer_branch
    %6 = sbr.rel target = $region3
  $region8: #{deeplab_forward.31} parent=0 // loop_exit
    _

</llo_original>
